<compile_context>
chip_gen: v7x
topology: tpu7x:2x2x1
jax: 0.10.0
libtpu: 0.0.40
codegen_flags: <defaults>
</compile_context>

<pallas_src>
import functools

import jax
import jax.numpy as jnp
import numpy as np
from jax.experimental import pallas as pl
from jax.experimental.pallas import tpu as pltpu


# ------------------------------ fused kernel ------------------------------- #

def _dqn_kernel(x_ref, w1_ref, b1_ref, k15_ref, k17_ref, w2_ref, b2_ref,
                wh2_ref, msk_ref, sel_ref, g_ref, bh_ref,
                out_ref, a1_ref, y1_ref, a2_ref, y2_ref,
                *, k1, w_in, c1l):
    """One grid step = Btile images, per-image row stride Hp inside the slabs."""
    M = a1_ref.shape[0]                       # Btile * Hp
    f32 = jnp.float32

    # ---- conv1 activation slab: A1[r, i*W + w] = x_hpad[r + i, w] ------------
    # (rows past the last image are zero-filled so every matmul input is finite)
    for i in range(k1):
        a1_ref[0:M - i, i * w_in:(i + 1) * w_in] = x_ref[i:M, :]
        if i:
            a1_ref[M - i:M, i * w_in:(i + 1) * w_in] = jnp.zeros((i, w_in), f32)

    # ---- conv1 (+ folded BN1) + ReLU: ONE matmul, K = K1*W -------------------
    y1_ref[...] = jnp.maximum(
        jnp.dot(a1_ref[...], w1_ref[...], preferred_element_type=f32)
        + b1_ref[...], 0.0)

    # ---- conv2 activation slab (K2 = 2 lane blocks of 128) -------------------
    # h-direction zero padding of the conv1 output is realised with the
    # precomputed 0/1 keep-masks (rows that must be padding are zeroed).
    a2_ref[:, c1l:2 * c1l] = y1_ref[...] * k15_ref[...]
    a2_ref[1:M, 0:c1l] = y1_ref[0:M - 1, :] * k17_ref[0:M - 1, :]
    a2_ref[0:1, 0:c1l] = jnp.zeros((1, c1l), f32)

    # ---- conv2 (+ folded BN2) + ReLU: ONE matmul, K = 2*128 = 256 ------------
    y2_ref[...] = jnp.maximum(
        jnp.dot(a2_ref[...], w2_ref[...], preferred_element_type=f32)
        + b2_ref[...], 0.0)

    # ---- linear head: all NOUT outputs in one fused contraction --------------
    # p[r, o*H2o + h] = sum_l y2[r, l] * wh[o, :, h, :]; keep only h == (r % Hp)
    # via the precomputed diagonal mask, then sum rows per image (sel) and lanes
    # per output (g).  One [Btile, NOUT] store.
    p = jnp.dot(y2_ref[...], wh2_ref[...], preferred_element_type=f32)
    p = p * msk_ref[...]
    t = jnp.dot(sel_ref[...], p, preferred_element_type=f32)
    out_ref[...] = (jnp.dot(t, g_ref[...], preferred_element_type=f32)
                    + bh_ref[...])


# ------------------------------ forward wrapper ----------------------------- #

def dqn_forward(x, params, eps=1e-5, btile=16):
    """x: [B, 1, H, W] float32 (NCHW, matching the PyTorch module)."""
    (w1, b1, g1, be1, m1, v1,
     w2, b2, g2, be2, m2, v2,
     wh, bh) = params

    f32 = jnp.float32
    B = x.shape[0]
    H, W = x.shape[2], x.shape[3]
    C1, K1 = w1.shape[0], w1.shape[2]          # 8, 4
    C2, K2 = w2.shape[0], w2.shape[2]          # 16, 2
    assert K2 == 2, "kernel hard-codes conv2 kernel height 2"
    PAD = 1
    H1o = H + 2 * PAD - K1 + 1                 # 15
    W1o = W + 2 * PAD - K1 + 1                 # 15
    H2o = H1o + 2 * PAD - K2 + 1               # 16
    W2o = W1o + 2 * PAD - K2 + 1               # 16
    NOUT = wh.shape[0]
    Hp = H + 2 * PAD                           # 18: per-image row stride in-kernel
    C1L = 128                                  # conv1 output lanes, padded 120 -> 128
    assert W1o * C1 <= C1L and W2o * C2 == 256

    # ----------------- BN (eval) folded into conv weights / biases ----------- #
    s1 = g1 / jnp.sqrt(v1 + eps)
    s2 = g2 / jnp.sqrt(v2 + eps)
    bias1 = (b1 - m1) * s1 + be1
    bias2 = (b2 - m2) * s2 + be2
    w1f = w1[:, 0, :, :] * s1[:, None, None]                  # [C1, K1, K1]
    w2f = w2 * s2[:, None, None, None]                        # [C2, C1, K2, K2]

    # ----------------- banded conv weights (w-padding inside the band) ------- #
    def band1(i):
        m = jnp.zeros((W, W1o * C1), f32)
        for j in range(K1):
            e = jnp.eye(W, W1o, k=PAD - j, dtype=f32)
            m = m + jnp.einsum('ab,c->abc', e, w1f[:, i, j]).reshape(W, W1o * C1)
        return m

    def band2(i):
        m = jnp.zeros((W1o * C1, W2o * C2), f32)
        for j in range(K2):
            e = jnp.eye(W1o, W2o, k=PAD - j, dtype=f32)
            m = m + jnp.einsum('ab,ce->aebc', e,
                               w2f[:, :, i, j]).reshape(W1o * C1, W2o * C2)
        return m

    # conv1: kh folded into K -> [K1*W, 128] (lane-padded 120 -> 128)
    w1big = jnp.concatenate([band1(i) for i in range(K1)], axis=0)
    w1big = jnp.pad(w1big, ((0, 0), (0, C1L - W1o * C1)))
    b1row = jnp.pad(jnp.tile(bias1, W1o).reshape(1, W1o * C1),
                    ((0, 0), (0, C1L - W1o * C1)))

    # conv2: kh folded into K -> [K2*128, W2o*C2] (zero rows for the 8 pad lanes)
    w2big = jnp.concatenate(
        [jnp.pad(band2(i), ((0, C1L - W1o * C1), (0, 0))) for i in range(K2)],
        axis=0)
    b2row = jnp.tile(bias2, W2o).reshape(1, W2o * C2)

    # head: PyTorch flatten order (c, h, w) -> [w*C2 + c, o*H2o + h]
    wh4 = wh.reshape(NOUT, C2, H2o, W2o)
    wh2m = wh4.transpose(3, 1, 0, 2).reshape(W2o * C2, NOUT * H2o)
    bh_row = bh.reshape(1, NOUT)

    # ----------------- trace-time constant mask / selection matrices --------- #
    Btile = btile
    M = Btile * Hp
    NH = NOUT * H2o
    r = np.arange(M)
    # rows whose conv2-input must be the bottom / top h-padding row -> zero them
    keep15 = (r % Hp != H1o).astype(np.float32).reshape(M, 1)
    keep17 = (r % Hp != Hp - 1).astype(np.float32).reshape(M, 1)
    cc = np.arange(NH)
    diag = ((r[:, None] % Hp) == (cc[None, :] % H2o)).astype(np.float32)   # [M, NH]
    sel = (r[None, :] // Hp == np.arange(Btile)[:, None]).astype(np.float32)  # [Btile, M]
    gmat = (cc[:, None] // H2o == np.arange(NOUT)[None, :]).astype(np.float32)  # [NH, NOUT]

    # ----------------- batch padding + h zero-padding (done by XLA) ---------- #
    B_pad = ((B + Btile - 1) // Btile) * Btile
    ximg = x[:, 0, :, :].astype(f32)
    ximg = jnp.pad(ximg, ((0, B_pad - B), (PAD, PAD), (0, 0)))     # [B_pad, Hp, W]
    x2d = ximg.reshape(B_pad * Hp, W)

    nsteps = B_pad // Btile

    kern = functools.partial(_dqn_kernel, k1=K1, w_in=W, c1l=C1L)

    out = pl.pallas_call(
        kern,
        out_shape=jax.ShapeDtypeStruct((B_pad, NOUT), f32),
        grid=(nsteps,),
        in_specs=[
            pl.BlockSpec((M, W), lambda i: (i, 0)),                 # Btile h-padded images
            pl.BlockSpec((K1 * W, C1L), lambda i: (0, 0)),          # conv1 banded weight
            pl.BlockSpec((1, C1L), lambda i: (0, 0)),               # conv1 folded bias
            pl.BlockSpec((M, 1), lambda i: (0, 0)),                 # keep-mask (bottom pad)
            pl.BlockSpec((M, 1), lambda i: (0, 0)),                 # keep-mask (top pad)
            pl.BlockSpec((K2 * C1L, W2o * C2), lambda i: (0, 0)),   # conv2 banded weight
            pl.BlockSpec((1, W2o * C2), lambda i: (0, 0)),          # conv2 folded bias
            pl.BlockSpec((W2o * C2, NH), lambda i: (0, 0)),         # head weight (permuted)
            pl.BlockSpec((M, NH), lambda i: (0, 0)),                # head diagonal mask
            pl.BlockSpec((Btile, M), lambda i: (0, 0)),             # per-image row-sum
            pl.BlockSpec((NH, NOUT), lambda i: (0, 0)),             # per-output lane-sum
            pl.BlockSpec((1, NOUT), lambda i: (0, 0)),              # head bias
        ],
        out_specs=pl.BlockSpec((Btile, NOUT), lambda i: (i, 0)),
        scratch_shapes=[
            pltpu.VMEM((M, K1 * W), f32),        # A1: conv1 activation slab
            pltpu.VMEM((M, C1L), f32),           # Y1: conv1 output
            pltpu.VMEM((M, K2 * C1L), f32),      # A2: conv2 activation slab
            pltpu.VMEM((M, W2o * C2), f32),      # Y2: conv2 output
        ],
        compiler_params=pltpu.CompilerParams(
            dimension_semantics=("parallel",)),
    )(x2d, w1big, b1row, jnp.asarray(keep15), jnp.asarray(keep17),
      w2big, b2row, wh2m, jnp.asarray(diag), jnp.asarray(sel),
      jnp.asarray(gmat), bh_row)

    return out[:B]


# --------------------------- pure-JAX reference ----------------------------- #

def dqn_reference(x, params, eps=1e-5):
    (w1, b1, g1, be1, m1, v1,
     w2, b2, g2, be2, m2, v2,
     wh, bh) = params

    def conv(z, w, b, pad):
        y = jax.lax.conv_general_dilated(
            z, w, window_strides=(1, 1), padding=((pad, pad), (pad, pad)),
            dimension_numbers=("NCHW", "OIHW", "NCHW"))
        return y + b[None, :, None, None]

    def bn(y, g, be, m, v):
        return ((y - m[None, :, None, None])
                / jnp.sqrt(v[None, :, None, None] + eps)
                * g[None, :, None, None] + be[None, :, None, None])

    y = jnp.maximum(bn(conv(x, w1, b1, 1), g1, be1, m1, v1), 0.0)
    y = jnp.maximum(bn(conv(y, w2, b2, 1), g2, be2, m2, v2), 0.0)
    flat = y.reshape(y.shape[0], -1)            # NCHW flatten, matches x.view(B, -1)
    return flat @ wh.T + bh[None, :]


# ---------------------------------- main ------------------------------------ #

if __name__ == "__main__":
    H = W = 16
    OUTPUTS = 4
    B = 32   # 2 batch tiles of 16 -> 2 "parallel" grid steps (both TCs on v7x)

    key = jax.random.PRNGKey(0)
    keys = jax.random.split(key, 16)

    x = jax.random.normal(keys[0], (B, 1, H, W), dtype=jnp.float32)

    # conv1: Conv2d(1, 8, kernel_size=4, padding=1)
    w1 = jax.random.normal(keys[1], (8, 1, 4, 4), jnp.float32) * 0.1
    b1 = jax.random.normal(keys[2], (8,), jnp.float32) * 0.1
    g1 = 1.0 + 0.1 * jax.random.normal(keys[3], (8,), jnp.float32)
    be1 = 0.1 * jax.random.normal(keys[4], (8,), jnp.float32)
    m1 = 0.1 * jax.random.normal(keys[5], (8,), jnp.float32)
    v1 = 1.0 + 0.5 * jnp.abs(jax.random.normal(keys[6], (8,), jnp.float32))

    # conv2: Conv2d(8, 16, kernel_size=2, padding=1)
    w2 = jax.random.normal(keys[7], (16, 8, 2, 2), jnp.float32) * 0.1
    b2 = jax.random.normal(keys[8], (16,), jnp.float32) * 0.1
    g2 = 1.0 + 0.1 * jax.random.normal(keys[9], (16,), jnp.float32)
    be2 = 0.1 * jax.random.normal(keys[10], (16,), jnp.float32)
    m2 = 0.1 * jax.random.normal(keys[11], (16,), jnp.float32)
    v2 = 1.0 + 0.5 * jnp.abs(jax.random.normal(keys[12], (16,), jnp.float32))

    # head: Linear(convw*convh*16 = 4096, outputs); PyTorch weight layout [out, in].
    lin_in = 16 * 16 * 16
    wh = jax.random.normal(keys[13], (OUTPUTS, lin_in), jnp.float32) * 0.01
    bh = jax.random.normal(keys[14], (OUTPUTS,), jnp.float32) * 0.1

    params = (w1, b1, g1, be1, m1, v1,
              w2, b2, g2, be2, m2, v2,
              wh, bh)

    fwd = jax.jit(dqn_forward)
    out = jax.block_until_ready(fwd(x, params))

    ref = jax.block_until_ready(dqn_reference(x, params))
    assert out.shape == (B, OUTPUTS), out.shape
    assert np.allclose(np.asarray(out), np.asarray(ref), rtol=1e-4, atol=1e-4), (
        "Pallas output mismatch vs JAX reference; max abs err = %g"
        % float(np.max(np.abs(np.asarray(out) - np.asarray(ref)))))

    print("KERNEL_OK")
</pallas_src>

<mosaic_0001>
module attributes {stable_mosaic.version = 11 : i64} {
  func.func @_dqn_kernel(%arg0: i32, %arg1: memref<288x16xf32, #tpu.memory_space<vmem>>, %arg2: memref<64x128xf32, #tpu.memory_space<vmem>>, %arg3: memref<1x128xf32, #tpu.memory_space<vmem>>, %arg4: memref<288x1xf32, #tpu.memory_space<vmem>>, %arg5: memref<288x1xf32, #tpu.memory_space<vmem>>, %arg6: memref<256x256xf32, #tpu.memory_space<vmem>>, %arg7: memref<1x256xf32, #tpu.memory_space<vmem>>, %arg8: memref<256x64xf32, #tpu.memory_space<vmem>>, %arg9: memref<288x64xf32, #tpu.memory_space<vmem>>, %arg10: memref<16x288xf32, #tpu.memory_space<vmem>>, %arg11: memref<64x4xf32, #tpu.memory_space<vmem>>, %arg12: memref<1x4xf32, #tpu.memory_space<vmem>>, %arg13: memref<16x4xf32, #tpu.memory_space<vmem>>, %arg14: memref<288x64xf32, #tpu.memory_space<vmem>>, %arg15: memref<288x128xf32, #tpu.memory_space<vmem>>, %arg16: memref<288x256xf32, #tpu.memory_space<vmem>>, %arg17: memref<288x256xf32, #tpu.memory_space<vmem>>) attributes {dimension_semantics = [#tpu.dimension_semantics<parallel>], iteration_bounds = array<i64: 2>, scalar_prefetch = 0 : i64, scratch_operands = 4 : i64, tpu.core_type = #tpu.core_type<tc>, window_params = [{transform_indices = @transform_0, window_bounds = array<i64: 288, 16>}, {pipeline_mode = #tpu.pipeline_mode<synchronous>, transform_indices = @transform_1, window_bounds = array<i64: 64, 128>}, {pipeline_mode = #tpu.pipeline_mode<synchronous>, transform_indices = @transform_2, window_bounds = array<i64: 1, 128>}, {pipeline_mode = #tpu.pipeline_mode<synchronous>, transform_indices = @transform_3, window_bounds = array<i64: 288, 1>}, {pipeline_mode = #tpu.pipeline_mode<synchronous>, transform_indices = @transform_4, window_bounds = array<i64: 288, 1>}, {pipeline_mode = #tpu.pipeline_mode<synchronous>, transform_indices = @transform_5, window_bounds = array<i64: 256, 256>}, {pipeline_mode = #tpu.pipeline_mode<synchronous>, transform_indices = @transform_6, window_bounds = array<i64: 1, 256>}, {pipeline_mode = #tpu.pipeline_mode<synchronous>, transform_indices = @transform_7, window_bounds = array<i64: 256, 64>}, {pipeline_mode = #tpu.pipeline_mode<synchronous>, transform_indices = @transform_8, window_bounds = array<i64: 288, 64>}, {pipeline_mode = #tpu.pipeline_mode<synchronous>, transform_indices = @transform_9, window_bounds = array<i64: 16, 288>}, {pipeline_mode = #tpu.pipeline_mode<synchronous>, transform_indices = @transform_10, window_bounds = array<i64: 64, 4>}, {pipeline_mode = #tpu.pipeline_mode<synchronous>, transform_indices = @transform_11, window_bounds = array<i64: 1, 4>}, {transform_indices = @transform_12, window_bounds = array<i64: 16, 4>}]} {
    %c0 = arith.constant 0 : index
    %c0_0 = arith.constant 0 : index
    %0 = vector.load %arg1[%c0, %c0_0] : memref<288x16xf32, #tpu.memory_space<vmem>>, vector<288x16xf32>
    %c0_1 = arith.constant 0 : index
    %c0_2 = arith.constant 0 : index
    %1 = vector.load %arg14[%c0_1, %c0_2] : memref<288x64xf32, #tpu.memory_space<vmem>>, vector<288x16xf32>
    tpu.vector_store %arg14[%c0_1, %c0_2], %0 {strides = array<i32>} : memref<288x64xf32, #tpu.memory_space<vmem>>, vector<288x16xf32>,
    %c1 = arith.constant 1 : index
    %c0_3 = arith.constant 0 : index
    %2 = vector.load %arg1[%c1, %c0_3] : memref<288x16xf32, #tpu.memory_space<vmem>>, vector<287x16xf32>
    %c0_4 = arith.constant 0 : index
    %c16 = arith.constant 16 : index
    %3 = vector.load %arg14[%c0_4, %c16] : memref<288x64xf32, #tpu.memory_space<vmem>>, vector<287x16xf32>
    tpu.vector_store %arg14[%c0_4, %c16], %2 {strides = array<i32>} : memref<288x64xf32, #tpu.memory_space<vmem>>, vector<287x16xf32>,
    %cst = arith.constant 0.000000e+00 : f32
    %4 = vector.broadcast %cst : f32 to vector<1x16xf32>
    %c287 = arith.constant 287 : index
    %c16_5 = arith.constant 16 : index
    %5 = vector.load %arg14[%c287, %c16_5] : memref<288x64xf32, #tpu.memory_space<vmem>>, vector<1x16xf32>
    tpu.vector_store %arg14[%c287, %c16_5], %4 {strides = array<i32>} : memref<288x64xf32, #tpu.memory_space<vmem>>, vector<1x16xf32>,
    %c2 = arith.constant 2 : index
    %c0_6 = arith.constant 0 : index
    %6 = vector.load %arg1[%c2, %c0_6] : memref<288x16xf32, #tpu.memory_space<vmem>>, vector<286x16xf32>
    %c0_7 = arith.constant 0 : index
    %c32 = arith.constant 32 : index
    %7 = vector.load %arg14[%c0_7, %c32] : memref<288x64xf32, #tpu.memory_space<vmem>>, vector<286x16xf32>
    tpu.vector_store %arg14[%c0_7, %c32], %6 {strides = array<i32>} : memref<288x64xf32, #tpu.memory_space<vmem>>, vector<286x16xf32>,
    %cst_8 = arith.constant 0.000000e+00 : f32
    %8 = vector.broadcast %cst_8 : f32 to vector<2x16xf32>
    %c286 = arith.constant 286 : index
    %c32_9 = arith.constant 32 : index
    %9 = vector.load %arg14[%c286, %c32_9] : memref<288x64xf32, #tpu.memory_space<vmem>>, vector<2x16xf32>
    tpu.vector_store %arg14[%c286, %c32_9], %8 {strides = array<i32>} : memref<288x64xf32, #tpu.memory_space<vmem>>, vector<2x16xf32>,
    %c3 = arith.constant 3 : index
    %c0_10 = arith.constant 0 : index
    %10 = vector.load %arg1[%c3, %c0_10] : memref<288x16xf32, #tpu.memory_space<vmem>>, vector<285x16xf32>
    %c0_11 = arith.constant 0 : index
    %c48 = arith.constant 48 : index
    %11 = vector.load %arg14[%c0_11, %c48] : memref<288x64xf32, #tpu.memory_space<vmem>>, vector<285x16xf32>
    tpu.vector_store %arg14[%c0_11, %c48], %10 {strides = array<i32>} : memref<288x64xf32, #tpu.memory_space<vmem>>, vector<285x16xf32>,
    %cst_12 = arith.constant 0.000000e+00 : f32
    %12 = vector.broadcast %cst_12 : f32 to vector<3x16xf32>
    %c285 = arith.constant 285 : index
    %c48_13 = arith.constant 48 : index
    %13 = vector.load %arg14[%c285, %c48_13] : memref<288x64xf32, #tpu.memory_space<vmem>>, vector<3x16xf32>
    tpu.vector_store %arg14[%c285, %c48_13], %12 {strides = array<i32>} : memref<288x64xf32, #tpu.memory_space<vmem>>, vector<3x16xf32>,
    %c0_14 = arith.constant 0 : index
    %c0_15 = arith.constant 0 : index
    %14 = vector.load %arg14[%c0_14, %c0_15] : memref<288x64xf32, #tpu.memory_space<vmem>>, vector<288x64xf32>
    %c0_16 = arith.constant 0 : index
    %c0_17 = arith.constant 0 : index
    %15 = vector.load %arg2[%c0_16, %c0_17] : memref<64x128xf32, #tpu.memory_space<vmem>>, vector<64x128xf32>
    %cst_18 = arith.constant dense<0.000000e+00> : vector<288x128xf32>
    %16 = tpu.matmul %14, %15, %cst_18 {dimension_numbers = #tpu.dot_dimension_numbers<[1], [0], [0], [1], [0, 0, 1, 1], [], []>} : vector<288x64xf32>, vector<64x128xf32>, vector<288x128xf32> -> vector<288x128xf32>
    %c0_19 = arith.constant 0 : index
    %c0_20 = arith.constant 0 : index
    %17 = vector.load %arg3[%c0_19, %c0_20] : memref<1x128xf32, #tpu.memory_space<vmem>>, vector<1x128xf32>
    %18 = vector.broadcast %17 : vector<1x128xf32> to vector<288x128xf32>
    %19 = arith.addf %16, %18 : vector<288x128xf32>
    %cst_21 = arith.constant 0.000000e+00 : f32
    %20 = vector.broadcast %cst_21 : f32 to vector<288x128xf32>
    %21 = arith.maximumf %19, %20 : vector<288x128xf32>
    %c0_22 = arith.constant 0 : index
    %c0_23 = arith.constant 0 : index
    %22 = vector.load %arg15[%c0_22, %c0_23] : memref<288x128xf32, #tpu.memory_space<vmem>>, vector<288x128xf32>
    tpu.vector_store %arg15[%c0_22, %c0_23], %21 {strides = array<i32>} : memref<288x128xf32, #tpu.memory_space<vmem>>, vector<288x128xf32>,
    %c0_24 = arith.constant 0 : index
    %c0_25 = arith.constant 0 : index
    %23 = vector.load %arg15[%c0_24, %c0_25] : memref<288x128xf32, #tpu.memory_space<vmem>>, vector<288x128xf32>
    %c0_26 = arith.constant 0 : index
    %c0_27 = arith.constant 0 : index
    %24 = vector.load %arg4[%c0_26, %c0_27] : memref<288x1xf32, #tpu.memory_space<vmem>>, vector<288x1xf32>
    %25 = vector.broadcast %24 : vector<288x1xf32> to vector<288x128xf32>
    %26 = arith.mulf %23, %25 : vector<288x128xf32>
    %c0_28 = arith.constant 0 : index
    %c128 = arith.constant 128 : index
    %27 = vector.load %arg16[%c0_28, %c128] : memref<288x256xf32, #tpu.memory_space<vmem>>, vector<288x128xf32>
    tpu.vector_store %arg16[%c0_28, %c128], %26 {strides = array<i32>} : memref<288x256xf32, #tpu.memory_space<vmem>>, vector<288x128xf32>,
    %c0_29 = arith.constant 0 : index
    %c0_30 = arith.constant 0 : index
    %28 = vector.load %arg15[%c0_29, %c0_30] : memref<288x128xf32, #tpu.memory_space<vmem>>, vector<287x128xf32>
    %c0_31 = arith.constant 0 : index
    %c0_32 = arith.constant 0 : index
    %29 = vector.load %arg5[%c0_31, %c0_32] : memref<288x1xf32, #tpu.memory_space<vmem>>, vector<287x1xf32>
    %30 = vector.broadcast %29 : vector<287x1xf32> to vector<287x128xf32>
    %31 = arith.mulf %28, %30 : vector<287x128xf32>
    %c1_33 = arith.constant 1 : index
    %c0_34 = arith.constant 0 : index
    %32 = vector.load %arg16[%c1_33, %c0_34] : memref<288x256xf32, #tpu.memory_space<vmem>>, vector<287x128xf32>
    tpu.vector_store %arg16[%c1_33, %c0_34], %31 {strides = array<i32>} : memref<288x256xf32, #tpu.memory_space<vmem>>, vector<287x128xf32>,
    %cst_35 = arith.constant 0.000000e+00 : f32
    %33 = vector.broadcast %cst_35 : f32 to vector<1x128xf32>
    %c0_36 = arith.constant 0 : index
    %c0_37 = arith.constant 0 : index
    %34 = vector.load %arg16[%c0_36, %c0_37] : memref<288x256xf32, #tpu.memory_space<vmem>>, vector<1x128xf32>
    tpu.vector_store %arg16[%c0_36, %c0_37], %33 {strides = array<i32>} : memref<288x256xf32, #tpu.memory_space<vmem>>, vector<1x128xf32>,
    %c0_38 = arith.constant 0 : index
    %c0_39 = arith.constant 0 : index
    %35 = vector.load %arg16[%c0_38, %c0_39] : memref<288x256xf32, #tpu.memory_space<vmem>>, vector<288x256xf32>
    %c0_40 = arith.constant 0 : index
    %c0_41 = arith.constant 0 : index
    %36 = vector.load %arg6[%c0_40, %c0_41] : memref<256x256xf32, #tpu.memory_space<vmem>>, vector<256x256xf32>
    %cst_42 = arith.constant dense<0.000000e+00> : vector<288x256xf32>
    %37 = tpu.matmul %35, %36, %cst_42 {dimension_numbers = #tpu.dot_dimension_numbers<[1], [0], [0], [1], [0, 0, 1, 1], [], []>} : vector<288x256xf32>, vector<256x256xf32>, vector<288x256xf32> -> vector<288x256xf32>
    %c0_43 = arith.constant 0 : index
    %c0_44 = arith.constant 0 : index
    %38 = vector.load %arg7[%c0_43, %c0_44] : memref<1x256xf32, #tpu.memory_space<vmem>>, vector<1x256xf32>
    %39 = vector.broadcast %38 : vector<1x256xf32> to vector<288x256xf32>
    %40 = arith.addf %37, %39 : vector<288x256xf32>
    %cst_45 = arith.constant 0.000000e+00 : f32
    %41 = vector.broadcast %cst_45 : f32 to vector<288x256xf32>
    %42 = arith.maximumf %40, %41 : vector<288x256xf32>
    %c0_46 = arith.constant 0 : index
    %c0_47 = arith.constant 0 : index
    %43 = vector.load %arg17[%c0_46, %c0_47] : memref<288x256xf32, #tpu.memory_space<vmem>>, vector<288x256xf32>
    tpu.vector_store %arg17[%c0_46, %c0_47], %42 {strides = array<i32>} : memref<288x256xf32, #tpu.memory_space<vmem>>, vector<288x256xf32>,
    %c0_48 = arith.constant 0 : index
    %c0_49 = arith.constant 0 : index
    %44 = vector.load %arg17[%c0_48, %c0_49] : memref<288x256xf32, #tpu.memory_space<vmem>>, vector<288x256xf32>
    %c0_50 = arith.constant 0 : index
    %c0_51 = arith.constant 0 : index
    %45 = vector.load %arg8[%c0_50, %c0_51] : memref<256x64xf32, #tpu.memory_space<vmem>>, vector<256x64xf32>
    %cst_52 = arith.constant dense<0.000000e+00> : vector<288x64xf32>
    %46 = tpu.matmul %44, %45, %cst_52 {dimension_numbers = #tpu.dot_dimension_numbers<[1], [0], [0], [1], [0, 0, 1, 1], [], []>} : vector<288x256xf32>, vector<256x64xf32>, vector<288x64xf32> -> vector<288x64xf32>
    %c0_53 = arith.constant 0 : index
    %c0_54 = arith.constant 0 : index
    %47 = vector.load %arg9[%c0_53, %c0_54] : memref<288x64xf32, #tpu.memory_space<vmem>>, vector<288x64xf32>
    %48 = arith.mulf %46, %47 : vector<288x64xf32>
    %c0_55 = arith.constant 0 : index
    %c0_56 = arith.constant 0 : index
    %49 = vector.load %arg10[%c0_55, %c0_56] : memref<16x288xf32, #tpu.memory_space<vmem>>, vector<16x288xf32>
    %cst_57 = arith.constant dense<0.000000e+00> : vector<16x64xf32>
    %50 = tpu.matmul %49, %48, %cst_57 {dimension_numbers = #tpu.dot_dimension_numbers<[1], [0], [0], [1], [0, 0, 1, 1], [], []>} : vector<16x288xf32>, vector<288x64xf32>, vector<16x64xf32> -> vector<16x64xf32>
    %c0_58 = arith.constant 0 : index
    %c0_59 = arith.constant 0 : index
    %51 = vector.load %arg11[%c0_58, %c0_59] : memref<64x4xf32, #tpu.memory_space<vmem>>, vector<64x4xf32>
    %cst_60 = arith.constant dense<0.000000e+00> : vector<16x4xf32>
    %52 = tpu.matmul %50, %51, %cst_60 {dimension_numbers = #tpu.dot_dimension_numbers<[1], [0], [0], [1], [0, 0, 1, 1], [], []>} : vector<16x64xf32>, vector<64x4xf32>, vector<16x4xf32> -> vector<16x4xf32>
    %c0_61 = arith.constant 0 : index
    %c0_62 = arith.constant 0 : index
    %53 = vector.load %arg12[%c0_61, %c0_62] : memref<1x4xf32, #tpu.memory_space<vmem>>, vector<1x4xf32>
    %54 = vector.broadcast %53 : vector<1x4xf32> to vector<16x4xf32>
    %55 = arith.addf %52, %54 : vector<16x4xf32>
    %c0_63 = arith.constant 0 : index
    %c0_64 = arith.constant 0 : index
    %56 = vector.load %arg13[%c0_63, %c0_64] : memref<16x4xf32, #tpu.memory_space<vmem>>, vector<16x4xf32>
    tpu.vector_store %arg13[%c0_63, %c0_64], %55 {strides = array<i32>} : memref<16x4xf32, #tpu.memory_space<vmem>>, vector<16x4xf32>,
    return
  }
  func.func @transform_0(%arg0: i32) -> (i32, i32) {
    %c0_i32 = arith.constant 0 : i32
    %c0_i32_0 = arith.constant 0 : i32
    return %arg0, %c0_i32 : i32, i32
  }
  func.func @transform_1(%arg0: i32) -> (i32, i32) {
    %c0_i32 = arith.constant 0 : i32
    %c0_i32_0 = arith.constant 0 : i32
    %c0_i32_1 = arith.constant 0 : i32
    return %c0_i32, %c0_i32_0 : i32, i32
  }
  func.func @transform_2(%arg0: i32) -> (i32, i32) {
    %c0_i32 = arith.constant 0 : i32
    %c0_i32_0 = arith.constant 0 : i32
    %c0_i32_1 = arith.constant 0 : i32
    return %c0_i32, %c0_i32_0 : i32, i32
  }
  func.func @transform_3(%arg0: i32) -> (i32, i32) {
    %c0_i32 = arith.constant 0 : i32
    %c0_i32_0 = arith.constant 0 : i32
    %c0_i32_1 = arith.constant 0 : i32
    return %c0_i32, %c0_i32_0 : i32, i32
  }
  func.func @transform_4(%arg0: i32) -> (i32, i32) {
    %c0_i32 = arith.constant 0 : i32
    %c0_i32_0 = arith.constant 0 : i32
    %c0_i32_1 = arith.constant 0 : i32
    return %c0_i32, %c0_i32_0 : i32, i32
  }
  func.func @transform_5(%arg0: i32) -> (i32, i32) {
    %c0_i32 = arith.constant 0 : i32
    %c0_i32_0 = arith.constant 0 : i32
    %c0_i32_1 = arith.constant 0 : i32
    return %c0_i32, %c0_i32_0 : i32, i32
  }
  func.func @transform_6(%arg0: i32) -> (i32, i32) {
    %c0_i32 = arith.constant 0 : i32
    %c0_i32_0 = arith.constant 0 : i32
    %c0_i32_1 = arith.constant 0 : i32
    return %c0_i32, %c0_i32_0 : i32, i32
  }
  func.func @transform_7(%arg0: i32) -> (i32, i32) {
    %c0_i32 = arith.constant 0 : i32
    %c0_i32_0 = arith.constant 0 : i32
    %c0_i32_1 = arith.constant 0 : i32
    return %c0_i32, %c0_i32_0 : i32, i32
  }
  func.func @transform_8(%arg0: i32) -> (i32, i32) {
    %c0_i32 = arith.constant 0 : i32
    %c0_i32_0 = arith.constant 0 : i32
    %c0_i32_1 = arith.constant 0 : i32
    return %c0_i32, %c0_i32_0 : i32, i32
  }
  func.func @transform_9(%arg0: i32) -> (i32, i32) {
    %c0_i32 = arith.constant 0 : i32
    %c0_i32_0 = arith.constant 0 : i32
    %c0_i32_1 = arith.constant 0 : i32
    return %c0_i32, %c0_i32_0 : i32, i32
  }
  func.func @transform_10(%arg0: i32) -> (i32, i32) {
    %c0_i32 = arith.constant 0 : i32
    %c0_i32_0 = arith.constant 0 : i32
    %c0_i32_1 = arith.constant 0 : i32
    return %c0_i32, %c0_i32_0 : i32, i32
  }
  func.func @transform_11(%arg0: i32) -> (i32, i32) {
    %c0_i32 = arith.constant 0 : i32
    %c0_i32_0 = arith.constant 0 : i32
    %c0_i32_1 = arith.constant 0 : i32
    return %c0_i32, %c0_i32_0 : i32, i32
  }
  func.func @transform_12(%arg0: i32) -> (i32, i32) {
    %c0_i32 = arith.constant 0 : i32
    %c0_i32_0 = arith.constant 0 : i32
    return %arg0, %c0_i32 : i32, i32
  }
}

</mosaic_0001>

<llo_original>
// kernel: tile.13
$region0: #{tile.13}
  #allocation0 [shape = 's32[1]{0}', space=sflag, size = 0x4, scoped, tag = 'scoped memory for tile.13']
  %s0 = inlined_call_operand.vmem [shape: f32[8], index: 0, kind: input, shape index: {}]
  %s1 = inlined_call_operand.vmem [shape: f32[15,8], index: 1, kind: output, shape index: {}]
  // Predicated region
  $region2: #{tile.13} parent=0 // pred_check
    _
  $region3: #{tile.13} parent=0 // pred_check_branch
    %3 = sbr.rel (0) target = $region5
  $region4: #{tile.13} parent=0 // pred_region
    _
  $region5: #{tile.13} parent=0 // pred_fallthru
    _
  %v4 = vld [vmem:[%s0] ss:$0 sm:$0xff]
  %5 = vst [vmem:[%s1] sm:$0xff] %v4
  %s6 = scalar_lea.vmem %s1, 8
  %7 = vst [vmem:[%s6] sm:$0xff] %v4

// kernel: tile.14
$region0: #{tile.14}
  %s0 = inlined_call_operand.vmem [shape: f32[15,8], index: 0, kind: input, shape index: {}]
  %s1 = inlined_call_operand.vmem [shape: f32[1,120], index: 1, kind: output, shape index: {}]
  $region1: #{tile.14} parent=0
    #allocation0 [shape = 'u8[4096]{0}', space=vmem, size = 0x1000, scoped, tag = 'scoped mem for output reshape']
    %v2 = vld [vmem:[%s0] sm:$0x1]
    %vm3 = vcmask 64512
    %4 = vst.msk [vmem:[#allocation0] sm:$0x1] %vm3, %v2
    %s5 = scalar_lea.vmem %s0, 14
    %v6 = vld [vmem:[%s5] sm:$0x1]
    %7 = vrot.lane.b32.xlu0 %v6, 112
    %v8 = vpop.permute.xlu0 %7
    %vm9 = vcmask 982912
    %10 = vst.msk [vmem:[#allocation0] sm:$0x1] %vm9, %v8
    %s11 = scalar_lea.vmem %s0, 13
    %v12 = vld [vmem:[%s11] sm:$0x1]
    %13 = vrot.lane.b32.xlu0 %v12, 104
    %v14 = vpop.permute.xlu0 %13
    %vm15 = vcmask 917312
    %16 = vst.msk [vmem:[#allocation0] sm:$0x1] %vm15, %v14
    %s17 = scalar_lea.vmem %s0, 12
    %v18 = vld [vmem:[%s17] sm:$0x1]
    %19 = vrot.lane.b32.xlu0 %v18, 96
    %v20 = vpop.permute.xlu0 %19
    %vm21 = vcmask 851712
    %22 = vst.msk [vmem:[#allocation0] sm:$0x1] %vm21, %v20
    %s23 = scalar_lea.vmem %s0, 11
    %v24 = vld [vmem:[%s23] sm:$0x1]
    %25 = vrot.lane.b32.xlu0 %v24, 88
    %v26 = vpop.permute.xlu0 %25
    %vm27 = vcmask 786112
    %28 = vst.msk [vmem:[#allocation0] sm:$0x1] %vm27, %v26
    %s29 = scalar_lea.vmem %s0, 10
    %v30 = vld [vmem:[%s29] sm:$0x1]
    %31 = vrot.lane.b32.xlu0 %v30, 80
    %v32 = vpop.permute.xlu0 %31
    %vm33 = vcmask 720512
    %34 = vst.msk [vmem:[#allocation0] sm:$0x1] %vm33, %v32
    %s35 = scalar_lea.vmem %s0, 9
    %v36 = vld [vmem:[%s35] sm:$0x1]
    %37 = vrot.lane.b32.xlu0 %v36, 72
    %v38 = vpop.permute.xlu0 %37
    %vm39 = vcmask 654912
    %40 = vst.msk [vmem:[#allocation0] sm:$0x1] %vm39, %v38
    %s41 = scalar_lea.vmem %s0, 8
    %v42 = vld [vmem:[%s41] sm:$0x1]
    %43 = vrot.lane.b32.xlu0 %v42, 64
    %v44 = vpop.permute.xlu0 %43
    %vm45 = vcmask 589312
    %46 = vst.msk [vmem:[#allocation0] sm:$0x1] %vm45, %v44
    %s47 = scalar_lea.vmem %s0, 7
    %v48 = vld [vmem:[%s47] sm:$0x1]
    %49 = vrot.lane.b32.xlu0 %v48, 56
    %v50 = vpop.permute.xlu0 %49
    %vm51 = vcmask 523712
    %52 = vst.msk [vmem:[#allocation0] sm:$0x1] %vm51, %v50
    %s53 = scalar_lea.vmem %s0, 6
    %v54 = vld [vmem:[%s53] sm:$0x1]
    %55 = vrot.lane.b32.xlu0 %v54, 48
    %v56 = vpop.permute.xlu0 %55
    %vm57 = vcmask 458112
    %58 = vst.msk [vmem:[#allocation0] sm:$0x1] %vm57, %v56
    %s59 = scalar_lea.vmem %s0, 5
    %v60 = vld [vmem:[%s59] sm:$0x1]
    %61 = vrot.lane.b32.xlu0 %v60, 40
    %v62 = vpop.permute.xlu0 %61
    %vm63 = vcmask 392512
    %64 = vst.msk [vmem:[#allocation0] sm:$0x1] %vm63, %v62
    %s65 = scalar_lea.vmem %s0, 4
    %v66 = vld [vmem:[%s65] sm:$0x1]
    %67 = vrot.lane.b32.xlu0 %v66, 32
    %v68 = vpop.permute.xlu0 %67
    %vm69 = vcmask 326912
    %70 = vst.msk [vmem:[#allocation0] sm:$0x1] %vm69, %v68
    %s71 = scalar_lea.vmem %s0, 3
    %v72 = vld [vmem:[%s71] sm:$0x1]
    %73 = vrot.lane.b32.xlu0 %v72, 24
    %v74 = vpop.permute.xlu0 %73
    %vm75 = vcmask 261312
    %76 = vst.msk [vmem:[#allocation0] sm:$0x1] %vm75, %v74
    %s77 = scalar_lea.vmem %s0, 2
    %v78 = vld [vmem:[%s77] sm:$0x1]
    %79 = vrot.lane.b32.xlu0 %v78, 16
    %v80 = vpop.permute.xlu0 %79
    %vm81 = vcmask 195712
    %82 = vst.msk [vmem:[#allocation0] sm:$0x1] %vm81, %v80
    %s83 = scalar_lea.vmem %s0, 1
    %v84 = vld [vmem:[%s83] sm:$0x1]
    %85 = vrot.lane.b32.xlu0 %v84, 8
    %v86 = vpop.permute.xlu0 %85
    %vm87 = vcmask 130112
    %88 = vst.msk [vmem:[#allocation0] sm:$0x1] %vm87, %v86
    %s90 = sshllo.u32 0, 1
    %v92 = vld [vmem:[#allocation0] sm:%s90]
    %s93 = sshllo.u32 0, 1
    %94 = vst [vmem:[%s1] sm:%s93] %v92

// kernel: tile.18
$region0: #{tile.18}
  #allocation0 [shape = 's32[1]{0}', space=sflag, size = 0x4, scoped, tag = 'scoped memory for tile.18']
  %s0 = inlined_call_operand.vmem [shape: f32[16], index: 0, kind: input, shape index: {}]
  %s1 = inlined_call_operand.vmem [shape: f32[16,16], index: 1, kind: output, shape index: {}]
  // Predicated region
  $region2: #{tile.18} parent=0 // pred_check
    _
  $region3: #{tile.18} parent=0 // pred_check_branch
    %3 = sbr.rel (0) target = $region5
  $region4: #{tile.18} parent=0 // pred_region
    _
  $region5: #{tile.18} parent=0 // pred_fallthru
    _
  %v4 = vld [vmem:[%s0] ss:$0 sm:$0xff]
  %5 = vst [vmem:[%s1] sm:$0xff] %v4
  %s6 = scalar_lea.vmem %s1, 8
  %7 = vst [vmem:[%s6] sm:$0xff] %v4

// kernel: tile.19
$region0: #{tile.19}
  %s0 = inlined_call_operand.vmem [shape: f32[16,16], index: 0, kind: input, shape index: {}]
  %s1 = inlined_call_operand.vmem [shape: f32[1,256], index: 1, kind: output, shape index: {}]
  $region1: #{tile.19} parent=0
    #allocation0 [shape = 'u8[8192]{0}', space=vmem, size = 0x2000, scoped, tag = 'scoped mem for output reshape']
    %s2 = smov 3
    %v3 = vld [vmem:[%s0] ss:$8 sm:%s2]
    %vm4 = vcmask 130048
    %5 = vst.msk [vmem:[#allocation0] ss:$8 sm:$0x3] %vm4, %v3
    %s6 = scalar_lea.vmem %s0, 7
    %s7 = smov 3
    %v8 = vld [vmem:[%s6] ss:$8 sm:%s7]
    %9 = vrot.lane.b32.xlu0 %v8, 112
    %v10 = vpop.permute.xlu0 %9
    %vm11 = vcmask 1048448
    %12 = vst.msk [vmem:[#allocation0] ss:$8 sm:$0x3] %vm11, %v10
    %s13 = scalar_lea.vmem %s0, 6
    %s14 = smov 3
    %v15 = vld [vmem:[%s13] ss:$8 sm:%s14]
    %16 = vrot.lane.b32.xlu0 %v15, 96
    %v17 = vpop.permute.xlu0 %16
    %vm18 = vcmask 917248
    %19 = vst.msk [vmem:[#allocation0] ss:$8 sm:$0x3] %vm18, %v17
    %s20 = scalar_lea.vmem %s0, 5
    %s21 = smov 3
    %v22 = vld [vmem:[%s20] ss:$8 sm:%s21]
    %23 = vrot.lane.b32.xlu0 %v22, 80
    %v24 = vpop.permute.xlu0 %23
    %vm25 = vcmask 786048
    %26 = vst.msk [vmem:[#allocation0] ss:$8 sm:$0x3] %vm25, %v24
    %s27 = scalar_lea.vmem %s0, 4
    %s28 = smov 3
    %v29 = vld [vmem:[%s27] ss:$8 sm:%s28]
    %30 = vrot.lane.b32.xlu0 %v29, 64
    %v31 = vpop.permute.xlu0 %30
    %vm32 = vcmask 654848
    %33 = vst.msk [vmem:[#allocation0] ss:$8 sm:$0x3] %vm32, %v31
    %s34 = scalar_lea.vmem %s0, 3
    %s35 = smov 3
    %v36 = vld [vmem:[%s34] ss:$8 sm:%s35]
    %37 = vrot.lane.b32.xlu0 %v36, 48
    %v38 = vpop.permute.xlu0 %37
    %vm39 = vcmask 523648
    %40 = vst.msk [vmem:[#allocation0] ss:$8 sm:$0x3] %vm39, %v38
    %s41 = scalar_lea.vmem %s0, 2
    %s42 = smov 3
    %v43 = vld [vmem:[%s41] ss:$8 sm:%s42]
    %44 = vrot.lane.b32.xlu0 %v43, 32
    %v45 = vpop.permute.xlu0 %44
    %vm46 = vcmask 392448
    %47 = vst.msk [vmem:[#allocation0] ss:$8 sm:$0x3] %vm46, %v45
    %s48 = scalar_lea.vmem %s0, 1
    %s49 = smov 3
    %v50 = vld [vmem:[%s48] ss:$8 sm:%s49]
    %51 = vrot.lane.b32.xlu0 %v50, 16
    %v52 = vpop.permute.xlu0 %51
    %vm53 = vcmask 261248
    %54 = vst.msk [vmem:[#allocation0] ss:$8 sm:$0x3] %vm53, %v52
    %s56 = sshllo.u32 0, 1
    %v58 = vld [vmem:[#allocation0] sm:%s56]
    %s59 = sshllo.u32 0, 1
    %60 = vst [vmem:[%s1] sm:%s59] %v58
    %s61 = scalar_lea.vmem [#allocation0], 8
    %v62 = vld [vmem:[%s61] sm:%s56]
    %s63 = sshllo.u32 0, 1
    %s64 = scalar_lea.vmem %s1, 1
    %65 = vst [vmem:[%s64] sm:%s63] %v62

// kernel: dqn_forward.1
$region0: #{dqn_forward.1}
  #allocation0 [shape = 'u32[]', space=smem, size = 0x4, offset = 0x4, fixed_abs, tag = 'smem constant byte address 0x4 - core index']
  #allocation1 [shape = 'u32[144,128]{1,0:T(1,128)}', space=vmem, size = 0x12000, scoped, tag = 'internal scratch']
  #allocation2 [shape = 'f32[288,64]{1,0:T(8,128)}', space=vmem, size = 0x24000, scoped, tag = 'scratch operand']
  #allocation3 [shape = 'f32[288,128]{1,0:T(8,128)}', space=vmem, size = 0x24000, scoped, tag = 'scratch operand']
  #allocation4 [shape = 'f32[288,256]{1,0:T(8,128)}', space=vmem, size = 0x48000, scoped, tag = 'scratch operand']
  #allocation5 [shape = 'f32[288,256]{1,0:T(8,128)}', space=vmem, size = 0x48000, scoped, tag = 'scratch operand']
  %s0 = inlined_call_operand.vmem [shape: f32[576,16], index: 0, kind: input, shape index: {}]
  %s1 = inlined_call_operand.vmem [shape: f32[64,128], index: 1, kind: input, shape index: {}]
  %s2 = inlined_call_operand.vmem [shape: f32[1,128], index: 2, kind: input, shape index: {}]
  %s3 = inlined_call_operand.vmem [shape: f32[288,1], index: 3, kind: input, shape index: {}]
  %s4 = inlined_call_operand.vmem [shape: f32[288,1], index: 4, kind: input, shape index: {}]
  %s5 = inlined_call_operand.vmem [shape: f32[256,256], index: 5, kind: input, shape index: {}]
  %s6 = inlined_call_operand.vmem [shape: f32[1,256], index: 6, kind: input, shape index: {}]
  %s7 = inlined_call_operand.vmem [shape: f32[256,64], index: 7, kind: input, shape index: {}]
  %s8 = inlined_call_operand.vmem [shape: f32[288,64], index: 8, kind: input, shape index: {}]
  %s9 = inlined_call_operand.vmem [shape: f32[16,288], index: 9, kind: input, shape index: {}]
  %s10 = inlined_call_operand.vmem [shape: f32[64,4], index: 10, kind: input, shape index: {}]
  %s11 = inlined_call_operand.vmem [shape: f32[1,4], index: 11, kind: input, shape index: {}]
  %s12 = inlined_call_operand.vmem [shape: f32[32,4], index: 12, kind: output, shape index: {}]
  %s13 = sld [smem:[#allocation0]]
  $region81: #{dqn_forward.1} parent=0
    _
  %s15 = ssub.s32 1, %s13
  %s16 = scalar_select 0, %s15, %s13
  loop: start=0, step=1, limit=4
  $region2: #{dqn_forward.1} parent=0 // loop_pre_header
    _
  $region3: #{dqn_forward.1} parent=0 // loop_header
    %s18 = sphi 0, %s22
    %p19 = scmp.ge.s32.totalorder %s18, 4
    %s28 = sphi 0, %s30
    %s31 = sphi 0, %s28
    %s32 = sphi 0, %s31
    %s48 = sphi 0, %s32
    %s52 = sphi 0, %s52
    %s54 = sphi 0, %s52
    %s55 = sphi 0, %s54
    %s69 = sphi 0, %s55
    %s73 = sphi 0, %s73
    %s75 = sphi 0, %s73
    %s76 = sphi 0, %s75
    %s90 = sphi 0, %s76
    %s94 = sphi 0, %s94
    %s96 = sphi 0, %s94
    %s97 = sphi 0, %s96
    %s111 = sphi 0, %s97
    %s115 = sphi 0, %s115
    %s117 = sphi 0, %s115
    %s118 = sphi 0, %s117
    %s132 = sphi 0, %s118
    %s136 = sphi 0, %s136
    %s138 = sphi 0, %s136
    %s139 = sphi 0, %s138
    %s153 = sphi 0, %s139
    %s157 = sphi 0, %s157
    %s159 = sphi 0, %s157
    %s160 = sphi 0, %s159
    %s174 = sphi 0, %s160
    %s178 = sphi 0, %s178
    %s180 = sphi 0, %s178
    %s181 = sphi 0, %s180
    %s195 = sphi 0, %s181
    %s199 = sphi 0, %s199
    %s201 = sphi 0, %s199
    %s202 = sphi 0, %s201
    %s216 = sphi 0, %s202
    %s220 = sphi 0, %s220
    %s222 = sphi 0, %s220
    %s223 = sphi 0, %s222
    %s237 = sphi 0, %s223
    %s241 = sphi 0, %s241
    %s243 = sphi 0, %s241
    %s244 = sphi 0, %s243
    %s258 = sphi 0, %s244
    %s262 = sphi 0, %s262
    %s264 = sphi 0, %s262
    %s265 = sphi 0, %s264
    %s279 = sphi 0, %s265
    %s285 = sphi 0, %s287
    %s288 = sphi 0, %s285
    %s289 = sphi 0, %s288
    %s305 = sphi 0, %s289
  $region4: #{dqn_forward.1} parent=0 // loop_header_branch
    %21 = sbr.rel (%p19) target = $region8
  $region5: #{dqn_forward.1} parent=0 // loop_body
    %s23 = ssub.s32 %s18, 1
    %s24 = ssub.s32 %s18, 2
    %s25 = sadd.s32 %s18, 1
    %s26 = ssub.s32 %s18, %s25
    %p27 = scmp.eq.s32.totalorder %s26, 0
    %s29 = sadd.s32 %s28, 1
    %s30 = scalar_select %p27, %s28, %s29
    %p33 = pneg %p27
    %p34 = scmp.eq.s32.totalorder %s18, 1
    %p35 = por %p33, %p34
    %p36 = scmp.ne.s32.totalorder %s28, %s31
    %p37 = scmp.eq.s32.totalorder %s18, 0
    %p38 = por %p36, %p37
    %p39 = scmp.ne.s32.totalorder %s28, %s31
    %p40 = scmp.eq.s32.totalorder %s23, 1
    %p41 = por %p39, %p40
    %p42 = scmp.ne.s32.totalorder %s31, %s32
    %p43 = scmp.eq.s32.totalorder %s23, 0
    %p44 = por %p42, %p43
    %p45 = scmp.ne.s32.totalorder %s31, %s32
    %p46 = scmp.eq.s32.totalorder %s24, 1
    %p47 = por %p45, %p46
    %p49 = scmp.ne.s32.totalorder %s32, %s48
    %p50 = scmp.eq.s32.totalorder %s24, 0
    %p51 = por %p49, %p50
    %s53 = sadd.s32 %s52, 1
    %p56 = scmp.eq.s32.totalorder %s18, 1
    %p57 = scmp.ne.s32.totalorder %s52, %s54
    %p58 = scmp.eq.s32.totalorder %s18, 0
    %p59 = por %p57, %p58
    %p60 = scmp.ne.s32.totalorder %s52, %s54
    %p61 = scmp.eq.s32.totalorder %s23, 1
    %p62 = por %p60, %p61
    %p63 = scmp.ne.s32.totalorder %s54, %s55
    %p64 = scmp.eq.s32.totalorder %s23, 0
    %p65 = por %p63, %p64
    %p66 = scmp.ne.s32.totalorder %s54, %s55
    %p67 = scmp.eq.s32.totalorder %s24, 1
    %p68 = por %p66, %p67
    %p70 = scmp.ne.s32.totalorder %s55, %s69
    %p71 = scmp.eq.s32.totalorder %s24, 0
    %p72 = por %p70, %p71
    %s74 = sadd.s32 %s73, 1
    %p77 = scmp.eq.s32.totalorder %s18, 1
    %p78 = scmp.ne.s32.totalorder %s73, %s75
    %p79 = scmp.eq.s32.totalorder %s18, 0
    %p80 = por %p78, %p79
    %p81 = scmp.ne.s32.totalorder %s73, %s75
    %p82 = scmp.eq.s32.totalorder %s23, 1
    %p83 = por %p81, %p82
    %p84 = scmp.ne.s32.totalorder %s75, %s76
    %p85 = scmp.eq.s32.totalorder %s23, 0
    %p86 = por %p84, %p85
    %p87 = scmp.ne.s32.totalorder %s75, %s76
    %p88 = scmp.eq.s32.totalorder %s24, 1
    %p89 = por %p87, %p88
    %p91 = scmp.ne.s32.totalorder %s76, %s90
    %p92 = scmp.eq.s32.totalorder %s24, 0
    %p93 = por %p91, %p92
    %s95 = sadd.s32 %s94, 1
    %p98 = scmp.eq.s32.totalorder %s18, 1
    %p99 = scmp.ne.s32.totalorder %s94, %s96
    %p100 = scmp.eq.s32.totalorder %s18, 0
    %p101 = por %p99, %p100
    %p102 = scmp.ne.s32.totalorder %s94, %s96
    %p103 = scmp.eq.s32.totalorder %s23, 1
    %p104 = por %p102, %p103
    %p105 = scmp.ne.s32.totalorder %s96, %s97
    %p106 = scmp.eq.s32.totalorder %s23, 0
    %p107 = por %p105, %p106
    %p108 = scmp.ne.s32.totalorder %s96, %s97
    %p109 = scmp.eq.s32.totalorder %s24, 1
    %p110 = por %p108, %p109
    %p112 = scmp.ne.s32.totalorder %s97, %s111
    %p113 = scmp.eq.s32.totalorder %s24, 0
    %p114 = por %p112, %p113
    %s116 = sadd.s32 %s115, 1
    %p119 = scmp.eq.s32.totalorder %s18, 1
    %p120 = scmp.ne.s32.totalorder %s115, %s117
    %p121 = scmp.eq.s32.totalorder %s18, 0
    %p122 = por %p120, %p121
    %p123 = scmp.ne.s32.totalorder %s115, %s117
    %p124 = scmp.eq.s32.totalorder %s23, 1
    %p125 = por %p123, %p124
    %p126 = scmp.ne.s32.totalorder %s117, %s118
    %p127 = scmp.eq.s32.totalorder %s23, 0
    %p128 = por %p126, %p127
    %p129 = scmp.ne.s32.totalorder %s117, %s118
    %p130 = scmp.eq.s32.totalorder %s24, 1
    %p131 = por %p129, %p130
    %p133 = scmp.ne.s32.totalorder %s118, %s132
    %p134 = scmp.eq.s32.totalorder %s24, 0
    %p135 = por %p133, %p134
    %s137 = sadd.s32 %s136, 1
    %p140 = scmp.eq.s32.totalorder %s18, 1
    %p141 = scmp.ne.s32.totalorder %s136, %s138
    %p142 = scmp.eq.s32.totalorder %s18, 0
    %p143 = por %p141, %p142
    %p144 = scmp.ne.s32.totalorder %s136, %s138
    %p145 = scmp.eq.s32.totalorder %s23, 1
    %p146 = por %p144, %p145
    %p147 = scmp.ne.s32.totalorder %s138, %s139
    %p148 = scmp.eq.s32.totalorder %s23, 0
    %p149 = por %p147, %p148
    %p150 = scmp.ne.s32.totalorder %s138, %s139
    %p151 = scmp.eq.s32.totalorder %s24, 1
    %p152 = por %p150, %p151
    %p154 = scmp.ne.s32.totalorder %s139, %s153
    %p155 = scmp.eq.s32.totalorder %s24, 0
    %p156 = por %p154, %p155
    %s158 = sadd.s32 %s157, 1
    %p161 = scmp.eq.s32.totalorder %s18, 1
    %p162 = scmp.ne.s32.totalorder %s157, %s159
    %p163 = scmp.eq.s32.totalorder %s18, 0
    %p164 = por %p162, %p163
    %p165 = scmp.ne.s32.totalorder %s157, %s159
    %p166 = scmp.eq.s32.totalorder %s23, 1
    %p167 = por %p165, %p166
    %p168 = scmp.ne.s32.totalorder %s159, %s160
    %p169 = scmp.eq.s32.totalorder %s23, 0
    %p170 = por %p168, %p169
    %p171 = scmp.ne.s32.totalorder %s159, %s160
    %p172 = scmp.eq.s32.totalorder %s24, 1
    %p173 = por %p171, %p172
    %p175 = scmp.ne.s32.totalorder %s160, %s174
    %p176 = scmp.eq.s32.totalorder %s24, 0
    %p177 = por %p175, %p176
    %s179 = sadd.s32 %s178, 1
    %p182 = scmp.eq.s32.totalorder %s18, 1
    %p183 = scmp.ne.s32.totalorder %s178, %s180
    %p184 = scmp.eq.s32.totalorder %s18, 0
    %p185 = por %p183, %p184
    %p186 = scmp.ne.s32.totalorder %s178, %s180
    %p187 = scmp.eq.s32.totalorder %s23, 1
    %p188 = por %p186, %p187
    %p189 = scmp.ne.s32.totalorder %s180, %s181
    %p190 = scmp.eq.s32.totalorder %s23, 0
    %p191 = por %p189, %p190
    %p192 = scmp.ne.s32.totalorder %s180, %s181
    %p193 = scmp.eq.s32.totalorder %s24, 1
    %p194 = por %p192, %p193
    %p196 = scmp.ne.s32.totalorder %s181, %s195
    %p197 = scmp.eq.s32.totalorder %s24, 0
    %p198 = por %p196, %p197
    %s200 = sadd.s32 %s199, 1
    %p203 = scmp.eq.s32.totalorder %s18, 1
    %p204 = scmp.ne.s32.totalorder %s199, %s201
    %p205 = scmp.eq.s32.totalorder %s18, 0
    %p206 = por %p204, %p205
    %p207 = scmp.ne.s32.totalorder %s199, %s201
    %p208 = scmp.eq.s32.totalorder %s23, 1
    %p209 = por %p207, %p208
    %p210 = scmp.ne.s32.totalorder %s201, %s202
    %p211 = scmp.eq.s32.totalorder %s23, 0
    %p212 = por %p210, %p211
    %p213 = scmp.ne.s32.totalorder %s201, %s202
    %p214 = scmp.eq.s32.totalorder %s24, 1
    %p215 = por %p213, %p214
    %p217 = scmp.ne.s32.totalorder %s202, %s216
    %p218 = scmp.eq.s32.totalorder %s24, 0
    %p219 = por %p217, %p218
    %s221 = sadd.s32 %s220, 1
    %p224 = scmp.eq.s32.totalorder %s18, 1
    %p225 = scmp.ne.s32.totalorder %s220, %s222
    %p226 = scmp.eq.s32.totalorder %s18, 0
    %p227 = por %p225, %p226
    %p228 = scmp.ne.s32.totalorder %s220, %s222
    %p229 = scmp.eq.s32.totalorder %s23, 1
    %p230 = por %p228, %p229
    %p231 = scmp.ne.s32.totalorder %s222, %s223
    %p232 = scmp.eq.s32.totalorder %s23, 0
    %p233 = por %p231, %p232
    %p234 = scmp.ne.s32.totalorder %s222, %s223
    %p235 = scmp.eq.s32.totalorder %s24, 1
    %p236 = por %p234, %p235
    %p238 = scmp.ne.s32.totalorder %s223, %s237
    %p239 = scmp.eq.s32.totalorder %s24, 0
    %p240 = por %p238, %p239
    %s242 = sadd.s32 %s241, 1
    %p245 = scmp.eq.s32.totalorder %s18, 1
    %p246 = scmp.ne.s32.totalorder %s241, %s243
    %p247 = scmp.eq.s32.totalorder %s18, 0
    %p248 = por %p246, %p247
    %p249 = scmp.ne.s32.totalorder %s241, %s243
    %p250 = scmp.eq.s32.totalorder %s23, 1
    %p251 = por %p249, %p250
    %p252 = scmp.ne.s32.totalorder %s243, %s244
    %p253 = scmp.eq.s32.totalorder %s23, 0
    %p254 = por %p252, %p253
    %p255 = scmp.ne.s32.totalorder %s243, %s244
    %p256 = scmp.eq.s32.totalorder %s24, 1
    %p257 = por %p255, %p256
    %p259 = scmp.ne.s32.totalorder %s244, %s258
    %p260 = scmp.eq.s32.totalorder %s24, 0
    %p261 = por %p259, %p260
    %s263 = sadd.s32 %s262, 1
    %p266 = scmp.eq.s32.totalorder %s18, 1
    %p267 = scmp.ne.s32.totalorder %s262, %s264
    %p268 = scmp.eq.s32.totalorder %s18, 0
    %p269 = por %p267, %p268
    %p270 = scmp.ne.s32.totalorder %s262, %s264
    %p271 = scmp.eq.s32.totalorder %s23, 1
    %p272 = por %p270, %p271
    %p273 = scmp.ne.s32.totalorder %s264, %s265
    %p274 = scmp.eq.s32.totalorder %s23, 0
    %p275 = por %p273, %p274
    %p276 = scmp.ne.s32.totalorder %s264, %s265
    %p277 = scmp.eq.s32.totalorder %s24, 1
    %p278 = por %p276, %p277
    %p280 = scmp.ne.s32.totalorder %s265, %s279
    %p281 = scmp.eq.s32.totalorder %s24, 0
    %p282 = por %p280, %p281
    %s283 = ssub.s32 %s18, %s25
    %p284 = scmp.eq.s32.totalorder %s283, 0
    %s286 = sadd.s32 %s285, 1
    %s287 = scalar_select %p284, %s285, %s286
    %p290 = pneg %p284
    %p291 = scmp.eq.s32.totalorder %s18, 1
    %p292 = por %p290, %p291
    %p293 = scmp.ne.s32.totalorder %s285, %s288
    %p294 = scmp.eq.s32.totalorder %s18, 0
    %p295 = por %p293, %p294
    %p296 = scmp.ne.s32.totalorder %s285, %s288
    %p297 = scmp.eq.s32.totalorder %s23, 1
    %p298 = por %p296, %p297
    %p299 = scmp.ne.s32.totalorder %s288, %s289
    %p300 = scmp.eq.s32.totalorder %s23, 0
    %p301 = por %p299, %p300
    %p302 = scmp.ne.s32.totalorder %s288, %s289
    %p303 = scmp.eq.s32.totalorder %s24, 1
    %p304 = por %p302, %p303
    %p306 = scmp.ne.s32.totalorder %s289, %s305
    %p307 = scmp.eq.s32.totalorder %s24, 0
    %p308 = por %p306, %p307
    %p309 = scmp.le.s32.totalorder 1, %s18
    %p310 = scmp.lt.s32.totalorder %s18, 3
    %p311 = pnand %p309, %p310
    %p312 = pneg %p311
    // Predicated region
    $region9: #{dqn_forward.1} parent=5 // pred_check
      _
    $region10: #{dqn_forward.1} parent=5 // pred_check_branch
      %314 = sbr.rel (%p311) target = $region12
    $region11: #{dqn_forward.1} parent=5 // pred_region
      %s315 = ssub.s32 %s18, 1
      // Predicated region
      $region13: #{dqn_forward.1} parent=11 // pred_check
        %p316 = pneg %p65
      $region14: #{dqn_forward.1} parent=11 // pred_check_branch
        %318 = sbr.rel (%p316) target = $region16
      $region15: #{dqn_forward.1} parent=11 // pred_region
        _
      $region16: #{dqn_forward.1} parent=11 // pred_fallthru
        _
      // Predicated region
      $region17: #{dqn_forward.1} parent=11 // pred_check
        %p319 = pneg %p86
      $region18: #{dqn_forward.1} parent=11 // pred_check_branch
        %321 = sbr.rel (%p319) target = $region20
      $region19: #{dqn_forward.1} parent=11 // pred_region
        _
      $region20: #{dqn_forward.1} parent=11 // pred_fallthru
        _
      // Predicated region
      $region21: #{dqn_forward.1} parent=11 // pred_check
        %p322 = pneg %p107
      $region22: #{dqn_forward.1} parent=11 // pred_check_branch
        %324 = sbr.rel (%p322) target = $region24
      $region23: #{dqn_forward.1} parent=11 // pred_region
        _
      $region24: #{dqn_forward.1} parent=11 // pred_fallthru
        _
      // Predicated region
      $region25: #{dqn_forward.1} parent=11 // pred_check
        %p325 = pneg %p128
      $region26: #{dqn_forward.1} parent=11 // pred_check_branch
        %327 = sbr.rel (%p325) target = $region28
      $region27: #{dqn_forward.1} parent=11 // pred_region
        _
      $region28: #{dqn_forward.1} parent=11 // pred_fallthru
        _
      // Predicated region
      $region29: #{dqn_forward.1} parent=11 // pred_check
        %p328 = pneg %p149
      $region30: #{dqn_forward.1} parent=11 // pred_check_branch
        %330 = sbr.rel (%p328) target = $region32
      $region31: #{dqn_forward.1} parent=11 // pred_region
        _
      $region32: #{dqn_forward.1} parent=11 // pred_fallthru
        _
      // Predicated region
      $region33: #{dqn_forward.1} parent=11 // pred_check
        %p331 = pneg %p170
      $region34: #{dqn_forward.1} parent=11 // pred_check_branch
        %333 = sbr.rel (%p331) target = $region36
      $region35: #{dqn_forward.1} parent=11 // pred_region
        _
      $region36: #{dqn_forward.1} parent=11 // pred_fallthru
        _
      // Predicated region
      $region37: #{dqn_forward.1} parent=11 // pred_check
        %p334 = pneg %p191
      $region38: #{dqn_forward.1} parent=11 // pred_check_branch
        %336 = sbr.rel (%p334) target = $region40
      $region39: #{dqn_forward.1} parent=11 // pred_region
        _
      $region40: #{dqn_forward.1} parent=11 // pred_fallthru
        _
      // Predicated region
      $region41: #{dqn_forward.1} parent=11 // pred_check
        %p337 = pneg %p212
      $region42: #{dqn_forward.1} parent=11 // pred_check_branch
        %339 = sbr.rel (%p337) target = $region44
      $region43: #{dqn_forward.1} parent=11 // pred_region
        _
      $region44: #{dqn_forward.1} parent=11 // pred_fallthru
        _
      // Predicated region
      $region45: #{dqn_forward.1} parent=11 // pred_check
        %p340 = pneg %p233
      $region46: #{dqn_forward.1} parent=11 // pred_check_branch
        %342 = sbr.rel (%p340) target = $region48
      $region47: #{dqn_forward.1} parent=11 // pred_region
        _
      $region48: #{dqn_forward.1} parent=11 // pred_fallthru
        _
      // Predicated region
      $region49: #{dqn_forward.1} parent=11 // pred_check
        %p343 = pneg %p254
      $region50: #{dqn_forward.1} parent=11 // pred_check_branch
        %345 = sbr.rel (%p343) target = $region52
      $region51: #{dqn_forward.1} parent=11 // pred_region
        _
      $region52: #{dqn_forward.1} parent=11 // pred_fallthru
        _
      // Predicated region
      $region53: #{dqn_forward.1} parent=11 // pred_check
        %p346 = pneg %p275
      $region54: #{dqn_forward.1} parent=11 // pred_check_branch
        %348 = sbr.rel (%p346) target = $region56
      $region55: #{dqn_forward.1} parent=11 // pred_region
        _
      $region56: #{dqn_forward.1} parent=11 // pred_fallthru
        _
    $region12: #{dqn_forward.1} parent=5 // pred_fallthru
      _
    %p349 = scmp.lt.s32.totalorder %s18, 2
    // Predicated region
    $region57: #{dqn_forward.1} parent=5 // pred_check
      %p350 = pneg %p349
    $region58: #{dqn_forward.1} parent=5 // pred_check_branch
      %352 = sbr.rel (%p350) target = $region60
    $region59: #{dqn_forward.1} parent=5 // pred_region
      // Predicated region
      $region61: #{dqn_forward.1} parent=59 // pred_check
        %p353 = pneg %p38
      $region62: #{dqn_forward.1} parent=59 // pred_check_branch
        %355 = sbr.rel (%p353) target = $region64
      $region63: #{dqn_forward.1} parent=59 // pred_region
        %s356 = smul.u32 36, %s18
        %p357 = scmp.lt.s32.totalorder %s356, 71
        %s358 = scalar_select %p357, %s356, 71
        %s359 = smul.addr %s358, 8
        %s360 = scalar_lea.vmem %s0, %s359
        %s361 = smul.u32 36, %s18
      $region64: #{dqn_forward.1} parent=59 // pred_fallthru
        _
    $region60: #{dqn_forward.1} parent=5 // pred_fallthru
      _
    %p362 = scmp.le.s32.totalorder 1, %s18
    %p363 = scmp.lt.s32.totalorder %s18, 3
    %p364 = pnand %p362, %p363
    %p365 = pneg %p364
    // Predicated region
    $region65: #{dqn_forward.1} parent=5 // pred_check
      _
    $region66: #{dqn_forward.1} parent=5 // pred_check_branch
      %367 = sbr.rel (%p364) target = $region68
    $region67: #{dqn_forward.1} parent=5 // pred_region
      %s368 = ssub.s32 %s18, 1
      %s369 = smul.u32 36, %s23
      %p370 = scmp.lt.s32.totalorder %s369, 71
      %s371 = scalar_select %p370, %s369, 71
      %s372 = smul.addr %s371, 8
      %s373 = scalar_lea.vmem %s0, %s372
      %p374 = pneg %p44
      %p375 = pneg %p41
      %p376 = pneg %p65
      %p377 = pneg %p62
      %p378 = pneg %p86
      %p379 = pneg %p83
      %p380 = pneg %p107
      %p381 = pneg %p104
      %p382 = pneg %p128
      %p383 = pneg %p125
      %p384 = pneg %p149
      %p385 = pneg %p146
      %p386 = pneg %p170
      %p387 = pneg %p167
      %p388 = pneg %p191
      %p389 = pneg %p188
      %p390 = pneg %p212
      %p391 = pneg %p209
      %p392 = pneg %p233
      %p393 = pneg %p230
      %p394 = pneg %p254
      %p395 = pneg %p251
      %p396 = pneg %p275
      %p397 = pneg %p272
      %p398 = pneg %p301
      %p399 = pneg %p298
      %s400 = smul.u32 2, %s23
      %p401 = scmp.lt.s32.totalorder %s400, 3
      %s402 = scalar_select %p401, %s400, 3
      %s403 = smul.addr %s402, 8
      %s404 = scalar_lea.vmem %s12, %s403
      %s405 = smul.u32 36, %s23
      %p406 = scmp.lt.s32.totalorder %s405, 71
      %s407 = scalar_select %p406, %s405, 71
      %s408 = smul.addr %s407, 8
      %s409 = scalar_lea.vmem %s0, %s408
      %s410 = smul.u32 36, %s23
      %s411 = smul.u32 2, %s23
      %p412 = scmp.lt.s32.totalorder %s411, 3
      %s413 = scalar_select %p412, %s411, 3
      %s414 = smul.addr %s413, 8
      %s415 = scalar_lea.vmem %s12, %s414
      %s416 = smul.u32 2, %s23
      %v417 = vld [vmem:[%s409] sm:$0xff]
      %v418 = vld [vmem:[%s409 + $0x8] sm:$0xff]
      %v419 = vld [vmem:[%s409 + $0x10] sm:$0xff]
      %v420 = vld [vmem:[%s409 + $0x18] sm:$0xff]
      %v421 = vld [vmem:[%s409 + $0x20] sm:$0xff]
      %v422 = vld [vmem:[%s409 + $0x28] sm:$0xff]
      %v423 = vld [vmem:[%s409 + $0x30] sm:$0xff]
      %v424 = vld [vmem:[%s409 + $0x38] sm:$0xff]
      %v425 = vld [vmem:[%s409 + $0x40] sm:$0xff]
      %v426 = vld [vmem:[%s409 + $0x48] sm:$0xff]
      %v427 = vld [vmem:[%s409 + $0x50] sm:$0xff]
      %v428 = vld [vmem:[%s409 + $0x58] sm:$0xff]
      %v429 = vld [vmem:[%s409 + $0x60] sm:$0xff]
      %v430 = vld [vmem:[%s409 + $0x68] sm:$0xff]
      %v431 = vld [vmem:[%s409 + $0x70] sm:$0xff]
      %v432 = vld [vmem:[%s409 + $0x78] sm:$0xff]
      %v433 = vld [vmem:[%s409 + $0x80] sm:$0xff]
      %v434 = vld [vmem:[%s409 + $0x88] sm:$0xff]
      %v435 = vld [vmem:[%s409 + $0x90] sm:$0xff]
      %v436 = vld [vmem:[%s409 + $0x98] sm:$0xff]
      %v437 = vld [vmem:[%s409 + $0xa0] sm:$0xff]
      %v438 = vld [vmem:[%s409 + $0xa8] sm:$0xff]
      %v439 = vld [vmem:[%s409 + $0xb0] sm:$0xff]
      %v440 = vld [vmem:[%s409 + $0xb8] sm:$0xff]
      %v441 = vld [vmem:[%s409 + $0xc0] sm:$0xff]
      %v442 = vld [vmem:[%s409 + $0xc8] sm:$0xff]
      %v443 = vld [vmem:[%s409 + $0xd0] sm:$0xff]
      %v444 = vld [vmem:[%s409 + $0xd8] sm:$0xff]
      %v445 = vld [vmem:[%s409 + $0xe0] sm:$0xff]
      %v446 = vld [vmem:[%s409 + $0xe8] sm:$0xff]
      %v447 = vld [vmem:[%s409 + $0xf0] sm:$0xff]
      %v448 = vld [vmem:[%s409 + $0xf8] sm:$0xff]
      %v449 = vld [vmem:[%s409 + $0x100] sm:$0xff]
      %v450 = vld [vmem:[%s409 + $0x108] sm:$0xff]
      %v451 = vld [vmem:[%s409 + $0x110] sm:$0xff]
      %v452 = vld [vmem:[%s409 + $0x118] sm:$0xff]
      %vm453 = vcmask 130048
      %454 = vst.msk [vmem:[#allocation2] sm:$0xff] %vm453, %v417
      %455 = vst.msk [vmem:[#allocation2 + $0x8] sm:$0xff] %vm453, %v418
      %456 = vst.msk [vmem:[#allocation2 + $0x10] sm:$0xff] %vm453, %v419
      %457 = vst.msk [vmem:[#allocation2 + $0x18] sm:$0xff] %vm453, %v420
      %458 = vst.msk [vmem:[#allocation2 + $0x20] sm:$0xff] %vm453, %v421
      %459 = vst.msk [vmem:[#allocation2 + $0x28] sm:$0xff] %vm453, %v422
      %460 = vst.msk [vmem:[#allocation2 + $0x30] sm:$0xff] %vm453, %v423
      %461 = vst.msk [vmem:[#allocation2 + $0x38] sm:$0xff] %vm453, %v424
      %462 = vst.msk [vmem:[#allocation2 + $0x40] sm:$0xff] %vm453, %v425
      %463 = vst.msk [vmem:[#allocation2 + $0x48] sm:$0xff] %vm453, %v426
      %464 = vst.msk [vmem:[#allocation2 + $0x50] sm:$0xff] %vm453, %v427
      %465 = vst.msk [vmem:[#allocation2 + $0x58] sm:$0xff] %vm453, %v428
      %466 = vst.msk [vmem:[#allocation2 + $0x60] sm:$0xff] %vm453, %v429
      %467 = vst.msk [vmem:[#allocation2 + $0x68] sm:$0xff] %vm453, %v430
      %468 = vst.msk [vmem:[#allocation2 + $0x70] sm:$0xff] %vm453, %v431
      %469 = vst.msk [vmem:[#allocation2 + $0x78] sm:$0xff] %vm453, %v432
      %470 = vst.msk [vmem:[#allocation2 + $0x80] sm:$0xff] %vm453, %v433
      %471 = vst.msk [vmem:[#allocation2 + $0x88] sm:$0xff] %vm453, %v434
      %472 = vst.msk [vmem:[#allocation2 + $0x90] sm:$0xff] %vm453, %v435
      %473 = vst.msk [vmem:[#allocation2 + $0x98] sm:$0xff] %vm453, %v436
      %474 = vst.msk [vmem:[#allocation2 + $0xa0] sm:$0xff] %vm453, %v437
      %475 = vst.msk [vmem:[#allocation2 + $0xa8] sm:$0xff] %vm453, %v438
      %476 = vst.msk [vmem:[#allocation2 + $0xb0] sm:$0xff] %vm453, %v439
      %477 = vst.msk [vmem:[#allocation2 + $0xb8] sm:$0xff] %vm453, %v440
      %478 = vst.msk [vmem:[#allocation2 + $0xc0] sm:$0xff] %vm453, %v441
      %479 = vst.msk [vmem:[#allocation2 + $0xc8] sm:$0xff] %vm453, %v442
      %480 = vst.msk [vmem:[#allocation2 + $0xd0] sm:$0xff] %vm453, %v443
      %481 = vst.msk [vmem:[#allocation2 + $0xd8] sm:$0xff] %vm453, %v444
      %482 = vst.msk [vmem:[#allocation2 + $0xe0] sm:$0xff] %vm453, %v445
      %483 = vst.msk [vmem:[#allocation2 + $0xe8] sm:$0xff] %vm453, %v446
      %484 = vst.msk [vmem:[#allocation2 + $0xf0] sm:$0xff] %vm453, %v447
      %485 = vst.msk [vmem:[#allocation2 + $0xf8] sm:$0xff] %vm453, %v448
      %486 = vst.msk [vmem:[#allocation2 + $0x100] sm:$0xff] %vm453, %v449
      %487 = vst.msk [vmem:[#allocation2 + $0x108] sm:$0xff] %vm453, %v450
      %488 = vst.msk [vmem:[#allocation2 + $0x110] sm:$0xff] %vm453, %v451
      %489 = vst.msk [vmem:[#allocation2 + $0x118] sm:$0xff] %vm453, %v452
      %v490 = vld [vmem:[%s409 + $0x1] sm:$0xff]
      %v491 = vld [vmem:[%s409 + $0x9] sm:$0xff]
      %v492 = vld [vmem:[%s409 + $0x11] sm:$0xff]
      %v493 = vld [vmem:[%s409 + $0x19] sm:$0xff]
      %v494 = vld [vmem:[%s409 + $0x21] sm:$0xff]
      %v495 = vld [vmem:[%s409 + $0x29] sm:$0xff]
      %v496 = vld [vmem:[%s409 + $0x31] sm:$0xff]
      %v497 = vld [vmem:[%s409 + $0x39] sm:$0xff]
      %v498 = vld [vmem:[%s409 + $0x41] sm:$0xff]
      %v499 = vld [vmem:[%s409 + $0x49] sm:$0xff]
      %v500 = vld [vmem:[%s409 + $0x51] sm:$0xff]
      %v501 = vld [vmem:[%s409 + $0x59] sm:$0xff]
      %v502 = vld [vmem:[%s409 + $0x61] sm:$0xff]
      %v503 = vld [vmem:[%s409 + $0x69] sm:$0xff]
      %v504 = vld [vmem:[%s409 + $0x71] sm:$0xff]
      %v505 = vld [vmem:[%s409 + $0x79] sm:$0xff]
      %v506 = vld [vmem:[%s409 + $0x81] sm:$0xff]
      %v507 = vld [vmem:[%s409 + $0x89] sm:$0xff]
      %v508 = vld [vmem:[%s409 + $0x91] sm:$0xff]
      %v509 = vld [vmem:[%s409 + $0x99] sm:$0xff]
      %v510 = vld [vmem:[%s409 + $0xa1] sm:$0xff]
      %v511 = vld [vmem:[%s409 + $0xa9] sm:$0xff]
      %v512 = vld [vmem:[%s409 + $0xb1] sm:$0xff]
      %v513 = vld [vmem:[%s409 + $0xb9] sm:$0xff]
      %v514 = vld [vmem:[%s409 + $0xc1] sm:$0xff]
      %v515 = vld [vmem:[%s409 + $0xc9] sm:$0xff]
      %v516 = vld [vmem:[%s409 + $0xd1] sm:$0xff]
      %v517 = vld [vmem:[%s409 + $0xd9] sm:$0xff]
      %v518 = vld [vmem:[%s409 + $0xe1] sm:$0xff]
      %v519 = vld [vmem:[%s409 + $0xe9] sm:$0xff]
      %v520 = vld [vmem:[%s409 + $0xf1] sm:$0xff]
      %v521 = vld [vmem:[%s409 + $0xf9] sm:$0xff]
      %v522 = vld [vmem:[%s409 + $0x101] sm:$0xff]
      %v523 = vld [vmem:[%s409 + $0x109] sm:$0xff]
      %v524 = vld [vmem:[%s409 + $0x111] sm:$0xff]
      %v525 = vld [vmem:[%s409 + $0x119] sm:$0x7f]
      %562 = vrot.lane.b32.xlu0 %v490, 16
      %v563 = vpop.permute.xlu0 %562
      %564 = vrot.lane.b32.xlu0 %v491, 16
      %v565 = vpop.permute.xlu0 %564
      %566 = vrot.lane.b32.xlu0 %v492, 16
      %v567 = vpop.permute.xlu0 %566
      %568 = vrot.lane.b32.xlu0 %v493, 16
      %v569 = vpop.permute.xlu0 %568
      %570 = vrot.lane.b32.xlu0 %v494, 16
      %v571 = vpop.permute.xlu0 %570
      %572 = vrot.lane.b32.xlu0 %v495, 16
      %v573 = vpop.permute.xlu0 %572
      %574 = vrot.lane.b32.xlu0 %v496, 16
      %v575 = vpop.permute.xlu0 %574
      %576 = vrot.lane.b32.xlu0 %v497, 16
      %v577 = vpop.permute.xlu0 %576
      %578 = vrot.lane.b32.xlu0 %v498, 16
      %v579 = vpop.permute.xlu0 %578
      %580 = vrot.lane.b32.xlu0 %v499, 16
      %v581 = vpop.permute.xlu0 %580
      %582 = vrot.lane.b32.xlu0 %v500, 16
      %v583 = vpop.permute.xlu0 %582
      %584 = vrot.lane.b32.xlu0 %v501, 16
      %v585 = vpop.permute.xlu0 %584
      %586 = vrot.lane.b32.xlu0 %v502, 16
      %v587 = vpop.permute.xlu0 %586
      %588 = vrot.lane.b32.xlu0 %v503, 16
      %v589 = vpop.permute.xlu0 %588
      %590 = vrot.lane.b32.xlu0 %v504, 16
      %v591 = vpop.permute.xlu0 %590
      %592 = vrot.lane.b32.xlu0 %v505, 16
      %v593 = vpop.permute.xlu0 %592
      %594 = vrot.lane.b32.xlu0 %v506, 16
      %v595 = vpop.permute.xlu0 %594
      %596 = vrot.lane.b32.xlu0 %v507, 16
      %v597 = vpop.permute.xlu0 %596
      %598 = vrot.lane.b32.xlu0 %v508, 16
      %v599 = vpop.permute.xlu0 %598
      %600 = vrot.lane.b32.xlu0 %v509, 16
      %v601 = vpop.permute.xlu0 %600
      %602 = vrot.lane.b32.xlu0 %v510, 16
      %v603 = vpop.permute.xlu0 %602
      %604 = vrot.lane.b32.xlu0 %v511, 16
      %v605 = vpop.permute.xlu0 %604
      %606 = vrot.lane.b32.xlu0 %v512, 16
      %v607 = vpop.permute.xlu0 %606
      %608 = vrot.lane.b32.xlu0 %v513, 16
      %v609 = vpop.permute.xlu0 %608
      %610 = vrot.lane.b32.xlu0 %v514, 16
      %v611 = vpop.permute.xlu0 %610
      %612 = vrot.lane.b32.xlu0 %v515, 16
      %v613 = vpop.permute.xlu0 %612
      %614 = vrot.lane.b32.xlu0 %v516, 16
      %v615 = vpop.permute.xlu0 %614
      %616 = vrot.lane.b32.xlu0 %v517, 16
      %v617 = vpop.permute.xlu0 %616
      %618 = vrot.lane.b32.xlu0 %v518, 16
      %v619 = vpop.permute.xlu0 %618
      %620 = vrot.lane.b32.xlu0 %v519, 16
      %v621 = vpop.permute.xlu0 %620
      %622 = vrot.lane.b32.xlu0 %v520, 16
      %v623 = vpop.permute.xlu0 %622
      %624 = vrot.lane.b32.xlu0 %v521, 16
      %v625 = vpop.permute.xlu0 %624
      %626 = vrot.lane.b32.xlu0 %v522, 16
      %v627 = vpop.permute.xlu0 %626
      %628 = vrot.lane.b32.xlu0 %v523, 16
      %v629 = vpop.permute.xlu0 %628
      %630 = vrot.lane.b32.xlu0 %v524, 16
      %v631 = vpop.permute.xlu0 %630
      %632 = vrot.lane.b32.xlu0 %v525, 16
      %v633 = vpop.permute.xlu0 %632
      %vm670 = vcmask 261248
      %671 = vst.msk [vmem:[#allocation2] sm:$0xff] %vm670, %v563
      %672 = vst.msk [vmem:[#allocation2 + $0x8] sm:$0xff] %vm670, %v565
      %673 = vst.msk [vmem:[#allocation2 + $0x10] sm:$0xff] %vm670, %v567
      %674 = vst.msk [vmem:[#allocation2 + $0x18] sm:$0xff] %vm670, %v569
      %675 = vst.msk [vmem:[#allocation2 + $0x20] sm:$0xff] %vm670, %v571
      %676 = vst.msk [vmem:[#allocation2 + $0x28] sm:$0xff] %vm670, %v573
      %677 = vst.msk [vmem:[#allocation2 + $0x30] sm:$0xff] %vm670, %v575
      %678 = vst.msk [vmem:[#allocation2 + $0x38] sm:$0xff] %vm670, %v577
      %679 = vst.msk [vmem:[#allocation2 + $0x40] sm:$0xff] %vm670, %v579
      %680 = vst.msk [vmem:[#allocation2 + $0x48] sm:$0xff] %vm670, %v581
      %681 = vst.msk [vmem:[#allocation2 + $0x50] sm:$0xff] %vm670, %v583
      %682 = vst.msk [vmem:[#allocation2 + $0x58] sm:$0xff] %vm670, %v585
      %683 = vst.msk [vmem:[#allocation2 + $0x60] sm:$0xff] %vm670, %v587
      %684 = vst.msk [vmem:[#allocation2 + $0x68] sm:$0xff] %vm670, %v589
      %685 = vst.msk [vmem:[#allocation2 + $0x70] sm:$0xff] %vm670, %v591
      %686 = vst.msk [vmem:[#allocation2 + $0x78] sm:$0xff] %vm670, %v593
      %687 = vst.msk [vmem:[#allocation2 + $0x80] sm:$0xff] %vm670, %v595
      %688 = vst.msk [vmem:[#allocation2 + $0x88] sm:$0xff] %vm670, %v597
      %689 = vst.msk [vmem:[#allocation2 + $0x90] sm:$0xff] %vm670, %v599
      %690 = vst.msk [vmem:[#allocation2 + $0x98] sm:$0xff] %vm670, %v601
      %691 = vst.msk [vmem:[#allocation2 + $0xa0] sm:$0xff] %vm670, %v603
      %692 = vst.msk [vmem:[#allocation2 + $0xa8] sm:$0xff] %vm670, %v605
      %693 = vst.msk [vmem:[#allocation2 + $0xb0] sm:$0xff] %vm670, %v607
      %694 = vst.msk [vmem:[#allocation2 + $0xb8] sm:$0xff] %vm670, %v609
      %695 = vst.msk [vmem:[#allocation2 + $0xc0] sm:$0xff] %vm670, %v611
      %696 = vst.msk [vmem:[#allocation2 + $0xc8] sm:$0xff] %vm670, %v613
      %697 = vst.msk [vmem:[#allocation2 + $0xd0] sm:$0xff] %vm670, %v615
      %698 = vst.msk [vmem:[#allocation2 + $0xd8] sm:$0xff] %vm670, %v617
      %699 = vst.msk [vmem:[#allocation2 + $0xe0] sm:$0xff] %vm670, %v619
      %700 = vst.msk [vmem:[#allocation2 + $0xe8] sm:$0xff] %vm670, %v621
      %701 = vst.msk [vmem:[#allocation2 + $0xf0] sm:$0xff] %vm670, %v623
      %702 = vst.msk [vmem:[#allocation2 + $0xf8] sm:$0xff] %vm670, %v625
      %703 = vst.msk [vmem:[#allocation2 + $0x100] sm:$0xff] %vm670, %v627
      %704 = vst.msk [vmem:[#allocation2 + $0x108] sm:$0xff] %vm670, %v629
      %705 = vst.msk [vmem:[#allocation2 + $0x110] sm:$0xff] %vm670, %v631
      %vm706 = vcmask 260224
      %707 = vst.msk [vmem:[#allocation2 + $0x118] sm:$0x7f] %vm706, %v633
      %vm708 = vcmask 254080
      %709 = vst.msk [vmem:[#allocation2 + $0x11f] sm:$0x1] %vm708, 0.0
      %v710 = vld [vmem:[%s409 + $0x2] sm:$0xff]
      %v711 = vld [vmem:[%s409 + $0xa] sm:$0xff]
      %v712 = vld [vmem:[%s409 + $0x12] sm:$0xff]
      %v713 = vld [vmem:[%s409 + $0x1a] sm:$0xff]
      %v714 = vld [vmem:[%s409 + $0x22] sm:$0xff]
      %v715 = vld [vmem:[%s409 + $0x2a] sm:$0xff]
      %v716 = vld [vmem:[%s409 + $0x32] sm:$0xff]
      %v717 = vld [vmem:[%s409 + $0x3a] sm:$0xff]
      %v718 = vld [vmem:[%s409 + $0x42] sm:$0xff]
      %v719 = vld [vmem:[%s409 + $0x4a] sm:$0xff]
      %v720 = vld [vmem:[%s409 + $0x52] sm:$0xff]
      %v721 = vld [vmem:[%s409 + $0x5a] sm:$0xff]
      %v722 = vld [vmem:[%s409 + $0x62] sm:$0xff]
      %v723 = vld [vmem:[%s409 + $0x6a] sm:$0xff]
      %v724 = vld [vmem:[%s409 + $0x72] sm:$0xff]
      %v725 = vld [vmem:[%s409 + $0x7a] sm:$0xff]
      %v726 = vld [vmem:[%s409 + $0x82] sm:$0xff]
      %v727 = vld [vmem:[%s409 + $0x8a] sm:$0xff]
      %v728 = vld [vmem:[%s409 + $0x92] sm:$0xff]
      %v729 = vld [vmem:[%s409 + $0x9a] sm:$0xff]
      %v730 = vld [vmem:[%s409 + $0xa2] sm:$0xff]
      %v731 = vld [vmem:[%s409 + $0xaa] sm:$0xff]
      %v732 = vld [vmem:[%s409 + $0xb2] sm:$0xff]
      %v733 = vld [vmem:[%s409 + $0xba] sm:$0xff]
      %v734 = vld [vmem:[%s409 + $0xc2] sm:$0xff]
      %v735 = vld [vmem:[%s409 + $0xca] sm:$0xff]
      %v736 = vld [vmem:[%s409 + $0xd2] sm:$0xff]
      %v737 = vld [vmem:[%s409 + $0xda] sm:$0xff]
      %v738 = vld [vmem:[%s409 + $0xe2] sm:$0xff]
      %v739 = vld [vmem:[%s409 + $0xea] sm:$0xff]
      %v740 = vld [vmem:[%s409 + $0xf2] sm:$0xff]
      %v741 = vld [vmem:[%s409 + $0xfa] sm:$0xff]
      %v742 = vld [vmem:[%s409 + $0x102] sm:$0xff]
      %v743 = vld [vmem:[%s409 + $0x10a] sm:$0xff]
      %v744 = vld [vmem:[%s409 + $0x112] sm:$0xff]
      %v745 = vld [vmem:[%s409 + $0x11a] sm:$0x3f]
      %782 = vrot.lane.b32.xlu0 %v710, 32
      %v783 = vpop.permute.xlu0 %782
      %784 = vrot.lane.b32.xlu0 %v711, 32
      %v785 = vpop.permute.xlu0 %784
      %786 = vrot.lane.b32.xlu0 %v712, 32
      %v787 = vpop.permute.xlu0 %786
      %788 = vrot.lane.b32.xlu0 %v713, 32
      %v789 = vpop.permute.xlu0 %788
      %790 = vrot.lane.b32.xlu0 %v714, 32
      %v791 = vpop.permute.xlu0 %790
      %792 = vrot.lane.b32.xlu0 %v715, 32
      %v793 = vpop.permute.xlu0 %792
      %794 = vrot.lane.b32.xlu0 %v716, 32
      %v795 = vpop.permute.xlu0 %794
      %796 = vrot.lane.b32.xlu0 %v717, 32
      %v797 = vpop.permute.xlu0 %796
      %798 = vrot.lane.b32.xlu0 %v718, 32
      %v799 = vpop.permute.xlu0 %798
      %800 = vrot.lane.b32.xlu0 %v719, 32
      %v801 = vpop.permute.xlu0 %800
      %802 = vrot.lane.b32.xlu0 %v720, 32
      %v803 = vpop.permute.xlu0 %802
      %804 = vrot.lane.b32.xlu0 %v721, 32
      %v805 = vpop.permute.xlu0 %804
      %806 = vrot.lane.b32.xlu0 %v722, 32
      %v807 = vpop.permute.xlu0 %806
      %808 = vrot.lane.b32.xlu0 %v723, 32
      %v809 = vpop.permute.xlu0 %808
      %810 = vrot.lane.b32.xlu0 %v724, 32
      %v811 = vpop.permute.xlu0 %810
      %812 = vrot.lane.b32.xlu0 %v725, 32
      %v813 = vpop.permute.xlu0 %812
      %814 = vrot.lane.b32.xlu0 %v726, 32
      %v815 = vpop.permute.xlu0 %814
      %816 = vrot.lane.b32.xlu0 %v727, 32
      %v817 = vpop.permute.xlu0 %816
      %818 = vrot.lane.b32.xlu0 %v728, 32
      %v819 = vpop.permute.xlu0 %818
      %820 = vrot.lane.b32.xlu0 %v729, 32
      %v821 = vpop.permute.xlu0 %820
      %822 = vrot.lane.b32.xlu0 %v730, 32
      %v823 = vpop.permute.xlu0 %822
      %824 = vrot.lane.b32.xlu0 %v731, 32
      %v825 = vpop.permute.xlu0 %824
      %826 = vrot.lane.b32.xlu0 %v732, 32
      %v827 = vpop.permute.xlu0 %826
      %828 = vrot.lane.b32.xlu0 %v733, 32
      %v829 = vpop.permute.xlu0 %828
      %830 = vrot.lane.b32.xlu0 %v734, 32
      %v831 = vpop.permute.xlu0 %830
      %832 = vrot.lane.b32.xlu0 %v735, 32
      %v833 = vpop.permute.xlu0 %832
      %834 = vrot.lane.b32.xlu0 %v736, 32
      %v835 = vpop.permute.xlu0 %834
      %836 = vrot.lane.b32.xlu0 %v737, 32
      %v837 = vpop.permute.xlu0 %836
      %838 = vrot.lane.b32.xlu0 %v738, 32
      %v839 = vpop.permute.xlu0 %838
      %840 = vrot.lane.b32.xlu0 %v739, 32
      %v841 = vpop.permute.xlu0 %840
      %842 = vrot.lane.b32.xlu0 %v740, 32
      %v843 = vpop.permute.xlu0 %842
      %844 = vrot.lane.b32.xlu0 %v741, 32
      %v845 = vpop.permute.xlu0 %844
      %846 = vrot.lane.b32.xlu0 %v742, 32
      %v847 = vpop.permute.xlu0 %846
      %848 = vrot.lane.b32.xlu0 %v743, 32
      %v849 = vpop.permute.xlu0 %848
      %850 = vrot.lane.b32.xlu0 %v744, 32
      %v851 = vpop.permute.xlu0 %850
      %852 = vrot.lane.b32.xlu0 %v745, 32
      %v853 = vpop.permute.xlu0 %852
      %vm890 = vcmask 392448
      %891 = vst.msk [vmem:[#allocation2] sm:$0xff] %vm890, %v783
      %892 = vst.msk [vmem:[#allocation2 + $0x8] sm:$0xff] %vm890, %v785
      %893 = vst.msk [vmem:[#allocation2 + $0x10] sm:$0xff] %vm890, %v787
      %894 = vst.msk [vmem:[#allocation2 + $0x18] sm:$0xff] %vm890, %v789
      %895 = vst.msk [vmem:[#allocation2 + $0x20] sm:$0xff] %vm890, %v791
      %896 = vst.msk [vmem:[#allocation2 + $0x28] sm:$0xff] %vm890, %v793
      %897 = vst.msk [vmem:[#allocation2 + $0x30] sm:$0xff] %vm890, %v795
      %898 = vst.msk [vmem:[#allocation2 + $0x38] sm:$0xff] %vm890, %v797
      %899 = vst.msk [vmem:[#allocation2 + $0x40] sm:$0xff] %vm890, %v799
      %900 = vst.msk [vmem:[#allocation2 + $0x48] sm:$0xff] %vm890, %v801
      %901 = vst.msk [vmem:[#allocation2 + $0x50] sm:$0xff] %vm890, %v803
      %902 = vst.msk [vmem:[#allocation2 + $0x58] sm:$0xff] %vm890, %v805
      %903 = vst.msk [vmem:[#allocation2 + $0x60] sm:$0xff] %vm890, %v807
      %904 = vst.msk [vmem:[#allocation2 + $0x68] sm:$0xff] %vm890, %v809
      %905 = vst.msk [vmem:[#allocation2 + $0x70] sm:$0xff] %vm890, %v811
      %906 = vst.msk [vmem:[#allocation2 + $0x78] sm:$0xff] %vm890, %v813
      %907 = vst.msk [vmem:[#allocation2 + $0x80] sm:$0xff] %vm890, %v815
      %908 = vst.msk [vmem:[#allocation2 + $0x88] sm:$0xff] %vm890, %v817
      %909 = vst.msk [vmem:[#allocation2 + $0x90] sm:$0xff] %vm890, %v819
      %910 = vst.msk [vmem:[#allocation2 + $0x98] sm:$0xff] %vm890, %v821
      %911 = vst.msk [vmem:[#allocation2 + $0xa0] sm:$0xff] %vm890, %v823
      %912 = vst.msk [vmem:[#allocation2 + $0xa8] sm:$0xff] %vm890, %v825
      %913 = vst.msk [vmem:[#allocation2 + $0xb0] sm:$0xff] %vm890, %v827
      %914 = vst.msk [vmem:[#allocation2 + $0xb8] sm:$0xff] %vm890, %v829
      %915 = vst.msk [vmem:[#allocation2 + $0xc0] sm:$0xff] %vm890, %v831
      %916 = vst.msk [vmem:[#allocation2 + $0xc8] sm:$0xff] %vm890, %v833
      %917 = vst.msk [vmem:[#allocation2 + $0xd0] sm:$0xff] %vm890, %v835
      %918 = vst.msk [vmem:[#allocation2 + $0xd8] sm:$0xff] %vm890, %v837
      %919 = vst.msk [vmem:[#allocation2 + $0xe0] sm:$0xff] %vm890, %v839
      %920 = vst.msk [vmem:[#allocation2 + $0xe8] sm:$0xff] %vm890, %v841
      %921 = vst.msk [vmem:[#allocation2 + $0xf0] sm:$0xff] %vm890, %v843
      %922 = vst.msk [vmem:[#allocation2 + $0xf8] sm:$0xff] %vm890, %v845
      %923 = vst.msk [vmem:[#allocation2 + $0x100] sm:$0xff] %vm890, %v847
      %924 = vst.msk [vmem:[#allocation2 + $0x108] sm:$0xff] %vm890, %v849
      %925 = vst.msk [vmem:[#allocation2 + $0x110] sm:$0xff] %vm890, %v851
      %vm926 = vcmask 390400
      %927 = vst.msk [vmem:[#allocation2 + $0x118] sm:$0x3f] %vm926, %v853
      %vm928 = vcmask 386304
      %929 = vst.msk [vmem:[#allocation2 + $0x11e] sm:$0x3] %vm928, 0.0
      %v930 = vld [vmem:[%s409 + $0x3] sm:$0xff]
      %v931 = vld [vmem:[%s409 + $0xb] sm:$0xff]
      %v932 = vld [vmem:[%s409 + $0x13] sm:$0xff]
      %v933 = vld [vmem:[%s409 + $0x1b] sm:$0xff]
      %v934 = vld [vmem:[%s409 + $0x23] sm:$0xff]
      %v935 = vld [vmem:[%s409 + $0x2b] sm:$0xff]
      %v936 = vld [vmem:[%s409 + $0x33] sm:$0xff]
      %v937 = vld [vmem:[%s409 + $0x3b] sm:$0xff]
      %v938 = vld [vmem:[%s409 + $0x43] sm:$0xff]
      %v939 = vld [vmem:[%s409 + $0x4b] sm:$0xff]
      %v940 = vld [vmem:[%s409 + $0x53] sm:$0xff]
      %v941 = vld [vmem:[%s409 + $0x5b] sm:$0xff]
      %v942 = vld [vmem:[%s409 + $0x63] sm:$0xff]
      %v943 = vld [vmem:[%s409 + $0x6b] sm:$0xff]
      %v944 = vld [vmem:[%s409 + $0x73] sm:$0xff]
      %v945 = vld [vmem:[%s409 + $0x7b] sm:$0xff]
      %v946 = vld [vmem:[%s409 + $0x83] sm:$0xff]
      %v947 = vld [vmem:[%s409 + $0x8b] sm:$0xff]
      %v948 = vld [vmem:[%s409 + $0x93] sm:$0xff]
      %v949 = vld [vmem:[%s409 + $0x9b] sm:$0xff]
      %v950 = vld [vmem:[%s409 + $0xa3] sm:$0xff]
      %v951 = vld [vmem:[%s409 + $0xab] sm:$0xff]
      %v952 = vld [vmem:[%s409 + $0xb3] sm:$0xff]
      %v953 = vld [vmem:[%s409 + $0xbb] sm:$0xff]
      %v954 = vld [vmem:[%s409 + $0xc3] sm:$0xff]
      %v955 = vld [vmem:[%s409 + $0xcb] sm:$0xff]
      %v956 = vld [vmem:[%s409 + $0xd3] sm:$0xff]
      %v957 = vld [vmem:[%s409 + $0xdb] sm:$0xff]
      %v958 = vld [vmem:[%s409 + $0xe3] sm:$0xff]
      %v959 = vld [vmem:[%s409 + $0xeb] sm:$0xff]
      %v960 = vld [vmem:[%s409 + $0xf3] sm:$0xff]
      %v961 = vld [vmem:[%s409 + $0xfb] sm:$0xff]
      %v962 = vld [vmem:[%s409 + $0x103] sm:$0xff]
      %v963 = vld [vmem:[%s409 + $0x10b] sm:$0xff]
      %v964 = vld [vmem:[%s409 + $0x113] sm:$0xff]
      %v965 = vld [vmem:[%s409 + $0x11b] sm:$0x1f]
      %1002 = vrot.lane.b32.xlu0 %v930, 48
      %v1003 = vpop.permute.xlu0 %1002
      %1004 = vrot.lane.b32.xlu0 %v931, 48
      %v1005 = vpop.permute.xlu0 %1004
      %1006 = vrot.lane.b32.xlu0 %v932, 48
      %v1007 = vpop.permute.xlu0 %1006
      %1008 = vrot.lane.b32.xlu0 %v933, 48
      %v1009 = vpop.permute.xlu0 %1008
      %1010 = vrot.lane.b32.xlu0 %v934, 48
      %v1011 = vpop.permute.xlu0 %1010
      %1012 = vrot.lane.b32.xlu0 %v935, 48
      %v1013 = vpop.permute.xlu0 %1012
      %1014 = vrot.lane.b32.xlu0 %v936, 48
      %v1015 = vpop.permute.xlu0 %1014
      %1016 = vrot.lane.b32.xlu0 %v937, 48
      %v1017 = vpop.permute.xlu0 %1016
      %1018 = vrot.lane.b32.xlu0 %v938, 48
      %v1019 = vpop.permute.xlu0 %1018
      %1020 = vrot.lane.b32.xlu0 %v939, 48
      %v1021 = vpop.permute.xlu0 %1020
      %1022 = vrot.lane.b32.xlu0 %v940, 48
      %v1023 = vpop.permute.xlu0 %1022
      %1024 = vrot.lane.b32.xlu0 %v941, 48
      %v1025 = vpop.permute.xlu0 %1024
      %1026 = vrot.lane.b32.xlu0 %v942, 48
      %v1027 = vpop.permute.xlu0 %1026
      %1028 = vrot.lane.b32.xlu0 %v943, 48
      %v1029 = vpop.permute.xlu0 %1028
      %1030 = vrot.lane.b32.xlu0 %v944, 48
      %v1031 = vpop.permute.xlu0 %1030
      %1032 = vrot.lane.b32.xlu0 %v945, 48
      %v1033 = vpop.permute.xlu0 %1032
      %1034 = vrot.lane.b32.xlu0 %v946, 48
      %v1035 = vpop.permute.xlu0 %1034
      %1036 = vrot.lane.b32.xlu0 %v947, 48
      %v1037 = vpop.permute.xlu0 %1036
      %1038 = vrot.lane.b32.xlu0 %v948, 48
      %v1039 = vpop.permute.xlu0 %1038
      %1040 = vrot.lane.b32.xlu0 %v949, 48
      %v1041 = vpop.permute.xlu0 %1040
      %1042 = vrot.lane.b32.xlu0 %v950, 48
      %v1043 = vpop.permute.xlu0 %1042
      %1044 = vrot.lane.b32.xlu0 %v951, 48
      %v1045 = vpop.permute.xlu0 %1044
      %1046 = vrot.lane.b32.xlu0 %v952, 48
      %v1047 = vpop.permute.xlu0 %1046
      %1048 = vrot.lane.b32.xlu0 %v953, 48
      %v1049 = vpop.permute.xlu0 %1048
      %1050 = vrot.lane.b32.xlu0 %v954, 48
      %v1051 = vpop.permute.xlu0 %1050
      %1052 = vrot.lane.b32.xlu0 %v955, 48
      %v1053 = vpop.permute.xlu0 %1052
      %1054 = vrot.lane.b32.xlu0 %v956, 48
      %v1055 = vpop.permute.xlu0 %1054
      %1056 = vrot.lane.b32.xlu0 %v957, 48
      %v1057 = vpop.permute.xlu0 %1056
      %1058 = vrot.lane.b32.xlu0 %v958, 48
      %v1059 = vpop.permute.xlu0 %1058
      %1060 = vrot.lane.b32.xlu0 %v959, 48
      %v1061 = vpop.permute.xlu0 %1060
      %1062 = vrot.lane.b32.xlu0 %v960, 48
      %v1063 = vpop.permute.xlu0 %1062
      %1064 = vrot.lane.b32.xlu0 %v961, 48
      %v1065 = vpop.permute.xlu0 %1064
      %1066 = vrot.lane.b32.xlu0 %v962, 48
      %v1067 = vpop.permute.xlu0 %1066
      %1068 = vrot.lane.b32.xlu0 %v963, 48
      %v1069 = vpop.permute.xlu0 %1068
      %1070 = vrot.lane.b32.xlu0 %v964, 48
      %v1071 = vpop.permute.xlu0 %1070
      %1072 = vrot.lane.b32.xlu0 %v965, 48
      %v1073 = vpop.permute.xlu0 %1072
      %vm1110 = vcmask 523648
      %1111 = vst.msk [vmem:[#allocation2] sm:$0xff] %vm1110, %v1003
      %1112 = vst.msk [vmem:[#allocation2 + $0x8] sm:$0xff] %vm1110, %v1005
      %1113 = vst.msk [vmem:[#allocation2 + $0x10] sm:$0xff] %vm1110, %v1007
      %1114 = vst.msk [vmem:[#allocation2 + $0x18] sm:$0xff] %vm1110, %v1009
      %1115 = vst.msk [vmem:[#allocation2 + $0x20] sm:$0xff] %vm1110, %v1011
      %1116 = vst.msk [vmem:[#allocation2 + $0x28] sm:$0xff] %vm1110, %v1013
      %1117 = vst.msk [vmem:[#allocation2 + $0x30] sm:$0xff] %vm1110, %v1015
      %1118 = vst.msk [vmem:[#allocation2 + $0x38] sm:$0xff] %vm1110, %v1017
      %1119 = vst.msk [vmem:[#allocation2 + $0x40] sm:$0xff] %vm1110, %v1019
      %1120 = vst.msk [vmem:[#allocation2 + $0x48] sm:$0xff] %vm1110, %v1021
      %1121 = vst.msk [vmem:[#allocation2 + $0x50] sm:$0xff] %vm1110, %v1023
      %1122 = vst.msk [vmem:[#allocation2 + $0x58] sm:$0xff] %vm1110, %v1025
      %1123 = vst.msk [vmem:[#allocation2 + $0x60] sm:$0xff] %vm1110, %v1027
      %1124 = vst.msk [vmem:[#allocation2 + $0x68] sm:$0xff] %vm1110, %v1029
      %1125 = vst.msk [vmem:[#allocation2 + $0x70] sm:$0xff] %vm1110, %v1031
      %1126 = vst.msk [vmem:[#allocation2 + $0x78] sm:$0xff] %vm1110, %v1033
      %1127 = vst.msk [vmem:[#allocation2 + $0x80] sm:$0xff] %vm1110, %v1035
      %1128 = vst.msk [vmem:[#allocation2 + $0x88] sm:$0xff] %vm1110, %v1037
      %1129 = vst.msk [vmem:[#allocation2 + $0x90] sm:$0xff] %vm1110, %v1039
      %1130 = vst.msk [vmem:[#allocation2 + $0x98] sm:$0xff] %vm1110, %v1041
      %1131 = vst.msk [vmem:[#allocation2 + $0xa0] sm:$0xff] %vm1110, %v1043
      %1132 = vst.msk [vmem:[#allocation2 + $0xa8] sm:$0xff] %vm1110, %v1045
      %1133 = vst.msk [vmem:[#allocation2 + $0xb0] sm:$0xff] %vm1110, %v1047
      %1134 = vst.msk [vmem:[#allocation2 + $0xb8] sm:$0xff] %vm1110, %v1049
      %1135 = vst.msk [vmem:[#allocation2 + $0xc0] sm:$0xff] %vm1110, %v1051
      %1136 = vst.msk [vmem:[#allocation2 + $0xc8] sm:$0xff] %vm1110, %v1053
      %1137 = vst.msk [vmem:[#allocation2 + $0xd0] sm:$0xff] %vm1110, %v1055
      %1138 = vst.msk [vmem:[#allocation2 + $0xd8] sm:$0xff] %vm1110, %v1057
      %1139 = vst.msk [vmem:[#allocation2 + $0xe0] sm:$0xff] %vm1110, %v1059
      %1140 = vst.msk [vmem:[#allocation2 + $0xe8] sm:$0xff] %vm1110, %v1061
      %1141 = vst.msk [vmem:[#allocation2 + $0xf0] sm:$0xff] %vm1110, %v1063
      %1142 = vst.msk [vmem:[#allocation2 + $0xf8] sm:$0xff] %vm1110, %v1065
      %1143 = vst.msk [vmem:[#allocation2 + $0x100] sm:$0xff] %vm1110, %v1067
      %1144 = vst.msk [vmem:[#allocation2 + $0x108] sm:$0xff] %vm1110, %v1069
      %1145 = vst.msk [vmem:[#allocation2 + $0x110] sm:$0xff] %vm1110, %v1071
      %vm1146 = vcmask 520576
      %1147 = vst.msk [vmem:[#allocation2 + $0x118] sm:$0x1f] %vm1146, %v1073
      %vm1148 = vcmask 518528
      %1149 = vst.msk [vmem:[#allocation2 + $0x11d] sm:$0x7] %vm1148, 0.0
      %v1150 = vld [vmem:[#allocation2] sm:$0xff]
      %v1151 = vld [vmem:[#allocation2 + $0x8] sm:$0xff]
      %v1152 = vld [vmem:[#allocation2 + $0x10] sm:$0xff]
      %v1153 = vld [vmem:[#allocation2 + $0x18] sm:$0xff]
      %v1154 = vld [vmem:[#allocation2 + $0x20] sm:$0xff]
      %v1155 = vld [vmem:[#allocation2 + $0x28] sm:$0xff]
      %v1156 = vld [vmem:[#allocation2 + $0x30] sm:$0xff]
      %v1157 = vld [vmem:[#allocation2 + $0x38] sm:$0xff]
      %v1158 = vld [vmem:[#allocation2 + $0x40] sm:$0xff]
      %v1159 = vld [vmem:[#allocation2 + $0x48] sm:$0xff]
      %v1160 = vld [vmem:[#allocation2 + $0x50] sm:$0xff]
      %v1161 = vld [vmem:[#allocation2 + $0x58] sm:$0xff]
      %v1162 = vld [vmem:[#allocation2 + $0x60] sm:$0xff]
      %v1163 = vld [vmem:[#allocation2 + $0x68] sm:$0xff]
      %v1164 = vld [vmem:[#allocation2 + $0x70] sm:$0xff]
      %v1165 = vld [vmem:[#allocation2 + $0x78] sm:$0xff]
      %v1166 = vld [vmem:[#allocation2 + $0x80] sm:$0xff]
      %v1167 = vld [vmem:[#allocation2 + $0x88] sm:$0xff]
      %v1168 = vld [vmem:[#allocation2 + $0x90] sm:$0xff]
      %v1169 = vld [vmem:[#allocation2 + $0x98] sm:$0xff]
      %v1170 = vld [vmem:[#allocation2 + $0xa0] sm:$0xff]
      %v1171 = vld [vmem:[#allocation2 + $0xa8] sm:$0xff]
      %v1172 = vld [vmem:[#allocation2 + $0xb0] sm:$0xff]
      %v1173 = vld [vmem:[#allocation2 + $0xb8] sm:$0xff]
      %v1174 = vld [vmem:[#allocation2 + $0xc0] sm:$0xff]
      %v1175 = vld [vmem:[#allocation2 + $0xc8] sm:$0xff]
      %v1176 = vld [vmem:[#allocation2 + $0xd0] sm:$0xff]
      %v1177 = vld [vmem:[#allocation2 + $0xd8] sm:$0xff]
      %v1178 = vld [vmem:[#allocation2 + $0xe0] sm:$0xff]
      %v1179 = vld [vmem:[#allocation2 + $0xe8] sm:$0xff]
      %v1180 = vld [vmem:[#allocation2 + $0xf0] sm:$0xff]
      %v1181 = vld [vmem:[#allocation2 + $0xf8] sm:$0xff]
      %v1182 = vld [vmem:[#allocation2 + $0x100] sm:$0xff]
      %v1183 = vld [vmem:[#allocation2 + $0x108] sm:$0xff]
      %v1184 = vld [vmem:[#allocation2 + $0x110] sm:$0xff]
      %v1185 = vld [vmem:[#allocation2 + $0x118] sm:$0xff]
      %v1186 = vld [vmem:[%s1] sm:$0xff]
      %v1187 = vld [vmem:[%s1 + $0x8] sm:$0xff]
      %v1188 = vld [vmem:[%s1 + $0x10] sm:$0xff]
      %v1189 = vld [vmem:[%s1 + $0x18] sm:$0xff]
      %v1190 = vld [vmem:[%s1 + $0x20] sm:$0xff]
      %v1191 = vld [vmem:[%s1 + $0x28] sm:$0xff]
      %v1192 = vld [vmem:[%s1 + $0x30] sm:$0xff]
      %v1193 = vld [vmem:[%s1 + $0x38] sm:$0xff]
      %v1194 = vld [vmem:[%s2] sm:$0x1]
      %v1196 = vlaneseq
      %v1197 = vshrl.u32 %v1196, 7
      %v1198 = vsub.s32 0, %v1197
      %v1199 = vrot.slane %v1194, %v1198
      %vm1201 = vcmask 523264
      %v1203 = vsel %vm1201, %v1150, 0
      %v1206 = vsel %vm1201, %v1151, 0
      %v1209 = vsel %vm1201, %v1152, 0
      %v1212 = vsel %vm1201, %v1153, 0
      %v1215 = vsel %vm1201, %v1154, 0
      %v1218 = vsel %vm1201, %v1155, 0
      %v1221 = vsel %vm1201, %v1156, 0
      %v1224 = vsel %vm1201, %v1157, 0
      %v1227 = vsel %vm1201, %v1158, 0
      %v1230 = vsel %vm1201, %v1159, 0
      %v1233 = vsel %vm1201, %v1160, 0
      %v1236 = vsel %vm1201, %v1161, 0
      %v1239 = vsel %vm1201, %v1162, 0
      %v1242 = vsel %vm1201, %v1163, 0
      %v1245 = vsel %vm1201, %v1164, 0
      %v1248 = vsel %vm1201, %v1165, 0
      %v1251 = vsel %vm1201, %v1166, 0
      %v1254 = vsel %vm1201, %v1167, 0
      %v1257 = vsel %vm1201, %v1168, 0
      %v1260 = vsel %vm1201, %v1169, 0
      %v1263 = vsel %vm1201, %v1170, 0
      %v1266 = vsel %vm1201, %v1171, 0
      %v1269 = vsel %vm1201, %v1172, 0
      %v1272 = vsel %vm1201, %v1173, 0
      %v1275 = vsel %vm1201, %v1174, 0
      %v1278 = vsel %vm1201, %v1175, 0
      %v1281 = vsel %vm1201, %v1176, 0
      %v1284 = vsel %vm1201, %v1177, 0
      %v1287 = vsel %vm1201, %v1178, 0
      %v1290 = vsel %vm1201, %v1179, 0
      %v1293 = vsel %vm1201, %v1180, 0
      %v1296 = vsel %vm1201, %v1181, 0
      %v1299 = vsel %vm1201, %v1182, 0
      %v1302 = vsel %vm1201, %v1183, 0
      %v1305 = vsel %vm1201, %v1184, 0
      %v1308 = vsel %vm1201, %v1185, 0
      %1310 = vmatprep.subr.mxu0 0.0
      %1311 = vmatpush1.msra.mxu0 %v1186
      %1312 = vmatprep.subr.mxu0 0.0
      %1313 = vmatpush1.msra.mxu0 %v1187
      %1314 = vmatprep.subr.mxu0 0.0
      %1315 = vmatpush1.msra.mxu0 %v1188
      %1316 = vmatprep.subr.mxu0 0.0
      %1317 = vmatpush1.msra.mxu0 %v1189
      %1318 = vmatprep.subr.mxu0 0.0
      %1319 = vmatpush1.msra.mxu0 %v1190
      %1320 = vmatprep.subr.mxu0 0.0
      %1321 = vmatpush1.msra.mxu0 %v1191
      %1322 = vmatprep.subr.mxu0 0.0
      %1323 = vmatpush1.msra.mxu0 %v1192
      %1324 = vmatprep.subr.mxu0 0.0
      %1325 = vmatpush1.msra.mxu0 %v1193
      %1326 = vmatprep.subr.mxu0 0.0
      %1327 = vmatpush1.msra.mxu0 0.0
      %1328 = vmatprep.subr.mxu0 0.0
      %1329 = vmatpush1.msra.mxu0 0.0
      %1330 = vmatprep.subr.mxu0 0.0
      %1331 = vmatpush1.msra.mxu0 0.0
      %1332 = vmatprep.subr.mxu0 0.0
      %1333 = vmatpush1.msra.mxu0 0.0
      %1334 = vmatprep.subr.mxu0 0.0
      %1335 = vmatpush1.msra.mxu0 0.0
      %1336 = vmatprep.subr.mxu0 0.0
      %1337 = vmatpush1.msra.mxu0 0.0
      %1338 = vmatprep.subr.mxu0 0.0
      %1339 = vmatpush1.msra.mxu0 0.0
      %1340 = vmatprep.subr.mxu0 0.0
      %1341 = vmatpush1.msra.mxu0 0.0
      %1342 = vmatprep.subr.mxu0 0.0
      %1343 = vmatpush1.msra.mxu0 0.0
      %1344 = vmatprep.subr.mxu0 0.0
      %1345 = vmatpush1.msra.mxu0 0.0
      %1346 = vmatprep.subr.mxu0 0.0
      %1347 = vmatpush1.msra.mxu0 0.0
      %1348 = vmatprep.subr.mxu0 0.0
      %1349 = vmatpush1.msra.mxu0 0.0
      %1350 = vmatprep.subr.mxu0 0.0
      %1351 = vmatpush1.msra.mxu0 0.0
      %1352 = vmatprep.subr.mxu0 0.0
      %1353 = vmatpush1.msra.mxu0 0.0
      %1354 = vmatprep.subr.mxu0 0.0
      %1355 = vmatpush1.msra.mxu0 0.0
      %1356 = vmatprep.subr.mxu0 0.0
      %1357 = vmatpush1.msra.mxu0 0.0
      %1358 = vmatprep.subr.mxu0 0.0
      %1359 = vmatpush1.msra.mxu0 0.0
      %1360 = vmatprep.subr.mxu0 0.0
      %1361 = vmatpush1.msra.mxu0 0.0
      %1362 = vmatprep.subr.mxu0 0.0
      %1363 = vmatpush1.msra.mxu0 0.0
      %1364 = vmatprep.subr.mxu0 0.0
      %1365 = vmatpush1.msra.mxu0 0.0
      %1366 = vmatprep.subr.mxu0 0.0
      %1367 = vmatpush1.msra.mxu0 0.0
      %1368 = vmatprep.subr.mxu0 0.0
      %1369 = vmatpush1.msra.mxu0 0.0
      %1370 = vmatprep.subr.mxu0 0.0
      %1371 = vmatpush1.msra.mxu0 0.0
      %1372 = vmatprep.subr.mxu0 0.0
      %1373 = vmatpush1.msra.mxu0 0.0
      %1374 = vmatprep.mubr.f32.mxu0 0.0
      %1375 = vmatmul.mubr.f32.gmra.mrb[0].mxu0 %v1203
      %v1376 = vpop.f32.mrb[0].mxu0
      %v1377 = vadd.f32 %v1199, %v1376
      %v1378 = vpop.f32.mrb[0].mxu0
      %1379 = vmatprep.mubr.f32.mxu0 0.0
      %1380 = vmatmul.mubr.f32.gmra.mrb[0].mxu0 %v1206
      %v1381 = vpop.f32.mrb[0].mxu0
      %v1382 = vadd.f32 %v1199, %v1381
      %v1383 = vpop.f32.mrb[0].mxu0
      %1384 = vmatprep.mubr.f32.mxu0 0.0
      %1385 = vmatmul.mubr.f32.gmra.mrb[0].mxu0 %v1209
      %v1386 = vpop.f32.mrb[0].mxu0
      %v1387 = vadd.f32 %v1199, %v1386
      %v1388 = vpop.f32.mrb[0].mxu0
      %1389 = vmatprep.mubr.f32.mxu0 0.0
      %1390 = vmatmul.mubr.f32.gmra.mrb[0].mxu0 %v1212
      %v1391 = vpop.f32.mrb[0].mxu0
      %v1392 = vadd.f32 %v1199, %v1391
      %v1393 = vpop.f32.mrb[0].mxu0
      %1394 = vmatprep.mubr.f32.mxu0 0.0
      %1395 = vmatmul.mubr.f32.gmra.mrb[0].mxu0 %v1215
      %v1396 = vpop.f32.mrb[0].mxu0
      %v1397 = vadd.f32 %v1199, %v1396
      %v1398 = vpop.f32.mrb[0].mxu0
      %1399 = vmatprep.mubr.f32.mxu0 0.0
      %1400 = vmatmul.mubr.f32.gmra.mrb[0].mxu0 %v1218
      %v1401 = vpop.f32.mrb[0].mxu0
      %v1402 = vadd.f32 %v1199, %v1401
      %v1403 = vpop.f32.mrb[0].mxu0
      %1404 = vmatprep.mubr.f32.mxu0 0.0
      %1405 = vmatmul.mubr.f32.gmra.mrb[0].mxu0 %v1221
      %v1406 = vpop.f32.mrb[0].mxu0
      %v1407 = vadd.f32 %v1199, %v1406
      %v1408 = vpop.f32.mrb[0].mxu0
      %1409 = vmatprep.mubr.f32.mxu0 0.0
      %1410 = vmatmul.mubr.f32.gmra.mrb[0].mxu0 %v1224
      %v1411 = vpop.f32.mrb[0].mxu0
      %v1412 = vadd.f32 %v1199, %v1411
      %v1413 = vpop.f32.mrb[0].mxu0
      %1414 = vmatprep.mubr.f32.mxu0 0.0
      %1415 = vmatmul.mubr.f32.gmra.mrb[0].mxu0 %v1227
      %v1416 = vpop.f32.mrb[0].mxu0
      %v1417 = vadd.f32 %v1199, %v1416
      %v1418 = vpop.f32.mrb[0].mxu0
      %1419 = vmatprep.mubr.f32.mxu0 0.0
      %1420 = vmatmul.mubr.f32.gmra.mrb[0].mxu0 %v1230
      %v1421 = vpop.f32.mrb[0].mxu0
      %v1422 = vadd.f32 %v1199, %v1421
      %v1423 = vpop.f32.mrb[0].mxu0
      %1424 = vmatprep.mubr.f32.mxu0 0.0
      %1425 = vmatmul.mubr.f32.gmra.mrb[0].mxu0 %v1233
      %v1426 = vpop.f32.mrb[0].mxu0
      %v1427 = vadd.f32 %v1199, %v1426
      %v1428 = vpop.f32.mrb[0].mxu0
      %1429 = vmatprep.mubr.f32.mxu0 0.0
      %1430 = vmatmul.mubr.f32.gmra.mrb[0].mxu0 %v1236
      %v1431 = vpop.f32.mrb[0].mxu0
      %v1432 = vadd.f32 %v1199, %v1431
      %v1433 = vpop.f32.mrb[0].mxu0
      %1434 = vmatprep.mubr.f32.mxu0 0.0
      %1435 = vmatmul.mubr.f32.gmra.mrb[0].mxu0 %v1239
      %v1436 = vpop.f32.mrb[0].mxu0
      %v1437 = vadd.f32 %v1199, %v1436
      %v1438 = vpop.f32.mrb[0].mxu0
      %1439 = vmatprep.mubr.f32.mxu0 0.0
      %1440 = vmatmul.mubr.f32.gmra.mrb[0].mxu0 %v1242
      %v1441 = vpop.f32.mrb[0].mxu0
      %v1442 = vadd.f32 %v1199, %v1441
      %v1443 = vpop.f32.mrb[0].mxu0
      %1444 = vmatprep.mubr.f32.mxu0 0.0
      %1445 = vmatmul.mubr.f32.gmra.mrb[0].mxu0 %v1245
      %v1446 = vpop.f32.mrb[0].mxu0
      %v1447 = vadd.f32 %v1199, %v1446
      %v1448 = vpop.f32.mrb[0].mxu0
      %1449 = vmatprep.mubr.f32.mxu0 0.0
      %1450 = vmatmul.mubr.f32.gmra.mrb[0].mxu0 %v1248
      %v1451 = vpop.f32.mrb[0].mxu0
      %v1452 = vadd.f32 %v1199, %v1451
      %v1453 = vpop.f32.mrb[0].mxu0
      %1454 = vmatprep.mubr.f32.mxu0 0.0
      %1455 = vmatmul.mubr.f32.gmra.mrb[0].mxu0 %v1251
      %v1456 = vpop.f32.mrb[0].mxu0
      %v1457 = vadd.f32 %v1199, %v1456
      %v1458 = vpop.f32.mrb[0].mxu0
      %1459 = vmatprep.mubr.f32.mxu0 0.0
      %1460 = vmatmul.mubr.f32.gmra.mrb[0].mxu0 %v1254
      %v1461 = vpop.f32.mrb[0].mxu0
      %v1462 = vadd.f32 %v1199, %v1461
      %v1463 = vpop.f32.mrb[0].mxu0
      %1464 = vmatprep.mubr.f32.mxu0 0.0
      %1465 = vmatmul.mubr.f32.gmra.mrb[0].mxu0 %v1257
      %v1466 = vpop.f32.mrb[0].mxu0
      %v1467 = vadd.f32 %v1199, %v1466
      %v1468 = vpop.f32.mrb[0].mxu0
      %1469 = vmatprep.mubr.f32.mxu0 0.0
      %1470 = vmatmul.mubr.f32.gmra.mrb[0].mxu0 %v1260
      %v1471 = vpop.f32.mrb[0].mxu0
      %v1472 = vadd.f32 %v1199, %v1471
      %v1473 = vpop.f32.mrb[0].mxu0
      %1474 = vmatprep.mubr.f32.mxu0 0.0
      %1475 = vmatmul.mubr.f32.gmra.mrb[0].mxu0 %v1263
      %v1476 = vpop.f32.mrb[0].mxu0
      %v1477 = vadd.f32 %v1199, %v1476
      %v1478 = vpop.f32.mrb[0].mxu0
      %1479 = vmatprep.mubr.f32.mxu0 0.0
      %1480 = vmatmul.mubr.f32.gmra.mrb[0].mxu0 %v1266
      %v1481 = vpop.f32.mrb[0].mxu0
      %v1482 = vadd.f32 %v1199, %v1481
      %v1483 = vpop.f32.mrb[0].mxu0
      %1484 = vmatprep.mubr.f32.mxu0 0.0
      %1485 = vmatmul.mubr.f32.gmra.mrb[0].mxu0 %v1269
      %v1486 = vpop.f32.mrb[0].mxu0
      %v1487 = vadd.f32 %v1199, %v1486
      %v1488 = vpop.f32.mrb[0].mxu0
      %1489 = vmatprep.mubr.f32.mxu0 0.0
      %1490 = vmatmul.mubr.f32.gmra.mrb[0].mxu0 %v1272
      %v1491 = vpop.f32.mrb[0].mxu0
      %v1492 = vadd.f32 %v1199, %v1491
      %v1493 = vpop.f32.mrb[0].mxu0
      %1494 = vmatprep.mubr.f32.mxu0 0.0
      %1495 = vmatmul.mubr.f32.gmra.mrb[0].mxu0 %v1275
      %v1496 = vpop.f32.mrb[0].mxu0
      %v1497 = vadd.f32 %v1199, %v1496
      %v1498 = vpop.f32.mrb[0].mxu0
      %1499 = vmatprep.mubr.f32.mxu0 0.0
      %1500 = vmatmul.mubr.f32.gmra.mrb[0].mxu0 %v1278
      %v1501 = vpop.f32.mrb[0].mxu0
      %v1502 = vadd.f32 %v1199, %v1501
      %v1503 = vpop.f32.mrb[0].mxu0
      %1504 = vmatprep.mubr.f32.mxu0 0.0
      %1505 = vmatmul.mubr.f32.gmra.mrb[0].mxu0 %v1281
      %v1506 = vpop.f32.mrb[0].mxu0
      %v1507 = vadd.f32 %v1199, %v1506
      %v1508 = vpop.f32.mrb[0].mxu0
      %1509 = vmatprep.mubr.f32.mxu0 0.0
      %1510 = vmatmul.mubr.f32.gmra.mrb[0].mxu0 %v1284
      %v1511 = vpop.f32.mrb[0].mxu0
      %v1512 = vadd.f32 %v1199, %v1511
      %v1513 = vpop.f32.mrb[0].mxu0
      %1514 = vmatprep.mubr.f32.mxu0 0.0
      %1515 = vmatmul.mubr.f32.gmra.mrb[0].mxu0 %v1287
      %v1516 = vpop.f32.mrb[0].mxu0
      %v1517 = vadd.f32 %v1199, %v1516
      %v1518 = vpop.f32.mrb[0].mxu0
      %1519 = vmatprep.mubr.f32.mxu0 0.0
      %1520 = vmatmul.mubr.f32.gmra.mrb[0].mxu0 %v1290
      %v1521 = vpop.f32.mrb[0].mxu0
      %v1522 = vadd.f32 %v1199, %v1521
      %v1523 = vpop.f32.mrb[0].mxu0
      %1524 = vmatprep.mubr.f32.mxu0 0.0
      %1525 = vmatmul.mubr.f32.gmra.mrb[0].mxu0 %v1293
      %v1526 = vpop.f32.mrb[0].mxu0
      %v1527 = vadd.f32 %v1199, %v1526
      %v1528 = vpop.f32.mrb[0].mxu0
      %1529 = vmatprep.mubr.f32.mxu0 0.0
      %1530 = vmatmul.mubr.f32.gmra.mrb[0].mxu0 %v1296
      %v1531 = vpop.f32.mrb[0].mxu0
      %v1532 = vadd.f32 %v1199, %v1531
      %v1533 = vpop.f32.mrb[0].mxu0
      %1534 = vmatprep.mubr.f32.mxu0 0.0
      %1535 = vmatmul.mubr.f32.gmra.mrb[0].mxu0 %v1299
      %v1536 = vpop.f32.mrb[0].mxu0
      %v1537 = vadd.f32 %v1199, %v1536
      %v1538 = vpop.f32.mrb[0].mxu0
      %1539 = vmatprep.mubr.f32.mxu0 0.0
      %1540 = vmatmul.mubr.f32.gmra.mrb[0].mxu0 %v1302
      %v1541 = vpop.f32.mrb[0].mxu0
      %v1542 = vadd.f32 %v1199, %v1541
      %v1543 = vpop.f32.mrb[0].mxu0
      %1544 = vmatprep.mubr.f32.mxu0 0.0
      %1545 = vmatmul.mubr.f32.gmra.mrb[0].mxu0 %v1305
      %v1546 = vpop.f32.mrb[0].mxu0
      %v1547 = vadd.f32 %v1199, %v1546
      %v1548 = vpop.f32.mrb[0].mxu0
      %1549 = vmatprep.mubr.f32.mxu0 0.0
      %1550 = vmatmul.mubr.f32.gmra.mrb[0].mxu0 %v1308
      %v1551 = vpop.f32.mrb[0].mxu0
      %v1552 = vadd.f32 %v1199, %v1551
      %v1553 = vpop.f32.mrb[0].mxu0
      %1554 = vdwg.mxu0
      %v1555 = vmax.f32 %v1377, 0.0
      %v1556 = vmax.f32 %v1382, 0.0
      %v1557 = vmax.f32 %v1387, 0.0
      %v1558 = vmax.f32 %v1392, 0.0
      %v1559 = vmax.f32 %v1397, 0.0
      %v1560 = vmax.f32 %v1402, 0.0
      %v1561 = vmax.f32 %v1407, 0.0
      %v1562 = vmax.f32 %v1412, 0.0
      %v1563 = vmax.f32 %v1417, 0.0
      %v1564 = vmax.f32 %v1422, 0.0
      %v1565 = vmax.f32 %v1427, 0.0
      %v1566 = vmax.f32 %v1432, 0.0
      %v1567 = vmax.f32 %v1437, 0.0
      %v1568 = vmax.f32 %v1442, 0.0
      %v1569 = vmax.f32 %v1447, 0.0
      %v1570 = vmax.f32 %v1452, 0.0
      %v1571 = vmax.f32 %v1457, 0.0
      %v1572 = vmax.f32 %v1462, 0.0
      %v1573 = vmax.f32 %v1467, 0.0
      %v1574 = vmax.f32 %v1472, 0.0
      %v1575 = vmax.f32 %v1477, 0.0
      %v1576 = vmax.f32 %v1482, 0.0
      %v1577 = vmax.f32 %v1487, 0.0
      %v1578 = vmax.f32 %v1492, 0.0
      %v1579 = vmax.f32 %v1497, 0.0
      %v1580 = vmax.f32 %v1502, 0.0
      %v1581 = vmax.f32 %v1507, 0.0
      %v1582 = vmax.f32 %v1512, 0.0
      %v1583 = vmax.f32 %v1517, 0.0
      %v1584 = vmax.f32 %v1522, 0.0
      %v1585 = vmax.f32 %v1527, 0.0
      %v1586 = vmax.f32 %v1532, 0.0
      %v1587 = vmax.f32 %v1537, 0.0
      %v1588 = vmax.f32 %v1542, 0.0
      %v1589 = vmax.f32 %v1547, 0.0
      %v1590 = vmax.f32 %v1552, 0.0
      %1591 = vst [vmem:[#allocation3] sm:$0xff] %v1555
      %1592 = vst [vmem:[#allocation3 + $0x8] sm:$0xff] %v1556
      %1593 = vst [vmem:[#allocation3 + $0x10] sm:$0xff] %v1557
      %1594 = vst [vmem:[#allocation3 + $0x18] sm:$0xff] %v1558
      %1595 = vst [vmem:[#allocation3 + $0x20] sm:$0xff] %v1559
      %1596 = vst [vmem:[#allocation3 + $0x28] sm:$0xff] %v1560
      %1597 = vst [vmem:[#allocation3 + $0x30] sm:$0xff] %v1561
      %1598 = vst [vmem:[#allocation3 + $0x38] sm:$0xff] %v1562
      %1599 = vst [vmem:[#allocation3 + $0x40] sm:$0xff] %v1563
      %1600 = vst [vmem:[#allocation3 + $0x48] sm:$0xff] %v1564
      %1601 = vst [vmem:[#allocation3 + $0x50] sm:$0xff] %v1565
      %1602 = vst [vmem:[#allocation3 + $0x58] sm:$0xff] %v1566
      %1603 = vst [vmem:[#allocation3 + $0x60] sm:$0xff] %v1567
      %1604 = vst [vmem:[#allocation3 + $0x68] sm:$0xff] %v1568
      %1605 = vst [vmem:[#allocation3 + $0x70] sm:$0xff] %v1569
      %1606 = vst [vmem:[#allocation3 + $0x78] sm:$0xff] %v1570
      %1607 = vst [vmem:[#allocation3 + $0x80] sm:$0xff] %v1571
      %1608 = vst [vmem:[#allocation3 + $0x88] sm:$0xff] %v1572
      %1609 = vst [vmem:[#allocation3 + $0x90] sm:$0xff] %v1573
      %1610 = vst [vmem:[#allocation3 + $0x98] sm:$0xff] %v1574
      %1611 = vst [vmem:[#allocation3 + $0xa0] sm:$0xff] %v1575
      %1612 = vst [vmem:[#allocation3 + $0xa8] sm:$0xff] %v1576
      %1613 = vst [vmem:[#allocation3 + $0xb0] sm:$0xff] %v1577
      %1614 = vst [vmem:[#allocation3 + $0xb8] sm:$0xff] %v1578
      %1615 = vst [vmem:[#allocation3 + $0xc0] sm:$0xff] %v1579
      %1616 = vst [vmem:[#allocation3 + $0xc8] sm:$0xff] %v1580
      %1617 = vst [vmem:[#allocation3 + $0xd0] sm:$0xff] %v1581
      %1618 = vst [vmem:[#allocation3 + $0xd8] sm:$0xff] %v1582
      %1619 = vst [vmem:[#allocation3 + $0xe0] sm:$0xff] %v1583
      %1620 = vst [vmem:[#allocation3 + $0xe8] sm:$0xff] %v1584
      %1621 = vst [vmem:[#allocation3 + $0xf0] sm:$0xff] %v1585
      %1622 = vst [vmem:[#allocation3 + $0xf8] sm:$0xff] %v1586
      %1623 = vst [vmem:[#allocation3 + $0x100] sm:$0xff] %v1587
      %1624 = vst [vmem:[#allocation3 + $0x108] sm:$0xff] %v1588
      %1625 = vst [vmem:[#allocation3 + $0x110] sm:$0xff] %v1589
      %1626 = vst [vmem:[#allocation3 + $0x118] sm:$0xff] %v1590
      %v1627 = vld [vmem:[#allocation3] sm:$0xff]
      %v1628 = vld [vmem:[#allocation3 + $0x8] sm:$0xff]
      %v1629 = vld [vmem:[#allocation3 + $0x10] sm:$0xff]
      %v1630 = vld [vmem:[#allocation3 + $0x18] sm:$0xff]
      %v1631 = vld [vmem:[#allocation3 + $0x20] sm:$0xff]
      %v1632 = vld [vmem:[#allocation3 + $0x28] sm:$0xff]
      %v1633 = vld [vmem:[#allocation3 + $0x30] sm:$0xff]
      %v1634 = vld [vmem:[#allocation3 + $0x38] sm:$0xff]
      %v1635 = vld [vmem:[#allocation3 + $0x40] sm:$0xff]
      %v1636 = vld [vmem:[#allocation3 + $0x48] sm:$0xff]
      %v1637 = vld [vmem:[#allocation3 + $0x50] sm:$0xff]
      %v1638 = vld [vmem:[#allocation3 + $0x58] sm:$0xff]
      %v1639 = vld [vmem:[#allocation3 + $0x60] sm:$0xff]
      %v1640 = vld [vmem:[#allocation3 + $0x68] sm:$0xff]
      %v1641 = vld [vmem:[#allocation3 + $0x70] sm:$0xff]
      %v1642 = vld [vmem:[#allocation3 + $0x78] sm:$0xff]
      %v1643 = vld [vmem:[#allocation3 + $0x80] sm:$0xff]
      %v1644 = vld [vmem:[#allocation3 + $0x88] sm:$0xff]
      %v1645 = vld [vmem:[#allocation3 + $0x90] sm:$0xff]
      %v1646 = vld [vmem:[#allocation3 + $0x98] sm:$0xff]
      %v1647 = vld [vmem:[#allocation3 + $0xa0] sm:$0xff]
      %v1648 = vld [vmem:[#allocation3 + $0xa8] sm:$0xff]
      %v1649 = vld [vmem:[#allocation3 + $0xb0] sm:$0xff]
      %v1650 = vld [vmem:[#allocation3 + $0xb8] sm:$0xff]
      %v1651 = vld [vmem:[#allocation3 + $0xc0] sm:$0xff]
      %v1652 = vld [vmem:[#allocation3 + $0xc8] sm:$0xff]
      %v1653 = vld [vmem:[#allocation3 + $0xd0] sm:$0xff]
      %v1654 = vld [vmem:[#allocation3 + $0xd8] sm:$0xff]
      %v1655 = vld [vmem:[#allocation3 + $0xe0] sm:$0xff]
      %v1656 = vld [vmem:[#allocation3 + $0xe8] sm:$0xff]
      %v1657 = vld [vmem:[#allocation3 + $0xf0] sm:$0xff]
      %v1658 = vld [vmem:[#allocation3 + $0xf8] sm:$0xff]
      %v1659 = vld [vmem:[#allocation3 + $0x100] sm:$0xff]
      %v1660 = vld [vmem:[#allocation3 + $0x108] sm:$0xff]
      %v1661 = vld [vmem:[#allocation3 + $0x110] sm:$0xff]
      %v1662 = vld [vmem:[#allocation3 + $0x118] sm:$0xff]
      %v1663 = vld [vmem:[%s3] sm:$0xff]
      %v1664 = vld [vmem:[%s3 + $0x8] sm:$0xff]
      %v1665 = vld [vmem:[%s3 + $0x10] sm:$0xff]
      %v1666 = vld [vmem:[%s3 + $0x18] sm:$0xff]
      %v1667 = vld [vmem:[%s3 + $0x20] sm:$0xff]
      %v1668 = vld [vmem:[%s3 + $0x28] sm:$0xff]
      %v1669 = vld [vmem:[%s3 + $0x30] sm:$0xff]
      %v1670 = vld [vmem:[%s3 + $0x38] sm:$0xff]
      %v1671 = vld [vmem:[%s3 + $0x40] sm:$0xff]
      %v1672 = vld [vmem:[%s3 + $0x48] sm:$0xff]
      %v1673 = vld [vmem:[%s3 + $0x50] sm:$0xff]
      %v1674 = vld [vmem:[%s3 + $0x58] sm:$0xff]
      %v1675 = vld [vmem:[%s3 + $0x60] sm:$0xff]
      %v1676 = vld [vmem:[%s3 + $0x68] sm:$0xff]
      %v1677 = vld [vmem:[%s3 + $0x70] sm:$0xff]
      %v1678 = vld [vmem:[%s3 + $0x78] sm:$0xff]
      %v1679 = vld [vmem:[%s3 + $0x80] sm:$0xff]
      %v1680 = vld [vmem:[%s3 + $0x88] sm:$0xff]
      %v1681 = vld [vmem:[%s3 + $0x90] sm:$0xff]
      %v1682 = vld [vmem:[%s3 + $0x98] sm:$0xff]
      %v1683 = vld [vmem:[%s3 + $0xa0] sm:$0xff]
      %v1684 = vld [vmem:[%s3 + $0xa8] sm:$0xff]
      %v1685 = vld [vmem:[%s3 + $0xb0] sm:$0xff]
      %v1686 = vld [vmem:[%s3 + $0xb8] sm:$0xff]
      %v1687 = vld [vmem:[%s3 + $0xc0] sm:$0xff]
      %v1688 = vld [vmem:[%s3 + $0xc8] sm:$0xff]
      %v1689 = vld [vmem:[%s3 + $0xd0] sm:$0xff]
      %v1690 = vld [vmem:[%s3 + $0xd8] sm:$0xff]
      %v1691 = vld [vmem:[%s3 + $0xe0] sm:$0xff]
      %v1692 = vld [vmem:[%s3 + $0xe8] sm:$0xff]
      %v1693 = vld [vmem:[%s3 + $0xf0] sm:$0xff]
      %v1694 = vld [vmem:[%s3 + $0xf8] sm:$0xff]
      %v1695 = vld [vmem:[%s3 + $0x100] sm:$0xff]
      %v1696 = vld [vmem:[%s3 + $0x108] sm:$0xff]
      %v1697 = vld [vmem:[%s3 + $0x110] sm:$0xff]
      %v1698 = vld [vmem:[%s3 + $0x118] sm:$0xff]
      %1700 = vset.pattern.permute.xlu0 0
      %1701 = vperm.xlu0 %1700, %v1663
      %v1702 = vpop.permute.xlu0 %1701
      %1705 = vset.pattern.permute.xlu0 0
      %1706 = vperm.xlu0 %1705, %v1664
      %v1707 = vpop.permute.xlu0 %1706
      %1710 = vset.pattern.permute.xlu0 0
      %1711 = vperm.xlu0 %1710, %v1665
      %v1712 = vpop.permute.xlu0 %1711
      %1715 = vset.pattern.permute.xlu0 0
      %1716 = vperm.xlu0 %1715, %v1666
      %v1717 = vpop.permute.xlu0 %1716
      %1720 = vset.pattern.permute.xlu0 0
      %1721 = vperm.xlu0 %1720, %v1667
      %v1722 = vpop.permute.xlu0 %1721
      %1725 = vset.pattern.permute.xlu0 0
      %1726 = vperm.xlu0 %1725, %v1668
      %v1727 = vpop.permute.xlu0 %1726
      %1730 = vset.pattern.permute.xlu0 0
      %1731 = vperm.xlu0 %1730, %v1669
      %v1732 = vpop.permute.xlu0 %1731
      %1735 = vset.pattern.permute.xlu0 0
      %1736 = vperm.xlu0 %1735, %v1670
      %v1737 = vpop.permute.xlu0 %1736
      %1740 = vset.pattern.permute.xlu0 0
      %1741 = vperm.xlu0 %1740, %v1671
      %v1742 = vpop.permute.xlu0 %1741
      %1745 = vset.pattern.permute.xlu0 0
      %1746 = vperm.xlu0 %1745, %v1672
      %v1747 = vpop.permute.xlu0 %1746
      %1750 = vset.pattern.permute.xlu0 0
      %1751 = vperm.xlu0 %1750, %v1673
      %v1752 = vpop.permute.xlu0 %1751
      %1755 = vset.pattern.permute.xlu0 0
      %1756 = vperm.xlu0 %1755, %v1674
      %v1757 = vpop.permute.xlu0 %1756
      %1760 = vset.pattern.permute.xlu0 0
      %1761 = vperm.xlu0 %1760, %v1675
      %v1762 = vpop.permute.xlu0 %1761
      %1765 = vset.pattern.permute.xlu0 0
      %1766 = vperm.xlu0 %1765, %v1676
      %v1767 = vpop.permute.xlu0 %1766
      %1770 = vset.pattern.permute.xlu0 0
      %1771 = vperm.xlu0 %1770, %v1677
      %v1772 = vpop.permute.xlu0 %1771
      %1775 = vset.pattern.permute.xlu0 0
      %1776 = vperm.xlu0 %1775, %v1678
      %v1777 = vpop.permute.xlu0 %1776
      %1780 = vset.pattern.permute.xlu0 0
      %1781 = vperm.xlu0 %1780, %v1679
      %v1782 = vpop.permute.xlu0 %1781
      %1785 = vset.pattern.permute.xlu0 0
      %1786 = vperm.xlu0 %1785, %v1680
      %v1787 = vpop.permute.xlu0 %1786
      %1790 = vset.pattern.permute.xlu0 0
      %1791 = vperm.xlu0 %1790, %v1681
      %v1792 = vpop.permute.xlu0 %1791
      %1795 = vset.pattern.permute.xlu0 0
      %1796 = vperm.xlu0 %1795, %v1682
      %v1797 = vpop.permute.xlu0 %1796
      %1800 = vset.pattern.permute.xlu0 0
      %1801 = vperm.xlu0 %1800, %v1683
      %v1802 = vpop.permute.xlu0 %1801
      %1805 = vset.pattern.permute.xlu0 0
      %1806 = vperm.xlu0 %1805, %v1684
      %v1807 = vpop.permute.xlu0 %1806
      %1810 = vset.pattern.permute.xlu0 0
      %1811 = vperm.xlu0 %1810, %v1685
      %v1812 = vpop.permute.xlu0 %1811
      %1815 = vset.pattern.permute.xlu0 0
      %1816 = vperm.xlu0 %1815, %v1686
      %v1817 = vpop.permute.xlu0 %1816
      %1820 = vset.pattern.permute.xlu0 0
      %1821 = vperm.xlu0 %1820, %v1687
      %v1822 = vpop.permute.xlu0 %1821
      %1825 = vset.pattern.permute.xlu0 0
      %1826 = vperm.xlu0 %1825, %v1688
      %v1827 = vpop.permute.xlu0 %1826
      %1830 = vset.pattern.permute.xlu0 0
      %1831 = vperm.xlu0 %1830, %v1689
      %v1832 = vpop.permute.xlu0 %1831
      %1835 = vset.pattern.permute.xlu0 0
      %1836 = vperm.xlu0 %1835, %v1690
      %v1837 = vpop.permute.xlu0 %1836
      %1840 = vset.pattern.permute.xlu0 0
      %1841 = vperm.xlu0 %1840, %v1691
      %v1842 = vpop.permute.xlu0 %1841
      %1845 = vset.pattern.permute.xlu0 0
      %1846 = vperm.xlu0 %1845, %v1692
      %v1847 = vpop.permute.xlu0 %1846
      %1850 = vset.pattern.permute.xlu0 0
      %1851 = vperm.xlu0 %1850, %v1693
      %v1852 = vpop.permute.xlu0 %1851
      %1855 = vset.pattern.permute.xlu0 0
      %1856 = vperm.xlu0 %1855, %v1694
      %v1857 = vpop.permute.xlu0 %1856
      %1860 = vset.pattern.permute.xlu0 0
      %1861 = vperm.xlu0 %1860, %v1695
      %v1862 = vpop.permute.xlu0 %1861
      %1865 = vset.pattern.permute.xlu0 0
      %1866 = vperm.xlu0 %1865, %v1696
      %v1867 = vpop.permute.xlu0 %1866
      %1870 = vset.pattern.permute.xlu0 0
      %1871 = vperm.xlu0 %1870, %v1697
      %v1872 = vpop.permute.xlu0 %1871
      %1875 = vset.pattern.permute.xlu0 0
      %1876 = vperm.xlu0 %1875, %v1698
      %v1877 = vpop.permute.xlu0 %1876
      %v1879 = vmul.f32 %v1627, %v1702
      %v1880 = vmul.f32 %v1628, %v1707
      %v1881 = vmul.f32 %v1629, %v1712
      %v1882 = vmul.f32 %v1630, %v1717
      %v1883 = vmul.f32 %v1631, %v1722
      %v1884 = vmul.f32 %v1632, %v1727
      %v1885 = vmul.f32 %v1633, %v1732
      %v1886 = vmul.f32 %v1634, %v1737
      %v1887 = vmul.f32 %v1635, %v1742
      %v1888 = vmul.f32 %v1636, %v1747
      %v1889 = vmul.f32 %v1637, %v1752
      %v1890 = vmul.f32 %v1638, %v1757
      %v1891 = vmul.f32 %v1639, %v1762
      %v1892 = vmul.f32 %v1640, %v1767
      %v1893 = vmul.f32 %v1641, %v1772
      %v1894 = vmul.f32 %v1642, %v1777
      %v1895 = vmul.f32 %v1643, %v1782
      %v1896 = vmul.f32 %v1644, %v1787
      %v1897 = vmul.f32 %v1645, %v1792
      %v1898 = vmul.f32 %v1646, %v1797
      %v1899 = vmul.f32 %v1647, %v1802
      %v1900 = vmul.f32 %v1648, %v1807
      %v1901 = vmul.f32 %v1649, %v1812
      %v1902 = vmul.f32 %v1650, %v1817
      %v1903 = vmul.f32 %v1651, %v1822
      %v1904 = vmul.f32 %v1652, %v1827
      %v1905 = vmul.f32 %v1653, %v1832
      %v1906 = vmul.f32 %v1654, %v1837
      %v1907 = vmul.f32 %v1655, %v1842
      %v1908 = vmul.f32 %v1656, %v1847
      %v1909 = vmul.f32 %v1657, %v1852
      %v1910 = vmul.f32 %v1658, %v1857
      %v1911 = vmul.f32 %v1659, %v1862
      %v1912 = vmul.f32 %v1660, %v1867
      %v1913 = vmul.f32 %v1661, %v1872
      %v1914 = vmul.f32 %v1662, %v1877
      %1915 = vst [vmem:[#allocation4 + $0x8] sm:$0xff] %v1879
      %1916 = vst [vmem:[#allocation4 + $0x18] sm:$0xff] %v1880
      %1917 = vst [vmem:[#allocation4 + $0x28] sm:$0xff] %v1881
      %1918 = vst [vmem:[#allocation4 + $0x38] sm:$0xff] %v1882
      %1919 = vst [vmem:[#allocation4 + $0x48] sm:$0xff] %v1883
      %1920 = vst [vmem:[#allocation4 + $0x58] sm:$0xff] %v1884
      %1921 = vst [vmem:[#allocation4 + $0x68] sm:$0xff] %v1885
      %1922 = vst [vmem:[#allocation4 + $0x78] sm:$0xff] %v1886
      %1923 = vst [vmem:[#allocation4 + $0x88] sm:$0xff] %v1887
      %1924 = vst [vmem:[#allocation4 + $0x98] sm:$0xff] %v1888
      %1925 = vst [vmem:[#allocation4 + $0xa8] sm:$0xff] %v1889
      %1926 = vst [vmem:[#allocation4 + $0xb8] sm:$0xff] %v1890
      %1927 = vst [vmem:[#allocation4 + $0xc8] sm:$0xff] %v1891
      %1928 = vst [vmem:[#allocation4 + $0xd8] sm:$0xff] %v1892
      %1929 = vst [vmem:[#allocation4 + $0xe8] sm:$0xff] %v1893
      %1930 = vst [vmem:[#allocation4 + $0xf8] sm:$0xff] %v1894
      %1931 = vst [vmem:[#allocation4 + $0x108] sm:$0xff] %v1895
      %1932 = vst [vmem:[#allocation4 + $0x118] sm:$0xff] %v1896
      %1933 = vst [vmem:[#allocation4 + $0x128] sm:$0xff] %v1897
      %1934 = vst [vmem:[#allocation4 + $0x138] sm:$0xff] %v1898
      %1935 = vst [vmem:[#allocation4 + $0x148] sm:$0xff] %v1899
      %1936 = vst [vmem:[#allocation4 + $0x158] sm:$0xff] %v1900
      %1937 = vst [vmem:[#allocation4 + $0x168] sm:$0xff] %v1901
      %1938 = vst [vmem:[#allocation4 + $0x178] sm:$0xff] %v1902
      %1939 = vst [vmem:[#allocation4 + $0x188] sm:$0xff] %v1903
      %1940 = vst [vmem:[#allocation4 + $0x198] sm:$0xff] %v1904
      %1941 = vst [vmem:[#allocation4 + $0x1a8] sm:$0xff] %v1905
      %1942 = vst [vmem:[#allocation4 + $0x1b8] sm:$0xff] %v1906
      %1943 = vst [vmem:[#allocation4 + $0x1c8] sm:$0xff] %v1907
      %1944 = vst [vmem:[#allocation4 + $0x1d8] sm:$0xff] %v1908
      %1945 = vst [vmem:[#allocation4 + $0x1e8] sm:$0xff] %v1909
      %1946 = vst [vmem:[#allocation4 + $0x1f8] sm:$0xff] %v1910
      %1947 = vst [vmem:[#allocation4 + $0x208] sm:$0xff] %v1911
      %1948 = vst [vmem:[#allocation4 + $0x218] sm:$0xff] %v1912
      %1949 = vst [vmem:[#allocation4 + $0x228] sm:$0xff] %v1913
      %1950 = vst [vmem:[#allocation4 + $0x238] sm:$0xff] %v1914
      %v1951 = vld [vmem:[#allocation3] sm:$0xff]
      %v1952 = vld [vmem:[#allocation3 + $0x8] sm:$0xff]
      %v1953 = vld [vmem:[#allocation3 + $0x10] sm:$0xff]
      %v1954 = vld [vmem:[#allocation3 + $0x18] sm:$0xff]
      %v1955 = vld [vmem:[#allocation3 + $0x20] sm:$0xff]
      %v1956 = vld [vmem:[#allocation3 + $0x28] sm:$0xff]
      %v1957 = vld [vmem:[#allocation3 + $0x30] sm:$0xff]
      %v1958 = vld [vmem:[#allocation3 + $0x38] sm:$0xff]
      %v1959 = vld [vmem:[#allocation3 + $0x40] sm:$0xff]
      %v1960 = vld [vmem:[#allocation3 + $0x48] sm:$0xff]
      %v1961 = vld [vmem:[#allocation3 + $0x50] sm:$0xff]
      %v1962 = vld [vmem:[#allocation3 + $0x58] sm:$0xff]
      %v1963 = vld [vmem:[#allocation3 + $0x60] sm:$0xff]
      %v1964 = vld [vmem:[#allocation3 + $0x68] sm:$0xff]
      %v1965 = vld [vmem:[#allocation3 + $0x70] sm:$0xff]
      %v1966 = vld [vmem:[#allocation3 + $0x78] sm:$0xff]
      %v1967 = vld [vmem:[#allocation3 + $0x80] sm:$0xff]
      %v1968 = vld [vmem:[#allocation3 + $0x88] sm:$0xff]
      %v1969 = vld [vmem:[#allocation3 + $0x90] sm:$0xff]
      %v1970 = vld [vmem:[#allocation3 + $0x98] sm:$0xff]
      %v1971 = vld [vmem:[#allocation3 + $0xa0] sm:$0xff]
      %v1972 = vld [vmem:[#allocation3 + $0xa8] sm:$0xff]
      %v1973 = vld [vmem:[#allocation3 + $0xb0] sm:$0xff]
      %v1974 = vld [vmem:[#allocation3 + $0xb8] sm:$0xff]
      %v1975 = vld [vmem:[#allocation3 + $0xc0] sm:$0xff]
      %v1976 = vld [vmem:[#allocation3 + $0xc8] sm:$0xff]
      %v1977 = vld [vmem:[#allocation3 + $0xd0] sm:$0xff]
      %v1978 = vld [vmem:[#allocation3 + $0xd8] sm:$0xff]
      %v1979 = vld [vmem:[#allocation3 + $0xe0] sm:$0xff]
      %v1980 = vld [vmem:[#allocation3 + $0xe8] sm:$0xff]
      %v1981 = vld [vmem:[#allocation3 + $0xf0] sm:$0xff]
      %v1982 = vld [vmem:[#allocation3 + $0xf8] sm:$0xff]
      %v1983 = vld [vmem:[#allocation3 + $0x100] sm:$0xff]
      %v1984 = vld [vmem:[#allocation3 + $0x108] sm:$0xff]
      %v1985 = vld [vmem:[#allocation3 + $0x110] sm:$0xff]
      %v1986 = vld [vmem:[#allocation3 + $0x118] sm:$0x7f]
      %v1987 = vld [vmem:[%s4] sm:$0xff]
      %v1988 = vld [vmem:[%s4 + $0x8] sm:$0xff]
      %v1989 = vld [vmem:[%s4 + $0x10] sm:$0xff]
      %v1990 = vld [vmem:[%s4 + $0x18] sm:$0xff]
      %v1991 = vld [vmem:[%s4 + $0x20] sm:$0xff]
      %v1992 = vld [vmem:[%s4 + $0x28] sm:$0xff]
      %v1993 = vld [vmem:[%s4 + $0x30] sm:$0xff]
      %v1994 = vld [vmem:[%s4 + $0x38] sm:$0xff]
      %v1995 = vld [vmem:[%s4 + $0x40] sm:$0xff]
      %v1996 = vld [vmem:[%s4 + $0x48] sm:$0xff]
      %v1997 = vld [vmem:[%s4 + $0x50] sm:$0xff]
      %v1998 = vld [vmem:[%s4 + $0x58] sm:$0xff]
      %v1999 = vld [vmem:[%s4 + $0x60] sm:$0xff]
      %v2000 = vld [vmem:[%s4 + $0x68] sm:$0xff]
      %v2001 = vld [vmem:[%s4 + $0x70] sm:$0xff]
      %v2002 = vld [vmem:[%s4 + $0x78] sm:$0xff]
      %v2003 = vld [vmem:[%s4 + $0x80] sm:$0xff]
      %v2004 = vld [vmem:[%s4 + $0x88] sm:$0xff]
      %v2005 = vld [vmem:[%s4 + $0x90] sm:$0xff]
      %v2006 = vld [vmem:[%s4 + $0x98] sm:$0xff]
      %v2007 = vld [vmem:[%s4 + $0xa0] sm:$0xff]
      %v2008 = vld [vmem:[%s4 + $0xa8] sm:$0xff]
      %v2009 = vld [vmem:[%s4 + $0xb0] sm:$0xff]
      %v2010 = vld [vmem:[%s4 + $0xb8] sm:$0xff]
      %v2011 = vld [vmem:[%s4 + $0xc0] sm:$0xff]
      %v2012 = vld [vmem:[%s4 + $0xc8] sm:$0xff]
      %v2013 = vld [vmem:[%s4 + $0xd0] sm:$0xff]
      %v2014 = vld [vmem:[%s4 + $0xd8] sm:$0xff]
      %v2015 = vld [vmem:[%s4 + $0xe0] sm:$0xff]
      %v2016 = vld [vmem:[%s4 + $0xe8] sm:$0xff]
      %v2017 = vld [vmem:[%s4 + $0xf0] sm:$0xff]
      %v2018 = vld [vmem:[%s4 + $0xf8] sm:$0xff]
      %v2019 = vld [vmem:[%s4 + $0x100] sm:$0xff]
      %v2020 = vld [vmem:[%s4 + $0x108] sm:$0xff]
      %v2021 = vld [vmem:[%s4 + $0x110] sm:$0xff]
      %v2022 = vld [vmem:[%s4 + $0x118] sm:$0x7f]
      %2024 = vset.pattern.permute.xlu0 0
      %2025 = vperm.xlu0 %2024, %v1987
      %v2026 = vpop.permute.xlu0 %2025
      %2029 = vset.pattern.permute.xlu0 0
      %2030 = vperm.xlu0 %2029, %v1988
      %v2031 = vpop.permute.xlu0 %2030
      %2034 = vset.pattern.permute.xlu0 0
      %2035 = vperm.xlu0 %2034, %v1989
      %v2036 = vpop.permute.xlu0 %2035
      %2039 = vset.pattern.permute.xlu0 0
      %2040 = vperm.xlu0 %2039, %v1990
      %v2041 = vpop.permute.xlu0 %2040
      %2044 = vset.pattern.permute.xlu0 0
      %2045 = vperm.xlu0 %2044, %v1991
      %v2046 = vpop.permute.xlu0 %2045
      %2049 = vset.pattern.permute.xlu0 0
      %2050 = vperm.xlu0 %2049, %v1992
      %v2051 = vpop.permute.xlu0 %2050
      %2054 = vset.pattern.permute.xlu0 0
      %2055 = vperm.xlu0 %2054, %v1993
      %v2056 = vpop.permute.xlu0 %2055
      %2059 = vset.pattern.permute.xlu0 0
      %2060 = vperm.xlu0 %2059, %v1994
      %v2061 = vpop.permute.xlu0 %2060
      %2064 = vset.pattern.permute.xlu0 0
      %2065 = vperm.xlu0 %2064, %v1995
      %v2066 = vpop.permute.xlu0 %2065
      %2069 = vset.pattern.permute.xlu0 0
      %2070 = vperm.xlu0 %2069, %v1996
      %v2071 = vpop.permute.xlu0 %2070
      %2074 = vset.pattern.permute.xlu0 0
      %2075 = vperm.xlu0 %2074, %v1997
      %v2076 = vpop.permute.xlu0 %2075
      %2079 = vset.pattern.permute.xlu0 0
      %2080 = vperm.xlu0 %2079, %v1998
      %v2081 = vpop.permute.xlu0 %2080
      %2084 = vset.pattern.permute.xlu0 0
      %2085 = vperm.xlu0 %2084, %v1999
      %v2086 = vpop.permute.xlu0 %2085
      %2089 = vset.pattern.permute.xlu0 0
      %2090 = vperm.xlu0 %2089, %v2000
      %v2091 = vpop.permute.xlu0 %2090
      %2094 = vset.pattern.permute.xlu0 0
      %2095 = vperm.xlu0 %2094, %v2001
      %v2096 = vpop.permute.xlu0 %2095
      %2099 = vset.pattern.permute.xlu0 0
      %2100 = vperm.xlu0 %2099, %v2002
      %v2101 = vpop.permute.xlu0 %2100
      %2104 = vset.pattern.permute.xlu0 0
      %2105 = vperm.xlu0 %2104, %v2003
      %v2106 = vpop.permute.xlu0 %2105
      %2109 = vset.pattern.permute.xlu0 0
      %2110 = vperm.xlu0 %2109, %v2004
      %v2111 = vpop.permute.xlu0 %2110
      %2114 = vset.pattern.permute.xlu0 0
      %2115 = vperm.xlu0 %2114, %v2005
      %v2116 = vpop.permute.xlu0 %2115
      %2119 = vset.pattern.permute.xlu0 0
      %2120 = vperm.xlu0 %2119, %v2006
      %v2121 = vpop.permute.xlu0 %2120
      %2124 = vset.pattern.permute.xlu0 0
      %2125 = vperm.xlu0 %2124, %v2007
      %v2126 = vpop.permute.xlu0 %2125
      %2129 = vset.pattern.permute.xlu0 0
      %2130 = vperm.xlu0 %2129, %v2008
      %v2131 = vpop.permute.xlu0 %2130
      %2134 = vset.pattern.permute.xlu0 0
      %2135 = vperm.xlu0 %2134, %v2009
      %v2136 = vpop.permute.xlu0 %2135
      %2139 = vset.pattern.permute.xlu0 0
      %2140 = vperm.xlu0 %2139, %v2010
      %v2141 = vpop.permute.xlu0 %2140
      %2144 = vset.pattern.permute.xlu0 0
      %2145 = vperm.xlu0 %2144, %v2011
      %v2146 = vpop.permute.xlu0 %2145
      %2149 = vset.pattern.permute.xlu0 0
      %2150 = vperm.xlu0 %2149, %v2012
      %v2151 = vpop.permute.xlu0 %2150
      %2154 = vset.pattern.permute.xlu0 0
      %2155 = vperm.xlu0 %2154, %v2013
      %v2156 = vpop.permute.xlu0 %2155
      %2159 = vset.pattern.permute.xlu0 0
      %2160 = vperm.xlu0 %2159, %v2014
      %v2161 = vpop.permute.xlu0 %2160
      %2164 = vset.pattern.permute.xlu0 0
      %2165 = vperm.xlu0 %2164, %v2015
      %v2166 = vpop.permute.xlu0 %2165
      %2169 = vset.pattern.permute.xlu0 0
      %2170 = vperm.xlu0 %2169, %v2016
      %v2171 = vpop.permute.xlu0 %2170
      %2174 = vset.pattern.permute.xlu0 0
      %2175 = vperm.xlu0 %2174, %v2017
      %v2176 = vpop.permute.xlu0 %2175
      %2179 = vset.pattern.permute.xlu0 0
      %2180 = vperm.xlu0 %2179, %v2018
      %v2181 = vpop.permute.xlu0 %2180
      %2184 = vset.pattern.permute.xlu0 0
      %2185 = vperm.xlu0 %2184, %v2019
      %v2186 = vpop.permute.xlu0 %2185
      %2189 = vset.pattern.permute.xlu0 0
      %2190 = vperm.xlu0 %2189, %v2020
      %v2191 = vpop.permute.xlu0 %2190
      %2194 = vset.pattern.permute.xlu0 0
      %2195 = vperm.xlu0 %2194, %v2021
      %v2196 = vpop.permute.xlu0 %2195
      %2199 = vset.pattern.permute.xlu0 0
      %2200 = vperm.xlu0 %2199, %v2022
      %v2201 = vpop.permute.xlu0 %2200
      %v2203 = vmul.f32 %v1951, %v2026
      %v2204 = vmul.f32 %v1952, %v2031
      %v2205 = vmul.f32 %v1953, %v2036
      %v2206 = vmul.f32 %v1954, %v2041
      %v2207 = vmul.f32 %v1955, %v2046
      %v2208 = vmul.f32 %v1956, %v2051
      %v2209 = vmul.f32 %v1957, %v2056
      %v2210 = vmul.f32 %v1958, %v2061
      %v2211 = vmul.f32 %v1959, %v2066
      %v2212 = vmul.f32 %v1960, %v2071
      %v2213 = vmul.f32 %v1961, %v2076
      %v2214 = vmul.f32 %v1962, %v2081
      %v2215 = vmul.f32 %v1963, %v2086
      %v2216 = vmul.f32 %v1964, %v2091
      %v2217 = vmul.f32 %v1965, %v2096
      %v2218 = vmul.f32 %v1966, %v2101
      %v2219 = vmul.f32 %v1967, %v2106
      %v2220 = vmul.f32 %v1968, %v2111
      %v2221 = vmul.f32 %v1969, %v2116
      %v2222 = vmul.f32 %v1970, %v2121
      %v2223 = vmul.f32 %v1971, %v2126
      %v2224 = vmul.f32 %v1972, %v2131
      %v2225 = vmul.f32 %v1973, %v2136
      %v2226 = vmul.f32 %v1974, %v2141
      %v2227 = vmul.f32 %v1975, %v2146
      %v2228 = vmul.f32 %v1976, %v2151
      %v2229 = vmul.f32 %v1977, %v2156
      %v2230 = vmul.f32 %v1978, %v2161
      %v2231 = vmul.f32 %v1979, %v2166
      %v2232 = vmul.f32 %v1980, %v2171
      %v2233 = vmul.f32 %v1981, %v2176
      %v2234 = vmul.f32 %v1982, %v2181
      %v2235 = vmul.f32 %v1983, %v2186
      %v2236 = vmul.f32 %v1984, %v2191
      %v2237 = vmul.f32 %v1985, %v2196
      %v2238 = vmul.f32 %v1986, %v2201
      %vm2275 = vcmask 1040384
      %v2276 = vrot.slane %v2203, 7
      %v2277 = vrot.slane %v2204, 7
      %v2278 = vsel %vm2275, %v2276, %v2277
      %v2279 = vrot.slane %v2205, 7
      %v2280 = vsel %vm2275, %v2277, %v2279
      %v2281 = vrot.slane %v2206, 7
      %v2282 = vsel %vm2275, %v2279, %v2281
      %v2283 = vrot.slane %v2207, 7
      %v2284 = vsel %vm2275, %v2281, %v2283
      %v2285 = vrot.slane %v2208, 7
      %v2286 = vsel %vm2275, %v2283, %v2285
      %v2287 = vrot.slane %v2209, 7
      %v2288 = vsel %vm2275, %v2285, %v2287
      %v2289 = vrot.slane %v2210, 7
      %v2290 = vsel %vm2275, %v2287, %v2289
      %v2291 = vrot.slane %v2211, 7
      %v2292 = vsel %vm2275, %v2289, %v2291
      %v2293 = vrot.slane %v2212, 7
      %v2294 = vsel %vm2275, %v2291, %v2293
      %v2295 = vrot.slane %v2213, 7
      %v2296 = vsel %vm2275, %v2293, %v2295
      %v2297 = vrot.slane %v2214, 7
      %v2298 = vsel %vm2275, %v2295, %v2297
      %v2299 = vrot.slane %v2215, 7
      %v2300 = vsel %vm2275, %v2297, %v2299
      %v2301 = vrot.slane %v2216, 7
      %v2302 = vsel %vm2275, %v2299, %v2301
      %v2303 = vrot.slane %v2217, 7
      %v2304 = vsel %vm2275, %v2301, %v2303
      %v2305 = vrot.slane %v2218, 7
      %v2306 = vsel %vm2275, %v2303, %v2305
      %v2307 = vrot.slane %v2219, 7
      %v2308 = vsel %vm2275, %v2305, %v2307
      %v2309 = vrot.slane %v2220, 7
      %v2310 = vsel %vm2275, %v2307, %v2309
      %v2311 = vrot.slane %v2221, 7
      %v2312 = vsel %vm2275, %v2309, %v2311
      %v2313 = vrot.slane %v2222, 7
      %v2314 = vsel %vm2275, %v2311, %v2313
      %v2315 = vrot.slane %v2223, 7
      %v2316 = vsel %vm2275, %v2313, %v2315
      %v2317 = vrot.slane %v2224, 7
      %v2318 = vsel %vm2275, %v2315, %v2317
      %v2319 = vrot.slane %v2225, 7
      %v2320 = vsel %vm2275, %v2317, %v2319
      %v2321 = vrot.slane %v2226, 7
      %v2322 = vsel %vm2275, %v2319, %v2321
      %v2323 = vrot.slane %v2227, 7
      %v2324 = vsel %vm2275, %v2321, %v2323
      %v2325 = vrot.slane %v2228, 7
      %v2326 = vsel %vm2275, %v2323, %v2325
      %v2327 = vrot.slane %v2229, 7
      %v2328 = vsel %vm2275, %v2325, %v2327
      %v2329 = vrot.slane %v2230, 7
      %v2330 = vsel %vm2275, %v2327, %v2329
      %v2331 = vrot.slane %v2231, 7
      %v2332 = vsel %vm2275, %v2329, %v2331
      %v2333 = vrot.slane %v2232, 7
      %v2334 = vsel %vm2275, %v2331, %v2333
      %v2335 = vrot.slane %v2233, 7
      %v2336 = vsel %vm2275, %v2333, %v2335
      %v2337 = vrot.slane %v2234, 7
      %v2338 = vsel %vm2275, %v2335, %v2337
      %v2339 = vrot.slane %v2235, 7
      %v2340 = vsel %vm2275, %v2337, %v2339
      %v2341 = vrot.slane %v2236, 7
      %v2342 = vsel %vm2275, %v2339, %v2341
      %v2343 = vrot.slane %v2237, 7
      %v2344 = vsel %vm2275, %v2341, %v2343
      %v2345 = vrot.slane %v2238, 7
      %v2346 = vsel %vm2275, %v2343, %v2345
      %2383 = vst [vmem:[#allocation4] sm:$0xfe] %v2276
      %2384 = vst [vmem:[#allocation4 + $0x10] sm:$0xff] %v2278
      %2385 = vst [vmem:[#allocation4 + $0x20] sm:$0xff] %v2280
      %2386 = vst [vmem:[#allocation4 + $0x30] sm:$0xff] %v2282
      %2387 = vst [vmem:[#allocation4 + $0x40] sm:$0xff] %v2284
      %2388 = vst [vmem:[#allocation4 + $0x50] sm:$0xff] %v2286
      %2389 = vst [vmem:[#allocation4 + $0x60] sm:$0xff] %v2288
      %2390 = vst [vmem:[#allocation4 + $0x70] sm:$0xff] %v2290
      %2391 = vst [vmem:[#allocation4 + $0x80] sm:$0xff] %v2292
      %2392 = vst [vmem:[#allocation4 + $0x90] sm:$0xff] %v2294
      %2393 = vst [vmem:[#allocation4 + $0xa0] sm:$0xff] %v2296
      %2394 = vst [vmem:[#allocation4 + $0xb0] sm:$0xff] %v2298
      %2395 = vst [vmem:[#allocation4 + $0xc0] sm:$0xff] %v2300
      %2396 = vst [vmem:[#allocation4 + $0xd0] sm:$0xff] %v2302
      %2397 = vst [vmem:[#allocation4 + $0xe0] sm:$0xff] %v2304
      %2398 = vst [vmem:[#allocation4 + $0xf0] sm:$0xff] %v2306
      %2399 = vst [vmem:[#allocation4 + $0x100] sm:$0xff] %v2308
      %2400 = vst [vmem:[#allocation4 + $0x110] sm:$0xff] %v2310
      %2401 = vst [vmem:[#allocation4 + $0x120] sm:$0xff] %v2312
      %2402 = vst [vmem:[#allocation4 + $0x130] sm:$0xff] %v2314
      %2403 = vst [vmem:[#allocation4 + $0x140] sm:$0xff] %v2316
      %2404 = vst [vmem:[#allocation4 + $0x150] sm:$0xff] %v2318
      %2405 = vst [vmem:[#allocation4 + $0x160] sm:$0xff] %v2320
      %2406 = vst [vmem:[#allocation4 + $0x170] sm:$0xff] %v2322
      %2407 = vst [vmem:[#allocation4 + $0x180] sm:$0xff] %v2324
      %2408 = vst [vmem:[#allocation4 + $0x190] sm:$0xff] %v2326
      %2409 = vst [vmem:[#allocation4 + $0x1a0] sm:$0xff] %v2328
      %2410 = vst [vmem:[#allocation4 + $0x1b0] sm:$0xff] %v2330
      %2411 = vst [vmem:[#allocation4 + $0x1c0] sm:$0xff] %v2332
      %2412 = vst [vmem:[#allocation4 + $0x1d0] sm:$0xff] %v2334
      %2413 = vst [vmem:[#allocation4 + $0x1e0] sm:$0xff] %v2336
      %2414 = vst [vmem:[#allocation4 + $0x1f0] sm:$0xff] %v2338
      %2415 = vst [vmem:[#allocation4 + $0x200] sm:$0xff] %v2340
      %2416 = vst [vmem:[#allocation4 + $0x210] sm:$0xff] %v2342
      %2417 = vst [vmem:[#allocation4 + $0x220] sm:$0xff] %v2344
      %2418 = vst [vmem:[#allocation4 + $0x230] sm:$0xff] %v2346
      %2419 = vst [vmem:[#allocation4] sm:$0x1] 0.0
      %v2420 = vld [vmem:[#allocation4] sm:$0xff]
      %v2421 = vld [vmem:[#allocation4 + $0x8] sm:$0xff]
      %v2422 = vld [vmem:[#allocation4 + $0x10] sm:$0xff]
      %v2423 = vld [vmem:[#allocation4 + $0x18] sm:$0xff]
      %v2424 = vld [vmem:[#allocation4 + $0x20] sm:$0xff]
      %v2425 = vld [vmem:[#allocation4 + $0x28] sm:$0xff]
      %v2426 = vld [vmem:[#allocation4 + $0x30] sm:$0xff]
      %v2427 = vld [vmem:[#allocation4 + $0x38] sm:$0xff]
      %v2428 = vld [vmem:[#allocation4 + $0x40] sm:$0xff]
      %v2429 = vld [vmem:[#allocation4 + $0x48] sm:$0xff]
      %v2430 = vld [vmem:[#allocation4 + $0x50] sm:$0xff]
      %v2431 = vld [vmem:[#allocation4 + $0x58] sm:$0xff]
      %v2432 = vld [vmem:[#allocation4 + $0x60] sm:$0xff]
      %v2433 = vld [vmem:[#allocation4 + $0x68] sm:$0xff]
      %v2434 = vld [vmem:[#allocation4 + $0x70] sm:$0xff]
      %v2435 = vld [vmem:[#allocation4 + $0x78] sm:$0xff]
      %v2436 = vld [vmem:[#allocation4 + $0x80] sm:$0xff]
      %v2437 = vld [vmem:[#allocation4 + $0x88] sm:$0xff]
      %v2438 = vld [vmem:[#allocation4 + $0x90] sm:$0xff]
      %v2439 = vld [vmem:[#allocation4 + $0x98] sm:$0xff]
      %v2440 = vld [vmem:[#allocation4 + $0xa0] sm:$0xff]
      %v2441 = vld [vmem:[#allocation4 + $0xa8] sm:$0xff]
      %v2442 = vld [vmem:[#allocation4 + $0xb0] sm:$0xff]
      %v2443 = vld [vmem:[#allocation4 + $0xb8] sm:$0xff]
      %v2444 = vld [vmem:[#allocation4 + $0xc0] sm:$0xff]
      %v2445 = vld [vmem:[#allocation4 + $0xc8] sm:$0xff]
      %v2446 = vld [vmem:[#allocation4 + $0xd0] sm:$0xff]
      %v2447 = vld [vmem:[#allocation4 + $0xd8] sm:$0xff]
      %v2448 = vld [vmem:[#allocation4 + $0xe0] sm:$0xff]
      %v2449 = vld [vmem:[#allocation4 + $0xe8] sm:$0xff]
      %v2450 = vld [vmem:[#allocation4 + $0xf0] sm:$0xff]
      %v2451 = vld [vmem:[#allocation4 + $0xf8] sm:$0xff]
      %v2452 = vld [vmem:[#allocation4 + $0x100] sm:$0xff]
      %v2453 = vld [vmem:[#allocation4 + $0x108] sm:$0xff]
      %v2454 = vld [vmem:[#allocation4 + $0x110] sm:$0xff]
      %v2455 = vld [vmem:[#allocation4 + $0x118] sm:$0xff]
      %v2456 = vld [vmem:[#allocation4 + $0x120] sm:$0xff]
      %v2457 = vld [vmem:[#allocation4 + $0x128] sm:$0xff]
      %v2458 = vld [vmem:[#allocation4 + $0x130] sm:$0xff]
      %v2459 = vld [vmem:[#allocation4 + $0x138] sm:$0xff]
      %v2460 = vld [vmem:[#allocation4 + $0x140] sm:$0xff]
      %v2461 = vld [vmem:[#allocation4 + $0x148] sm:$0xff]
      %v2462 = vld [vmem:[#allocation4 + $0x150] sm:$0xff]
      %v2463 = vld [vmem:[#allocation4 + $0x158] sm:$0xff]
      %v2464 = vld [vmem:[#allocation4 + $0x160] sm:$0xff]
      %v2465 = vld [vmem:[#allocation4 + $0x168] sm:$0xff]
      %v2466 = vld [vmem:[#allocation4 + $0x170] sm:$0xff]
      %v2467 = vld [vmem:[#allocation4 + $0x178] sm:$0xff]
      %v2468 = vld [vmem:[#allocation4 + $0x180] sm:$0xff]
      %v2469 = vld [vmem:[#allocation4 + $0x188] sm:$0xff]
      %v2470 = vld [vmem:[#allocation4 + $0x190] sm:$0xff]
      %v2471 = vld [vmem:[#allocation4 + $0x198] sm:$0xff]
      %v2472 = vld [vmem:[#allocation4 + $0x1a0] sm:$0xff]
      %v2473 = vld [vmem:[#allocation4 + $0x1a8] sm:$0xff]
      %v2474 = vld [vmem:[#allocation4 + $0x1b0] sm:$0xff]
      %v2475 = vld [vmem:[#allocation4 + $0x1b8] sm:$0xff]
      %v2476 = vld [vmem:[#allocation4 + $0x1c0] sm:$0xff]
      %v2477 = vld [vmem:[#allocation4 + $0x1c8] sm:$0xff]
      %v2478 = vld [vmem:[#allocation4 + $0x1d0] sm:$0xff]
      %v2479 = vld [vmem:[#allocation4 + $0x1d8] sm:$0xff]
      %v2480 = vld [vmem:[#allocation4 + $0x1e0] sm:$0xff]
      %v2481 = vld [vmem:[#allocation4 + $0x1e8] sm:$0xff]
      %v2482 = vld [vmem:[#allocation4 + $0x1f0] sm:$0xff]
      %v2483 = vld [vmem:[#allocation4 + $0x1f8] sm:$0xff]
      %v2484 = vld [vmem:[#allocation4 + $0x200] sm:$0xff]
      %v2485 = vld [vmem:[#allocation4 + $0x208] sm:$0xff]
      %v2486 = vld [vmem:[#allocation4 + $0x210] sm:$0xff]
      %v2487 = vld [vmem:[#allocation4 + $0x218] sm:$0xff]
      %v2488 = vld [vmem:[#allocation4 + $0x220] sm:$0xff]
      %v2489 = vld [vmem:[#allocation4 + $0x228] sm:$0xff]
      %v2490 = vld [vmem:[#allocation4 + $0x230] sm:$0xff]
      %v2491 = vld [vmem:[#allocation4 + $0x238] sm:$0xff]
      %v2492 = vld [vmem:[%s5] sm:$0xff]
      %v2493 = vld [vmem:[%s5 + $0x8] sm:$0xff]
      %v2494 = vld [vmem:[%s5 + $0x10] sm:$0xff]
      %v2495 = vld [vmem:[%s5 + $0x18] sm:$0xff]
      %v2496 = vld [vmem:[%s5 + $0x20] sm:$0xff]
      %v2497 = vld [vmem:[%s5 + $0x28] sm:$0xff]
      %v2498 = vld [vmem:[%s5 + $0x30] sm:$0xff]
      %v2499 = vld [vmem:[%s5 + $0x38] sm:$0xff]
      %v2500 = vld [vmem:[%s5 + $0x40] sm:$0xff]
      %v2501 = vld [vmem:[%s5 + $0x48] sm:$0xff]
      %v2502 = vld [vmem:[%s5 + $0x50] sm:$0xff]
      %v2503 = vld [vmem:[%s5 + $0x58] sm:$0xff]
      %v2504 = vld [vmem:[%s5 + $0x60] sm:$0xff]
      %v2505 = vld [vmem:[%s5 + $0x68] sm:$0xff]
      %v2506 = vld [vmem:[%s5 + $0x70] sm:$0xff]
      %v2507 = vld [vmem:[%s5 + $0x78] sm:$0xff]
      %v2508 = vld [vmem:[%s5 + $0x80] sm:$0xff]
      %v2509 = vld [vmem:[%s5 + $0x88] sm:$0xff]
      %v2510 = vld [vmem:[%s5 + $0x90] sm:$0xff]
      %v2511 = vld [vmem:[%s5 + $0x98] sm:$0xff]
      %v2512 = vld [vmem:[%s5 + $0xa0] sm:$0xff]
      %v2513 = vld [vmem:[%s5 + $0xa8] sm:$0xff]
      %v2514 = vld [vmem:[%s5 + $0xb0] sm:$0xff]
      %v2515 = vld [vmem:[%s5 + $0xb8] sm:$0xff]
      %v2516 = vld [vmem:[%s5 + $0xc0] sm:$0xff]
      %v2517 = vld [vmem:[%s5 + $0xc8] sm:$0xff]
      %v2518 = vld [vmem:[%s5 + $0xd0] sm:$0xff]
      %v2519 = vld [vmem:[%s5 + $0xd8] sm:$0xff]
      %v2520 = vld [vmem:[%s5 + $0xe0] sm:$0xff]
      %v2521 = vld [vmem:[%s5 + $0xe8] sm:$0xff]
      %v2522 = vld [vmem:[%s5 + $0xf0] sm:$0xff]
      %v2523 = vld [vmem:[%s5 + $0xf8] sm:$0xff]
      %v2524 = vld [vmem:[%s5 + $0x100] sm:$0xff]
      %v2525 = vld [vmem:[%s5 + $0x108] sm:$0xff]
      %v2526 = vld [vmem:[%s5 + $0x110] sm:$0xff]
      %v2527 = vld [vmem:[%s5 + $0x118] sm:$0xff]
      %v2528 = vld [vmem:[%s5 + $0x120] sm:$0xff]
      %v2529 = vld [vmem:[%s5 + $0x128] sm:$0xff]
      %v2530 = vld [vmem:[%s5 + $0x130] sm:$0xff]
      %v2531 = vld [vmem:[%s5 + $0x138] sm:$0xff]
      %v2532 = vld [vmem:[%s5 + $0x140] sm:$0xff]
      %v2533 = vld [vmem:[%s5 + $0x148] sm:$0xff]
      %v2534 = vld [vmem:[%s5 + $0x150] sm:$0xff]
      %v2535 = vld [vmem:[%s5 + $0x158] sm:$0xff]
      %v2536 = vld [vmem:[%s5 + $0x160] sm:$0xff]
      %v2537 = vld [vmem:[%s5 + $0x168] sm:$0xff]
      %v2538 = vld [vmem:[%s5 + $0x170] sm:$0xff]
      %v2539 = vld [vmem:[%s5 + $0x178] sm:$0xff]
      %v2540 = vld [vmem:[%s5 + $0x180] sm:$0xff]
      %v2541 = vld [vmem:[%s5 + $0x188] sm:$0xff]
      %v2542 = vld [vmem:[%s5 + $0x190] sm:$0xff]
      %v2543 = vld [vmem:[%s5 + $0x198] sm:$0xff]
      %v2544 = vld [vmem:[%s5 + $0x1a0] sm:$0xff]
      %v2545 = vld [vmem:[%s5 + $0x1a8] sm:$0xff]
      %v2546 = vld [vmem:[%s5 + $0x1b0] sm:$0xff]
      %v2547 = vld [vmem:[%s5 + $0x1b8] sm:$0xff]
      %v2548 = vld [vmem:[%s5 + $0x1c0] sm:$0xff]
      %v2549 = vld [vmem:[%s5 + $0x1c8] sm:$0xff]
      %v2550 = vld [vmem:[%s5 + $0x1d0] sm:$0xff]
      %v2551 = vld [vmem:[%s5 + $0x1d8] sm:$0xff]
      %v2552 = vld [vmem:[%s5 + $0x1e0] sm:$0xff]
      %v2553 = vld [vmem:[%s5 + $0x1e8] sm:$0xff]
      %v2554 = vld [vmem:[%s5 + $0x1f0] sm:$0xff]
      %v2555 = vld [vmem:[%s5 + $0x1f8] sm:$0xff]
      %v2556 = vld [vmem:[%s6] sm:$0x3]
      %v2558 = vlaneseq
      %v2559 = vshrl.u32 %v2558, 7
      %v2560 = vsub.s32 0, %v2559
      %v2561 = vrot.slane %v2556, %v2560
      %v2562 = vlaneseq
      %v2563 = vshrl.u32 %v2562, 7
      %v2564 = vsub.s32 1, %v2563
      %v2565 = vrot.slane %v2556, %v2564
      %2568 = vmatprep.subr.mxu0 %v2493
      %2569 = vmatpush1.msra.mxu0 %v2492
      %2570 = vmatprep.subr.mxu0 %v2495
      %2571 = vmatpush1.msra.mxu0 %v2494
      %2572 = vmatprep.subr.mxu0 %v2497
      %2573 = vmatpush1.msra.mxu0 %v2496
      %2574 = vmatprep.subr.mxu0 %v2499
      %2575 = vmatpush1.msra.mxu0 %v2498
      %2576 = vmatprep.subr.mxu0 %v2501
      %2577 = vmatpush1.msra.mxu0 %v2500
      %2578 = vmatprep.subr.mxu0 %v2503
      %2579 = vmatpush1.msra.mxu0 %v2502
      %2580 = vmatprep.subr.mxu0 %v2505
      %2581 = vmatpush1.msra.mxu0 %v2504
      %2582 = vmatprep.subr.mxu0 %v2507
      %2583 = vmatpush1.msra.mxu0 %v2506
      %2584 = vmatprep.subr.mxu0 %v2509
      %2585 = vmatpush1.msra.mxu0 %v2508
      %2586 = vmatprep.subr.mxu0 %v2511
      %2587 = vmatpush1.msra.mxu0 %v2510
      %2588 = vmatprep.subr.mxu0 %v2513
      %2589 = vmatpush1.msra.mxu0 %v2512
      %2590 = vmatprep.subr.mxu0 %v2515
      %2591 = vmatpush1.msra.mxu0 %v2514
      %2592 = vmatprep.subr.mxu0 %v2517
      %2593 = vmatpush1.msra.mxu0 %v2516
      %2594 = vmatprep.subr.mxu0 %v2519
      %2595 = vmatpush1.msra.mxu0 %v2518
      %2596 = vmatprep.subr.mxu0 %v2521
      %2597 = vmatpush1.msra.mxu0 %v2520
      %2598 = vmatprep.subr.mxu0 %v2523
      %2599 = vmatpush1.msra.mxu0 %v2522
      %2600 = vmatprep.subr.mxu0 %v2525
      %2601 = vmatpush1.msra.mxu0 %v2524
      %2602 = vmatprep.subr.mxu0 %v2527
      %2603 = vmatpush1.msra.mxu0 %v2526
      %2604 = vmatprep.subr.mxu0 %v2529
      %2605 = vmatpush1.msra.mxu0 %v2528
      %2606 = vmatprep.subr.mxu0 %v2531
      %2607 = vmatpush1.msra.mxu0 %v2530
      %2608 = vmatprep.subr.mxu0 %v2533
      %2609 = vmatpush1.msra.mxu0 %v2532
      %2610 = vmatprep.subr.mxu0 %v2535
      %2611 = vmatpush1.msra.mxu0 %v2534
      %2612 = vmatprep.subr.mxu0 %v2537
      %2613 = vmatpush1.msra.mxu0 %v2536
      %2614 = vmatprep.subr.mxu0 %v2539
      %2615 = vmatpush1.msra.mxu0 %v2538
      %2616 = vmatprep.subr.mxu0 %v2541
      %2617 = vmatpush1.msra.mxu0 %v2540
      %2618 = vmatprep.subr.mxu0 %v2543
      %2619 = vmatpush1.msra.mxu0 %v2542
      %2620 = vmatprep.subr.mxu0 %v2545
      %2621 = vmatpush1.msra.mxu0 %v2544
      %2622 = vmatprep.subr.mxu0 %v2547
      %2623 = vmatpush1.msra.mxu0 %v2546
      %2624 = vmatprep.subr.mxu0 %v2549
      %2625 = vmatpush1.msra.mxu0 %v2548
      %2626 = vmatprep.subr.mxu0 %v2551
      %2627 = vmatpush1.msra.mxu0 %v2550
      %2628 = vmatprep.subr.mxu0 %v2553
      %2629 = vmatpush1.msra.mxu0 %v2552
      %2630 = vmatprep.subr.mxu0 %v2555
      %2631 = vmatpush1.msra.mxu0 %v2554
      %2632 = vmatprep.mubr.f32.mxu0 %v2421
      %2633 = vmatmul.mubr.f32.gmra.mrb[0].mxu0 %v2420
      %v2634 = vpop.f32.mrb[0].mxu0
      %v2635 = vadd.f32 %v2561, %v2634
      %v2636 = vpop.f32.mrb[0].mxu0
      %v2637 = vadd.f32 %v2565, %v2636
      %2638 = vmatprep.mubr.f32.mxu0 %v2423
      %2639 = vmatmul.mubr.f32.gmra.mrb[0].mxu0 %v2422
      %v2640 = vpop.f32.mrb[0].mxu0
      %v2641 = vadd.f32 %v2561, %v2640
      %v2642 = vpop.f32.mrb[0].mxu0
      %v2643 = vadd.f32 %v2565, %v2642
      %2644 = vmatprep.mubr.f32.mxu0 %v2425
      %2645 = vmatmul.mubr.f32.gmra.mrb[0].mxu0 %v2424
      %v2646 = vpop.f32.mrb[0].mxu0
      %v2647 = vadd.f32 %v2561, %v2646
      %v2648 = vpop.f32.mrb[0].mxu0
      %v2649 = vadd.f32 %v2565, %v2648
      %2650 = vmatprep.mubr.f32.mxu0 %v2427
      %2651 = vmatmul.mubr.f32.gmra.mrb[0].mxu0 %v2426
      %v2652 = vpop.f32.mrb[0].mxu0
      %v2653 = vadd.f32 %v2561, %v2652
      %v2654 = vpop.f32.mrb[0].mxu0
      %v2655 = vadd.f32 %v2565, %v2654
      %2656 = vmatprep.mubr.f32.mxu0 %v2429
      %2657 = vmatmul.mubr.f32.gmra.mrb[0].mxu0 %v2428
      %v2658 = vpop.f32.mrb[0].mxu0
      %v2659 = vadd.f32 %v2561, %v2658
      %v2660 = vpop.f32.mrb[0].mxu0
      %v2661 = vadd.f32 %v2565, %v2660
      %2662 = vmatprep.mubr.f32.mxu0 %v2431
      %2663 = vmatmul.mubr.f32.gmra.mrb[0].mxu0 %v2430
      %v2664 = vpop.f32.mrb[0].mxu0
      %v2665 = vadd.f32 %v2561, %v2664
      %v2666 = vpop.f32.mrb[0].mxu0
      %v2667 = vadd.f32 %v2565, %v2666
      %2668 = vmatprep.mubr.f32.mxu0 %v2433
      %2669 = vmatmul.mubr.f32.gmra.mrb[0].mxu0 %v2432
      %v2670 = vpop.f32.mrb[0].mxu0
      %v2671 = vadd.f32 %v2561, %v2670
      %v2672 = vpop.f32.mrb[0].mxu0
      %v2673 = vadd.f32 %v2565, %v2672
      %2674 = vmatprep.mubr.f32.mxu0 %v2435
      %2675 = vmatmul.mubr.f32.gmra.mrb[0].mxu0 %v2434
      %v2676 = vpop.f32.mrb[0].mxu0
      %v2677 = vadd.f32 %v2561, %v2676
      %v2678 = vpop.f32.mrb[0].mxu0
      %v2679 = vadd.f32 %v2565, %v2678
      %2680 = vmatprep.mubr.f32.mxu0 %v2437
      %2681 = vmatmul.mubr.f32.gmra.mrb[0].mxu0 %v2436
      %v2682 = vpop.f32.mrb[0].mxu0
      %v2683 = vadd.f32 %v2561, %v2682
      %v2684 = vpop.f32.mrb[0].mxu0
      %v2685 = vadd.f32 %v2565, %v2684
      %2686 = vmatprep.mubr.f32.mxu0 %v2439
      %2687 = vmatmul.mubr.f32.gmra.mrb[0].mxu0 %v2438
      %v2688 = vpop.f32.mrb[0].mxu0
      %v2689 = vadd.f32 %v2561, %v2688
      %v2690 = vpop.f32.mrb[0].mxu0
      %v2691 = vadd.f32 %v2565, %v2690
      %2692 = vmatprep.mubr.f32.mxu0 %v2441
      %2693 = vmatmul.mubr.f32.gmra.mrb[0].mxu0 %v2440
      %v2694 = vpop.f32.mrb[0].mxu0
      %v2695 = vadd.f32 %v2561, %v2694
      %v2696 = vpop.f32.mrb[0].mxu0
      %v2697 = vadd.f32 %v2565, %v2696
      %2698 = vmatprep.mubr.f32.mxu0 %v2443
      %2699 = vmatmul.mubr.f32.gmra.mrb[0].mxu0 %v2442
      %v2700 = vpop.f32.mrb[0].mxu0
      %v2701 = vadd.f32 %v2561, %v2700
      %v2702 = vpop.f32.mrb[0].mxu0
      %v2703 = vadd.f32 %v2565, %v2702
      %2704 = vmatprep.mubr.f32.mxu0 %v2445
      %2705 = vmatmul.mubr.f32.gmra.mrb[0].mxu0 %v2444
      %v2706 = vpop.f32.mrb[0].mxu0
      %v2707 = vadd.f32 %v2561, %v2706
      %v2708 = vpop.f32.mrb[0].mxu0
      %v2709 = vadd.f32 %v2565, %v2708
      %2710 = vmatprep.mubr.f32.mxu0 %v2447
      %2711 = vmatmul.mubr.f32.gmra.mrb[0].mxu0 %v2446
      %v2712 = vpop.f32.mrb[0].mxu0
      %v2713 = vadd.f32 %v2561, %v2712
      %v2714 = vpop.f32.mrb[0].mxu0
      %v2715 = vadd.f32 %v2565, %v2714
      %2716 = vmatprep.mubr.f32.mxu0 %v2449
      %2717 = vmatmul.mubr.f32.gmra.mrb[0].mxu0 %v2448
      %v2718 = vpop.f32.mrb[0].mxu0
      %v2719 = vadd.f32 %v2561, %v2718
      %v2720 = vpop.f32.mrb[0].mxu0
      %v2721 = vadd.f32 %v2565, %v2720
      %2722 = vmatprep.mubr.f32.mxu0 %v2451
      %2723 = vmatmul.mubr.f32.gmra.mrb[0].mxu0 %v2450
      %v2724 = vpop.f32.mrb[0].mxu0
      %v2725 = vadd.f32 %v2561, %v2724
      %v2726 = vpop.f32.mrb[0].mxu0
      %v2727 = vadd.f32 %v2565, %v2726
      %2728 = vmatprep.mubr.f32.mxu0 %v2453
      %2729 = vmatmul.mubr.f32.gmra.mrb[0].mxu0 %v2452
      %v2730 = vpop.f32.mrb[0].mxu0
      %v2731 = vadd.f32 %v2561, %v2730
      %v2732 = vpop.f32.mrb[0].mxu0
      %v2733 = vadd.f32 %v2565, %v2732
      %2734 = vmatprep.mubr.f32.mxu0 %v2455
      %2735 = vmatmul.mubr.f32.gmra.mrb[0].mxu0 %v2454
      %v2736 = vpop.f32.mrb[0].mxu0
      %v2737 = vadd.f32 %v2561, %v2736
      %v2738 = vpop.f32.mrb[0].mxu0
      %v2739 = vadd.f32 %v2565, %v2738
      %2740 = vmatprep.mubr.f32.mxu0 %v2457
      %2741 = vmatmul.mubr.f32.gmra.mrb[0].mxu0 %v2456
      %v2742 = vpop.f32.mrb[0].mxu0
      %v2743 = vadd.f32 %v2561, %v2742
      %v2744 = vpop.f32.mrb[0].mxu0
      %v2745 = vadd.f32 %v2565, %v2744
      %2746 = vmatprep.mubr.f32.mxu0 %v2459
      %2747 = vmatmul.mubr.f32.gmra.mrb[0].mxu0 %v2458
      %v2748 = vpop.f32.mrb[0].mxu0
      %v2749 = vadd.f32 %v2561, %v2748
      %v2750 = vpop.f32.mrb[0].mxu0
      %v2751 = vadd.f32 %v2565, %v2750
      %2752 = vmatprep.mubr.f32.mxu0 %v2461
      %2753 = vmatmul.mubr.f32.gmra.mrb[0].mxu0 %v2460
      %v2754 = vpop.f32.mrb[0].mxu0
      %v2755 = vadd.f32 %v2561, %v2754
      %v2756 = vpop.f32.mrb[0].mxu0
      %v2757 = vadd.f32 %v2565, %v2756
      %2758 = vmatprep.mubr.f32.mxu0 %v2463
      %2759 = vmatmul.mubr.f32.gmra.mrb[0].mxu0 %v2462
      %v2760 = vpop.f32.mrb[0].mxu0
      %v2761 = vadd.f32 %v2561, %v2760
      %v2762 = vpop.f32.mrb[0].mxu0
      %v2763 = vadd.f32 %v2565, %v2762
      %2764 = vmatprep.mubr.f32.mxu0 %v2465
      %2765 = vmatmul.mubr.f32.gmra.mrb[0].mxu0 %v2464
      %v2766 = vpop.f32.mrb[0].mxu0
      %v2767 = vadd.f32 %v2561, %v2766
      %v2768 = vpop.f32.mrb[0].mxu0
      %v2769 = vadd.f32 %v2565, %v2768
      %2770 = vmatprep.mubr.f32.mxu0 %v2467
      %2771 = vmatmul.mubr.f32.gmra.mrb[0].mxu0 %v2466
      %v2772 = vpop.f32.mrb[0].mxu0
      %v2773 = vadd.f32 %v2561, %v2772
      %v2774 = vpop.f32.mrb[0].mxu0
      %v2775 = vadd.f32 %v2565, %v2774
      %2776 = vmatprep.mubr.f32.mxu0 %v2469
      %2777 = vmatmul.mubr.f32.gmra.mrb[0].mxu0 %v2468
      %v2778 = vpop.f32.mrb[0].mxu0
      %v2779 = vadd.f32 %v2561, %v2778
      %v2780 = vpop.f32.mrb[0].mxu0
      %v2781 = vadd.f32 %v2565, %v2780
      %2782 = vmatprep.mubr.f32.mxu0 %v2471
      %2783 = vmatmul.mubr.f32.gmra.mrb[0].mxu0 %v2470
      %v2784 = vpop.f32.mrb[0].mxu0
      %v2785 = vadd.f32 %v2561, %v2784
      %v2786 = vpop.f32.mrb[0].mxu0
      %v2787 = vadd.f32 %v2565, %v2786
      %2788 = vmatprep.mubr.f32.mxu0 %v2473
      %2789 = vmatmul.mubr.f32.gmra.mrb[0].mxu0 %v2472
      %v2790 = vpop.f32.mrb[0].mxu0
      %v2791 = vadd.f32 %v2561, %v2790
      %v2792 = vpop.f32.mrb[0].mxu0
      %v2793 = vadd.f32 %v2565, %v2792
      %2794 = vmatprep.mubr.f32.mxu0 %v2475
      %2795 = vmatmul.mubr.f32.gmra.mrb[0].mxu0 %v2474
      %v2796 = vpop.f32.mrb[0].mxu0
      %v2797 = vadd.f32 %v2561, %v2796
      %v2798 = vpop.f32.mrb[0].mxu0
      %v2799 = vadd.f32 %v2565, %v2798
      %2800 = vmatprep.mubr.f32.mxu0 %v2477
      %2801 = vmatmul.mubr.f32.gmra.mrb[0].mxu0 %v2476
      %v2802 = vpop.f32.mrb[0].mxu0
      %v2803 = vadd.f32 %v2561, %v2802
      %v2804 = vpop.f32.mrb[0].mxu0
      %v2805 = vadd.f32 %v2565, %v2804
      %2806 = vmatprep.mubr.f32.mxu0 %v2479
      %2807 = vmatmul.mubr.f32.gmra.mrb[0].mxu0 %v2478
      %v2808 = vpop.f32.mrb[0].mxu0
      %v2809 = vadd.f32 %v2561, %v2808
      %v2810 = vpop.f32.mrb[0].mxu0
      %v2811 = vadd.f32 %v2565, %v2810
      %2812 = vmatprep.mubr.f32.mxu0 %v2481
      %2813 = vmatmul.mubr.f32.gmra.mrb[0].mxu0 %v2480
      %v2814 = vpop.f32.mrb[0].mxu0
      %v2815 = vadd.f32 %v2561, %v2814
      %v2816 = vpop.f32.mrb[0].mxu0
      %v2817 = vadd.f32 %v2565, %v2816
      %2818 = vmatprep.mubr.f32.mxu0 %v2483
      %2819 = vmatmul.mubr.f32.gmra.mrb[0].mxu0 %v2482
      %v2820 = vpop.f32.mrb[0].mxu0
      %v2821 = vadd.f32 %v2561, %v2820
      %v2822 = vpop.f32.mrb[0].mxu0
      %v2823 = vadd.f32 %v2565, %v2822
      %2824 = vmatprep.mubr.f32.mxu0 %v2485
      %2825 = vmatmul.mubr.f32.gmra.mrb[0].mxu0 %v2484
      %v2826 = vpop.f32.mrb[0].mxu0
      %v2827 = vadd.f32 %v2561, %v2826
      %v2828 = vpop.f32.mrb[0].mxu0
      %v2829 = vadd.f32 %v2565, %v2828
      %2830 = vmatprep.mubr.f32.mxu0 %v2487
      %2831 = vmatmul.mubr.f32.gmra.mrb[0].mxu0 %v2486
      %v2832 = vpop.f32.mrb[0].mxu0
      %v2833 = vadd.f32 %v2561, %v2832
      %v2834 = vpop.f32.mrb[0].mxu0
      %v2835 = vadd.f32 %v2565, %v2834
      %2836 = vmatprep.mubr.f32.mxu0 %v2489
      %2837 = vmatmul.mubr.f32.gmra.mrb[0].mxu0 %v2488
      %v2838 = vpop.f32.mrb[0].mxu0
      %v2839 = vadd.f32 %v2561, %v2838
      %v2840 = vpop.f32.mrb[0].mxu0
      %v2841 = vadd.f32 %v2565, %v2840
      %2842 = vmatprep.mubr.f32.mxu0 %v2491
      %2843 = vmatmul.mubr.f32.gmra.mrb[0].mxu0 %v2490
      %v2844 = vpop.f32.mrb[0].mxu0
      %v2845 = vadd.f32 %v2561, %v2844
      %v2846 = vpop.f32.mrb[0].mxu0
      %v2847 = vadd.f32 %v2565, %v2846
      %2848 = vdwg.mxu0
      %v2849 = vmax.f32 %v2635, 0.0
      %v2850 = vmax.f32 %v2637, 0.0
      %v2851 = vmax.f32 %v2641, 0.0
      %v2852 = vmax.f32 %v2643, 0.0
      %v2853 = vmax.f32 %v2647, 0.0
      %v2854 = vmax.f32 %v2649, 0.0
      %v2855 = vmax.f32 %v2653, 0.0
      %v2856 = vmax.f32 %v2655, 0.0
      %v2857 = vmax.f32 %v2659, 0.0
      %v2858 = vmax.f32 %v2661, 0.0
      %v2859 = vmax.f32 %v2665, 0.0
      %v2860 = vmax.f32 %v2667, 0.0
      %v2861 = vmax.f32 %v2671, 0.0
      %v2862 = vmax.f32 %v2673, 0.0
      %v2863 = vmax.f32 %v2677, 0.0
      %v2864 = vmax.f32 %v2679, 0.0
      %v2865 = vmax.f32 %v2683, 0.0
      %v2866 = vmax.f32 %v2685, 0.0
      %v2867 = vmax.f32 %v2689, 0.0
      %v2868 = vmax.f32 %v2691, 0.0
      %v2869 = vmax.f32 %v2695, 0.0
      %v2870 = vmax.f32 %v2697, 0.0
      %v2871 = vmax.f32 %v2701, 0.0
      %v2872 = vmax.f32 %v2703, 0.0
      %v2873 = vmax.f32 %v2707, 0.0
      %v2874 = vmax.f32 %v2709, 0.0
      %v2875 = vmax.f32 %v2713, 0.0
      %v2876 = vmax.f32 %v2715, 0.0
      %v2877 = vmax.f32 %v2719, 0.0
      %v2878 = vmax.f32 %v2721, 0.0
      %v2879 = vmax.f32 %v2725, 0.0
      %v2880 = vmax.f32 %v2727, 0.0
      %v2881 = vmax.f32 %v2731, 0.0
      %v2882 = vmax.f32 %v2733, 0.0
      %v2883 = vmax.f32 %v2737, 0.0
      %v2884 = vmax.f32 %v2739, 0.0
      %v2885 = vmax.f32 %v2743, 0.0
      %v2886 = vmax.f32 %v2745, 0.0
      %v2887 = vmax.f32 %v2749, 0.0
      %v2888 = vmax.f32 %v2751, 0.0
      %v2889 = vmax.f32 %v2755, 0.0
      %v2890 = vmax.f32 %v2757, 0.0
      %v2891 = vmax.f32 %v2761, 0.0
      %v2892 = vmax.f32 %v2763, 0.0
      %v2893 = vmax.f32 %v2767, 0.0
      %v2894 = vmax.f32 %v2769, 0.0
      %v2895 = vmax.f32 %v2773, 0.0
      %v2896 = vmax.f32 %v2775, 0.0
      %v2897 = vmax.f32 %v2779, 0.0
      %v2898 = vmax.f32 %v2781, 0.0
      %v2899 = vmax.f32 %v2785, 0.0
      %v2900 = vmax.f32 %v2787, 0.0
      %v2901 = vmax.f32 %v2791, 0.0
      %v2902 = vmax.f32 %v2793, 0.0
      %v2903 = vmax.f32 %v2797, 0.0
      %v2904 = vmax.f32 %v2799, 0.0
      %v2905 = vmax.f32 %v2803, 0.0
      %v2906 = vmax.f32 %v2805, 0.0
      %v2907 = vmax.f32 %v2809, 0.0
      %v2908 = vmax.f32 %v2811, 0.0
      %v2909 = vmax.f32 %v2815, 0.0
      %v2910 = vmax.f32 %v2817, 0.0
      %v2911 = vmax.f32 %v2821, 0.0
      %v2912 = vmax.f32 %v2823, 0.0
      %v2913 = vmax.f32 %v2827, 0.0
      %v2914 = vmax.f32 %v2829, 0.0
      %v2915 = vmax.f32 %v2833, 0.0
      %v2916 = vmax.f32 %v2835, 0.0
      %v2917 = vmax.f32 %v2839, 0.0
      %v2918 = vmax.f32 %v2841, 0.0
      %v2919 = vmax.f32 %v2845, 0.0
      %v2920 = vmax.f32 %v2847, 0.0
      %2921 = vst [vmem:[#allocation5] sm:$0xff] %v2849
      %2922 = vst [vmem:[#allocation5 + $0x8] sm:$0xff] %v2850
      %2923 = vst [vmem:[#allocation5 + $0x10] sm:$0xff] %v2851
      %2924 = vst [vmem:[#allocation5 + $0x18] sm:$0xff] %v2852
      %2925 = vst [vmem:[#allocation5 + $0x20] sm:$0xff] %v2853
      %2926 = vst [vmem:[#allocation5 + $0x28] sm:$0xff] %v2854
      %2927 = vst [vmem:[#allocation5 + $0x30] sm:$0xff] %v2855
      %2928 = vst [vmem:[#allocation5 + $0x38] sm:$0xff] %v2856
      %2929 = vst [vmem:[#allocation5 + $0x40] sm:$0xff] %v2857
      %2930 = vst [vmem:[#allocation5 + $0x48] sm:$0xff] %v2858
      %2931 = vst [vmem:[#allocation5 + $0x50] sm:$0xff] %v2859
      %2932 = vst [vmem:[#allocation5 + $0x58] sm:$0xff] %v2860
      %2933 = vst [vmem:[#allocation5 + $0x60] sm:$0xff] %v2861
      %2934 = vst [vmem:[#allocation5 + $0x68] sm:$0xff] %v2862
      %2935 = vst [vmem:[#allocation5 + $0x70] sm:$0xff] %v2863
      %2936 = vst [vmem:[#allocation5 + $0x78] sm:$0xff] %v2864
      %2937 = vst [vmem:[#allocation5 + $0x80] sm:$0xff] %v2865
      %2938 = vst [vmem:[#allocation5 + $0x88] sm:$0xff] %v2866
      %2939 = vst [vmem:[#allocation5 + $0x90] sm:$0xff] %v2867
      %2940 = vst [vmem:[#allocation5 + $0x98] sm:$0xff] %v2868
      %2941 = vst [vmem:[#allocation5 + $0xa0] sm:$0xff] %v2869
      %2942 = vst [vmem:[#allocation5 + $0xa8] sm:$0xff] %v2870
      %2943 = vst [vmem:[#allocation5 + $0xb0] sm:$0xff] %v2871
      %2944 = vst [vmem:[#allocation5 + $0xb8] sm:$0xff] %v2872
      %2945 = vst [vmem:[#allocation5 + $0xc0] sm:$0xff] %v2873
      %2946 = vst [vmem:[#allocation5 + $0xc8] sm:$0xff] %v2874
      %2947 = vst [vmem:[#allocation5 + $0xd0] sm:$0xff] %v2875
      %2948 = vst [vmem:[#allocation5 + $0xd8] sm:$0xff] %v2876
      %2949 = vst [vmem:[#allocation5 + $0xe0] sm:$0xff] %v2877
      %2950 = vst [vmem:[#allocation5 + $0xe8] sm:$0xff] %v2878
      %2951 = vst [vmem:[#allocation5 + $0xf0] sm:$0xff] %v2879
      %2952 = vst [vmem:[#allocation5 + $0xf8] sm:$0xff] %v2880
      %2953 = vst [vmem:[#allocation5 + $0x100] sm:$0xff] %v2881
      %2954 = vst [vmem:[#allocation5 + $0x108] sm:$0xff] %v2882
      %2955 = vst [vmem:[#allocation5 + $0x110] sm:$0xff] %v2883
      %2956 = vst [vmem:[#allocation5 + $0x118] sm:$0xff] %v2884
      %2957 = vst [vmem:[#allocation5 + $0x120] sm:$0xff] %v2885
      %2958 = vst [vmem:[#allocation5 + $0x128] sm:$0xff] %v2886
      %2959 = vst [vmem:[#allocation5 + $0x130] sm:$0xff] %v2887
      %2960 = vst [vmem:[#allocation5 + $0x138] sm:$0xff] %v2888
      %2961 = vst [vmem:[#allocation5 + $0x140] sm:$0xff] %v2889
      %2962 = vst [vmem:[#allocation5 + $0x148] sm:$0xff] %v2890
      %2963 = vst [vmem:[#allocation5 + $0x150] sm:$0xff] %v2891
      %2964 = vst [vmem:[#allocation5 + $0x158] sm:$0xff] %v2892
      %2965 = vst [vmem:[#allocation5 + $0x160] sm:$0xff] %v2893
      %2966 = vst [vmem:[#allocation5 + $0x168] sm:$0xff] %v2894
      %2967 = vst [vmem:[#allocation5 + $0x170] sm:$0xff] %v2895
      %2968 = vst [vmem:[#allocation5 + $0x178] sm:$0xff] %v2896
      %2969 = vst [vmem:[#allocation5 + $0x180] sm:$0xff] %v2897
      %2970 = vst [vmem:[#allocation5 + $0x188] sm:$0xff] %v2898
      %2971 = vst [vmem:[#allocation5 + $0x190] sm:$0xff] %v2899
      %2972 = vst [vmem:[#allocation5 + $0x198] sm:$0xff] %v2900
      %2973 = vst [vmem:[#allocation5 + $0x1a0] sm:$0xff] %v2901
      %2974 = vst [vmem:[#allocation5 + $0x1a8] sm:$0xff] %v2902
      %2975 = vst [vmem:[#allocation5 + $0x1b0] sm:$0xff] %v2903
      %2976 = vst [vmem:[#allocation5 + $0x1b8] sm:$0xff] %v2904
      %2977 = vst [vmem:[#allocation5 + $0x1c0] sm:$0xff] %v2905
      %2978 = vst [vmem:[#allocation5 + $0x1c8] sm:$0xff] %v2906
      %2979 = vst [vmem:[#allocation5 + $0x1d0] sm:$0xff] %v2907
      %2980 = vst [vmem:[#allocation5 + $0x1d8] sm:$0xff] %v2908
      %2981 = vst [vmem:[#allocation5 + $0x1e0] sm:$0xff] %v2909
      %2982 = vst [vmem:[#allocation5 + $0x1e8] sm:$0xff] %v2910
      %2983 = vst [vmem:[#allocation5 + $0x1f0] sm:$0xff] %v2911
      %2984 = vst [vmem:[#allocation5 + $0x1f8] sm:$0xff] %v2912
      %2985 = vst [vmem:[#allocation5 + $0x200] sm:$0xff] %v2913
      %2986 = vst [vmem:[#allocation5 + $0x208] sm:$0xff] %v2914
      %2987 = vst [vmem:[#allocation5 + $0x210] sm:$0xff] %v2915
      %2988 = vst [vmem:[#allocation5 + $0x218] sm:$0xff] %v2916
      %2989 = vst [vmem:[#allocation5 + $0x220] sm:$0xff] %v2917
      %2990 = vst [vmem:[#allocation5 + $0x228] sm:$0xff] %v2918
      %2991 = vst [vmem:[#allocation5 + $0x230] sm:$0xff] %v2919
      %2992 = vst [vmem:[#allocation5 + $0x238] sm:$0xff] %v2920
      %v2993 = vld [vmem:[#allocation5] sm:$0xff]
      %v2994 = vld [vmem:[#allocation5 + $0x8] sm:$0xff]
      %v2995 = vld [vmem:[#allocation5 + $0x10] sm:$0xff]
      %v2996 = vld [vmem:[#allocation5 + $0x18] sm:$0xff]
      %v2997 = vld [vmem:[#allocation5 + $0x20] sm:$0xff]
      %v2998 = vld [vmem:[#allocation5 + $0x28] sm:$0xff]
      %v2999 = vld [vmem:[#allocation5 + $0x30] sm:$0xff]
      %v3000 = vld [vmem:[#allocation5 + $0x38] sm:$0xff]
      %v3001 = vld [vmem:[#allocation5 + $0x40] sm:$0xff]
      %v3002 = vld [vmem:[#allocation5 + $0x48] sm:$0xff]
      %v3003 = vld [vmem:[#allocation5 + $0x50] sm:$0xff]
      %v3004 = vld [vmem:[#allocation5 + $0x58] sm:$0xff]
      %v3005 = vld [vmem:[#allocation5 + $0x60] sm:$0xff]
      %v3006 = vld [vmem:[#allocation5 + $0x68] sm:$0xff]
      %v3007 = vld [vmem:[#allocation5 + $0x70] sm:$0xff]
      %v3008 = vld [vmem:[#allocation5 + $0x78] sm:$0xff]
      %v3009 = vld [vmem:[#allocation5 + $0x80] sm:$0xff]
      %v3010 = vld [vmem:[#allocation5 + $0x88] sm:$0xff]
      %v3011 = vld [vmem:[#allocation5 + $0x90] sm:$0xff]
      %v3012 = vld [vmem:[#allocation5 + $0x98] sm:$0xff]
      %v3013 = vld [vmem:[#allocation5 + $0xa0] sm:$0xff]
      %v3014 = vld [vmem:[#allocation5 + $0xa8] sm:$0xff]
      %v3015 = vld [vmem:[#allocation5 + $0xb0] sm:$0xff]
      %v3016 = vld [vmem:[#allocation5 + $0xb8] sm:$0xff]
      %v3017 = vld [vmem:[#allocation5 + $0xc0] sm:$0xff]
      %v3018 = vld [vmem:[#allocation5 + $0xc8] sm:$0xff]
      %v3019 = vld [vmem:[#allocation5 + $0xd0] sm:$0xff]
      %v3020 = vld [vmem:[#allocation5 + $0xd8] sm:$0xff]
      %v3021 = vld [vmem:[#allocation5 + $0xe0] sm:$0xff]
      %v3022 = vld [vmem:[#allocation5 + $0xe8] sm:$0xff]
      %v3023 = vld [vmem:[#allocation5 + $0xf0] sm:$0xff]
      %v3024 = vld [vmem:[#allocation5 + $0xf8] sm:$0xff]
      %v3025 = vld [vmem:[#allocation5 + $0x100] sm:$0xff]
      %v3026 = vld [vmem:[#allocation5 + $0x108] sm:$0xff]
      %v3027 = vld [vmem:[#allocation5 + $0x110] sm:$0xff]
      %v3028 = vld [vmem:[#allocation5 + $0x118] sm:$0xff]
      %v3029 = vld [vmem:[#allocation5 + $0x120] sm:$0xff]
      %v3030 = vld [vmem:[#allocation5 + $0x128] sm:$0xff]
      %v3031 = vld [vmem:[#allocation5 + $0x130] sm:$0xff]
      %v3032 = vld [vmem:[#allocation5 + $0x138] sm:$0xff]
      %v3033 = vld [vmem:[#allocation5 + $0x140] sm:$0xff]
      %v3034 = vld [vmem:[#allocation5 + $0x148] sm:$0xff]
      %v3035 = vld [vmem:[#allocation5 + $0x150] sm:$0xff]
      %v3036 = vld [vmem:[#allocation5 + $0x158] sm:$0xff]
      %v3037 = vld [vmem:[#allocation5 + $0x160] sm:$0xff]
      %v3038 = vld [vmem:[#allocation5 + $0x168] sm:$0xff]
      %v3039 = vld [vmem:[#allocation5 + $0x170] sm:$0xff]
      %v3040 = vld [vmem:[#allocation5 + $0x178] sm:$0xff]
      %v3041 = vld [vmem:[#allocation5 + $0x180] sm:$0xff]
      %v3042 = vld [vmem:[#allocation5 + $0x188] sm:$0xff]
      %v3043 = vld [vmem:[#allocation5 + $0x190] sm:$0xff]
      %v3044 = vld [vmem:[#allocation5 + $0x198] sm:$0xff]
      %v3045 = vld [vmem:[#allocation5 + $0x1a0] sm:$0xff]
      %v3046 = vld [vmem:[#allocation5 + $0x1a8] sm:$0xff]
      %v3047 = vld [vmem:[#allocation5 + $0x1b0] sm:$0xff]
      %v3048 = vld [vmem:[#allocation5 + $0x1b8] sm:$0xff]
      %v3049 = vld [vmem:[#allocation5 + $0x1c0] sm:$0xff]
      %v3050 = vld [vmem:[#allocation5 + $0x1c8] sm:$0xff]
      %v3051 = vld [vmem:[#allocation5 + $0x1d0] sm:$0xff]
      %v3052 = vld [vmem:[#allocation5 + $0x1d8] sm:$0xff]
      %v3053 = vld [vmem:[#allocation5 + $0x1e0] sm:$0xff]
      %v3054 = vld [vmem:[#allocation5 + $0x1e8] sm:$0xff]
      %v3055 = vld [vmem:[#allocation5 + $0x1f0] sm:$0xff]
      %v3056 = vld [vmem:[#allocation5 + $0x1f8] sm:$0xff]
      %v3057 = vld [vmem:[#allocation5 + $0x200] sm:$0xff]
      %v3058 = vld [vmem:[#allocation5 + $0x208] sm:$0xff]
      %v3059 = vld [vmem:[#allocation5 + $0x210] sm:$0xff]
      %v3060 = vld [vmem:[#allocation5 + $0x218] sm:$0xff]
      %v3061 = vld [vmem:[#allocation5 + $0x220] sm:$0xff]
      %v3062 = vld [vmem:[#allocation5 + $0x228] sm:$0xff]
      %v3063 = vld [vmem:[#allocation5 + $0x230] sm:$0xff]
      %v3064 = vld [vmem:[#allocation5 + $0x238] sm:$0xff]
      %v3065 = vld [vmem:[%s7] sm:$0xff]
      %v3066 = vld [vmem:[%s7 + $0x8] sm:$0xff]
      %v3067 = vld [vmem:[%s7 + $0x10] sm:$0xff]
      %v3068 = vld [vmem:[%s7 + $0x18] sm:$0xff]
      %v3069 = vld [vmem:[%s7 + $0x20] sm:$0xff]
      %v3070 = vld [vmem:[%s7 + $0x28] sm:$0xff]
      %v3071 = vld [vmem:[%s7 + $0x30] sm:$0xff]
      %v3072 = vld [vmem:[%s7 + $0x38] sm:$0xff]
      %v3073 = vld [vmem:[%s7 + $0x40] sm:$0xff]
      %v3074 = vld [vmem:[%s7 + $0x48] sm:$0xff]
      %v3075 = vld [vmem:[%s7 + $0x50] sm:$0xff]
      %v3076 = vld [vmem:[%s7 + $0x58] sm:$0xff]
      %v3077 = vld [vmem:[%s7 + $0x60] sm:$0xff]
      %v3078 = vld [vmem:[%s7 + $0x68] sm:$0xff]
      %v3079 = vld [vmem:[%s7 + $0x70] sm:$0xff]
      %v3080 = vld [vmem:[%s7 + $0x78] sm:$0xff]
      %v3081 = vld [vmem:[%s7 + $0x80] sm:$0xff]
      %v3082 = vld [vmem:[%s7 + $0x88] sm:$0xff]
      %v3083 = vld [vmem:[%s7 + $0x90] sm:$0xff]
      %v3084 = vld [vmem:[%s7 + $0x98] sm:$0xff]
      %v3085 = vld [vmem:[%s7 + $0xa0] sm:$0xff]
      %v3086 = vld [vmem:[%s7 + $0xa8] sm:$0xff]
      %v3087 = vld [vmem:[%s7 + $0xb0] sm:$0xff]
      %v3088 = vld [vmem:[%s7 + $0xb8] sm:$0xff]
      %v3089 = vld [vmem:[%s7 + $0xc0] sm:$0xff]
      %v3090 = vld [vmem:[%s7 + $0xc8] sm:$0xff]
      %v3091 = vld [vmem:[%s7 + $0xd0] sm:$0xff]
      %v3092 = vld [vmem:[%s7 + $0xd8] sm:$0xff]
      %v3093 = vld [vmem:[%s7 + $0xe0] sm:$0xff]
      %v3094 = vld [vmem:[%s7 + $0xe8] sm:$0xff]
      %v3095 = vld [vmem:[%s7 + $0xf0] sm:$0xff]
      %v3096 = vld [vmem:[%s7 + $0xf8] sm:$0xff]
      %3097 = vmatprep.subr.mxu0 0.0
      %3098 = vmatpush1.msra.mxu0 %v3065
      %3099 = vmatprep.subr.mxu0 0.0
      %3100 = vmatpush1.msra.mxu0 %v3066
      %3101 = vmatprep.subr.mxu0 0.0
      %3102 = vmatpush1.msra.mxu0 %v3067
      %3103 = vmatprep.subr.mxu0 0.0
      %3104 = vmatpush1.msra.mxu0 %v3068
      %3105 = vmatprep.subr.mxu0 0.0
      %3106 = vmatpush1.msra.mxu0 %v3069
      %3107 = vmatprep.subr.mxu0 0.0
      %3108 = vmatpush1.msra.mxu0 %v3070
      %3109 = vmatprep.subr.mxu0 0.0
      %3110 = vmatpush1.msra.mxu0 %v3071
      %3111 = vmatprep.subr.mxu0 0.0
      %3112 = vmatpush1.msra.mxu0 %v3072
      %3113 = vmatprep.subr.mxu0 0.0
      %3114 = vmatpush1.msra.mxu0 %v3073
      %3115 = vmatprep.subr.mxu0 0.0
      %3116 = vmatpush1.msra.mxu0 %v3074
      %3117 = vmatprep.subr.mxu0 0.0
      %3118 = vmatpush1.msra.mxu0 %v3075
      %3119 = vmatprep.subr.mxu0 0.0
      %3120 = vmatpush1.msra.mxu0 %v3076
      %3121 = vmatprep.subr.mxu0 0.0
      %3122 = vmatpush1.msra.mxu0 %v3077
      %3123 = vmatprep.subr.mxu0 0.0
      %3124 = vmatpush1.msra.mxu0 %v3078
      %3125 = vmatprep.subr.mxu0 0.0
      %3126 = vmatpush1.msra.mxu0 %v3079
      %3127 = vmatprep.subr.mxu0 0.0
      %3128 = vmatpush1.msra.mxu0 %v3080
      %3129 = vmatprep.subr.mxu0 0.0
      %3130 = vmatpush1.msra.mxu0 %v3081
      %3131 = vmatprep.subr.mxu0 0.0
      %3132 = vmatpush1.msra.mxu0 %v3082
      %3133 = vmatprep.subr.mxu0 0.0
      %3134 = vmatpush1.msra.mxu0 %v3083
      %3135 = vmatprep.subr.mxu0 0.0
      %3136 = vmatpush1.msra.mxu0 %v3084
      %3137 = vmatprep.subr.mxu0 0.0
      %3138 = vmatpush1.msra.mxu0 %v3085
      %3139 = vmatprep.subr.mxu0 0.0
      %3140 = vmatpush1.msra.mxu0 %v3086
      %3141 = vmatprep.subr.mxu0 0.0
      %3142 = vmatpush1.msra.mxu0 %v3087
      %3143 = vmatprep.subr.mxu0 0.0
      %3144 = vmatpush1.msra.mxu0 %v3088
      %3145 = vmatprep.subr.mxu0 0.0
      %3146 = vmatpush1.msra.mxu0 %v3089
      %3147 = vmatprep.subr.mxu0 0.0
      %3148 = vmatpush1.msra.mxu0 %v3090
      %3149 = vmatprep.subr.mxu0 0.0
      %3150 = vmatpush1.msra.mxu0 %v3091
      %3151 = vmatprep.subr.mxu0 0.0
      %3152 = vmatpush1.msra.mxu0 %v3092
      %3153 = vmatprep.subr.mxu0 0.0
      %3154 = vmatpush1.msra.mxu0 %v3093
      %3155 = vmatprep.subr.mxu0 0.0
      %3156 = vmatpush1.msra.mxu0 %v3094
      %3157 = vmatprep.subr.mxu0 0.0
      %3158 = vmatpush1.msra.mxu0 %v3095
      %3159 = vmatprep.subr.mxu0 0.0
      %3160 = vmatpush1.msra.mxu0 %v3096
      %3161 = vmatprep.mubr.f32.mxu0 %v2994
      %3162 = vmatmul.mubr.f32.gmra.mrb[0].mxu0 %v2993
      %v3163 = vpop.f32.mrb[0].mxu0
      %v3164 = vadd.f32 0.0, %v3163
      %v3165 = vpop.f32.mrb[0].mxu0
      %3166 = vmatprep.mubr.f32.mxu0 %v2996
      %3167 = vmatmul.mubr.f32.gmra.mrb[0].mxu0 %v2995
      %v3168 = vpop.f32.mrb[0].mxu0
      %v3169 = vadd.f32 0.0, %v3168
      %v3170 = vpop.f32.mrb[0].mxu0
      %3171 = vmatprep.mubr.f32.mxu0 %v2998
      %3172 = vmatmul.mubr.f32.gmra.mrb[0].mxu0 %v2997
      %v3173 = vpop.f32.mrb[0].mxu0
      %v3174 = vadd.f32 0.0, %v3173
      %v3175 = vpop.f32.mrb[0].mxu0
      %3176 = vmatprep.mubr.f32.mxu0 %v3000
      %3177 = vmatmul.mubr.f32.gmra.mrb[0].mxu0 %v2999
      %v3178 = vpop.f32.mrb[0].mxu0
      %v3179 = vadd.f32 0.0, %v3178
      %v3180 = vpop.f32.mrb[0].mxu0
      %3181 = vmatprep.mubr.f32.mxu0 %v3002
      %3182 = vmatmul.mubr.f32.gmra.mrb[0].mxu0 %v3001
      %v3183 = vpop.f32.mrb[0].mxu0
      %v3184 = vadd.f32 0.0, %v3183
      %v3185 = vpop.f32.mrb[0].mxu0
      %3186 = vmatprep.mubr.f32.mxu0 %v3004
      %3187 = vmatmul.mubr.f32.gmra.mrb[0].mxu0 %v3003
      %v3188 = vpop.f32.mrb[0].mxu0
      %v3189 = vadd.f32 0.0, %v3188
      %v3190 = vpop.f32.mrb[0].mxu0
      %3191 = vmatprep.mubr.f32.mxu0 %v3006
      %3192 = vmatmul.mubr.f32.gmra.mrb[0].mxu0 %v3005
      %v3193 = vpop.f32.mrb[0].mxu0
      %v3194 = vadd.f32 0.0, %v3193
      %v3195 = vpop.f32.mrb[0].mxu0
      %3196 = vmatprep.mubr.f32.mxu0 %v3008
      %3197 = vmatmul.mubr.f32.gmra.mrb[0].mxu0 %v3007
      %v3198 = vpop.f32.mrb[0].mxu0
      %v3199 = vadd.f32 0.0, %v3198
      %v3200 = vpop.f32.mrb[0].mxu0
      %3201 = vmatprep.mubr.f32.mxu0 %v3010
      %3202 = vmatmul.mubr.f32.gmra.mrb[0].mxu0 %v3009
      %v3203 = vpop.f32.mrb[0].mxu0
      %v3204 = vadd.f32 0.0, %v3203
      %v3205 = vpop.f32.mrb[0].mxu0
      %3206 = vmatprep.mubr.f32.mxu0 %v3012
      %3207 = vmatmul.mubr.f32.gmra.mrb[0].mxu0 %v3011
      %v3208 = vpop.f32.mrb[0].mxu0
      %v3209 = vadd.f32 0.0, %v3208
      %v3210 = vpop.f32.mrb[0].mxu0
      %3211 = vmatprep.mubr.f32.mxu0 %v3014
      %3212 = vmatmul.mubr.f32.gmra.mrb[0].mxu0 %v3013
      %v3213 = vpop.f32.mrb[0].mxu0
      %v3214 = vadd.f32 0.0, %v3213
      %v3215 = vpop.f32.mrb[0].mxu0
      %3216 = vmatprep.mubr.f32.mxu0 %v3016
      %3217 = vmatmul.mubr.f32.gmra.mrb[0].mxu0 %v3015
      %v3218 = vpop.f32.mrb[0].mxu0
      %v3219 = vadd.f32 0.0, %v3218
      %v3220 = vpop.f32.mrb[0].mxu0
      %3221 = vmatprep.mubr.f32.mxu0 %v3018
      %3222 = vmatmul.mubr.f32.gmra.mrb[0].mxu0 %v3017
      %v3223 = vpop.f32.mrb[0].mxu0
      %v3224 = vadd.f32 0.0, %v3223
      %v3225 = vpop.f32.mrb[0].mxu0
      %3226 = vmatprep.mubr.f32.mxu0 %v3020
      %3227 = vmatmul.mubr.f32.gmra.mrb[0].mxu0 %v3019
      %v3228 = vpop.f32.mrb[0].mxu0
      %v3229 = vadd.f32 0.0, %v3228
      %v3230 = vpop.f32.mrb[0].mxu0
      %3231 = vmatprep.mubr.f32.mxu0 %v3022
      %3232 = vmatmul.mubr.f32.gmra.mrb[0].mxu0 %v3021
      %v3233 = vpop.f32.mrb[0].mxu0
      %v3234 = vadd.f32 0.0, %v3233
      %v3235 = vpop.f32.mrb[0].mxu0
      %3236 = vmatprep.mubr.f32.mxu0 %v3024
      %3237 = vmatmul.mubr.f32.gmra.mrb[0].mxu0 %v3023
      %v3238 = vpop.f32.mrb[0].mxu0
      %v3239 = vadd.f32 0.0, %v3238
      %v3240 = vpop.f32.mrb[0].mxu0
      %3241 = vmatprep.mubr.f32.mxu0 %v3026
      %3242 = vmatmul.mubr.f32.gmra.mrb[0].mxu0 %v3025
      %v3243 = vpop.f32.mrb[0].mxu0
      %v3244 = vadd.f32 0.0, %v3243
      %v3245 = vpop.f32.mrb[0].mxu0
      %3246 = vmatprep.mubr.f32.mxu0 %v3028
      %3247 = vmatmul.mubr.f32.gmra.mrb[0].mxu0 %v3027
      %v3248 = vpop.f32.mrb[0].mxu0
      %v3249 = vadd.f32 0.0, %v3248
      %v3250 = vpop.f32.mrb[0].mxu0
      %3251 = vmatprep.mubr.f32.mxu0 %v3030
      %3252 = vmatmul.mubr.f32.gmra.mrb[0].mxu0 %v3029
      %v3253 = vpop.f32.mrb[0].mxu0
      %v3254 = vadd.f32 0.0, %v3253
      %v3255 = vpop.f32.mrb[0].mxu0
      %3256 = vmatprep.mubr.f32.mxu0 %v3032
      %3257 = vmatmul.mubr.f32.gmra.mrb[0].mxu0 %v3031
      %v3258 = vpop.f32.mrb[0].mxu0
      %v3259 = vadd.f32 0.0, %v3258
      %v3260 = vpop.f32.mrb[0].mxu0
      %3261 = vmatprep.mubr.f32.mxu0 %v3034
      %3262 = vmatmul.mubr.f32.gmra.mrb[0].mxu0 %v3033
      %v3263 = vpop.f32.mrb[0].mxu0
      %v3264 = vadd.f32 0.0, %v3263
      %v3265 = vpop.f32.mrb[0].mxu0
      %3266 = vmatprep.mubr.f32.mxu0 %v3036
      %3267 = vmatmul.mubr.f32.gmra.mrb[0].mxu0 %v3035
      %v3268 = vpop.f32.mrb[0].mxu0
      %v3269 = vadd.f32 0.0, %v3268
      %v3270 = vpop.f32.mrb[0].mxu0
      %3271 = vmatprep.mubr.f32.mxu0 %v3038
      %3272 = vmatmul.mubr.f32.gmra.mrb[0].mxu0 %v3037
      %v3273 = vpop.f32.mrb[0].mxu0
      %v3274 = vadd.f32 0.0, %v3273
      %v3275 = vpop.f32.mrb[0].mxu0
      %3276 = vmatprep.mubr.f32.mxu0 %v3040
      %3277 = vmatmul.mubr.f32.gmra.mrb[0].mxu0 %v3039
      %v3278 = vpop.f32.mrb[0].mxu0
      %v3279 = vadd.f32 0.0, %v3278
      %v3280 = vpop.f32.mrb[0].mxu0
      %3281 = vmatprep.mubr.f32.mxu0 %v3042
      %3282 = vmatmul.mubr.f32.gmra.mrb[0].mxu0 %v3041
      %v3283 = vpop.f32.mrb[0].mxu0
      %v3284 = vadd.f32 0.0, %v3283
      %v3285 = vpop.f32.mrb[0].mxu0
      %3286 = vmatprep.mubr.f32.mxu0 %v3044
      %3287 = vmatmul.mubr.f32.gmra.mrb[0].mxu0 %v3043
      %v3288 = vpop.f32.mrb[0].mxu0
      %v3289 = vadd.f32 0.0, %v3288
      %v3290 = vpop.f32.mrb[0].mxu0
      %3291 = vmatprep.mubr.f32.mxu0 %v3046
      %3292 = vmatmul.mubr.f32.gmra.mrb[0].mxu0 %v3045
      %v3293 = vpop.f32.mrb[0].mxu0
      %v3294 = vadd.f32 0.0, %v3293
      %v3295 = vpop.f32.mrb[0].mxu0
      %3296 = vmatprep.mubr.f32.mxu0 %v3048
      %3297 = vmatmul.mubr.f32.gmra.mrb[0].mxu0 %v3047
      %v3298 = vpop.f32.mrb[0].mxu0
      %v3299 = vadd.f32 0.0, %v3298
      %v3300 = vpop.f32.mrb[0].mxu0
      %3301 = vmatprep.mubr.f32.mxu0 %v3050
      %3302 = vmatmul.mubr.f32.gmra.mrb[0].mxu0 %v3049
      %v3303 = vpop.f32.mrb[0].mxu0
      %v3304 = vadd.f32 0.0, %v3303
      %v3305 = vpop.f32.mrb[0].mxu0
      %3306 = vmatprep.mubr.f32.mxu0 %v3052
      %3307 = vmatmul.mubr.f32.gmra.mrb[0].mxu0 %v3051
      %v3308 = vpop.f32.mrb[0].mxu0
      %v3309 = vadd.f32 0.0, %v3308
      %v3310 = vpop.f32.mrb[0].mxu0
      %3311 = vmatprep.mubr.f32.mxu0 %v3054
      %3312 = vmatmul.mubr.f32.gmra.mrb[0].mxu0 %v3053
      %v3313 = vpop.f32.mrb[0].mxu0
      %v3314 = vadd.f32 0.0, %v3313
      %v3315 = vpop.f32.mrb[0].mxu0
      %3316 = vmatprep.mubr.f32.mxu0 %v3056
      %3317 = vmatmul.mubr.f32.gmra.mrb[0].mxu0 %v3055
      %v3318 = vpop.f32.mrb[0].mxu0
      %v3319 = vadd.f32 0.0, %v3318
      %v3320 = vpop.f32.mrb[0].mxu0
      %3321 = vmatprep.mubr.f32.mxu0 %v3058
      %3322 = vmatmul.mubr.f32.gmra.mrb[0].mxu0 %v3057
      %v3323 = vpop.f32.mrb[0].mxu0
      %v3324 = vadd.f32 0.0, %v3323
      %v3325 = vpop.f32.mrb[0].mxu0
      %3326 = vmatprep.mubr.f32.mxu0 %v3060
      %3327 = vmatmul.mubr.f32.gmra.mrb[0].mxu0 %v3059
      %v3328 = vpop.f32.mrb[0].mxu0
      %v3329 = vadd.f32 0.0, %v3328
      %v3330 = vpop.f32.mrb[0].mxu0
      %3331 = vmatprep.mubr.f32.mxu0 %v3062
      %3332 = vmatmul.mubr.f32.gmra.mrb[0].mxu0 %v3061
      %v3333 = vpop.f32.mrb[0].mxu0
      %v3334 = vadd.f32 0.0, %v3333
      %v3335 = vpop.f32.mrb[0].mxu0
      %3336 = vmatprep.mubr.f32.mxu0 %v3064
      %3337 = vmatmul.mubr.f32.gmra.mrb[0].mxu0 %v3063
      %v3338 = vpop.f32.mrb[0].mxu0
      %v3339 = vadd.f32 0.0, %v3338
      %v3340 = vpop.f32.mrb[0].mxu0
      %3341 = vdwg.mxu0
      %v3342 = vld [vmem:[%s8] sm:$0xff]
      %v3343 = vld [vmem:[%s8 + $0x8] sm:$0xff]
      %v3344 = vld [vmem:[%s8 + $0x10] sm:$0xff]
      %v3345 = vld [vmem:[%s8 + $0x18] sm:$0xff]
      %v3346 = vld [vmem:[%s8 + $0x20] sm:$0xff]
      %v3347 = vld [vmem:[%s8 + $0x28] sm:$0xff]
      %v3348 = vld [vmem:[%s8 + $0x30] sm:$0xff]
      %v3349 = vld [vmem:[%s8 + $0x38] sm:$0xff]
      %v3350 = vld [vmem:[%s8 + $0x40] sm:$0xff]
      %v3351 = vld [vmem:[%s8 + $0x48] sm:$0xff]
      %v3352 = vld [vmem:[%s8 + $0x50] sm:$0xff]
      %v3353 = vld [vmem:[%s8 + $0x58] sm:$0xff]
      %v3354 = vld [vmem:[%s8 + $0x60] sm:$0xff]
      %v3355 = vld [vmem:[%s8 + $0x68] sm:$0xff]
      %v3356 = vld [vmem:[%s8 + $0x70] sm:$0xff]
      %v3357 = vld [vmem:[%s8 + $0x78] sm:$0xff]
      %v3358 = vld [vmem:[%s8 + $0x80] sm:$0xff]
      %v3359 = vld [vmem:[%s8 + $0x88] sm:$0xff]
      %v3360 = vld [vmem:[%s8 + $0x90] sm:$0xff]
      %v3361 = vld [vmem:[%s8 + $0x98] sm:$0xff]
      %v3362 = vld [vmem:[%s8 + $0xa0] sm:$0xff]
      %v3363 = vld [vmem:[%s8 + $0xa8] sm:$0xff]
      %v3364 = vld [vmem:[%s8 + $0xb0] sm:$0xff]
      %v3365 = vld [vmem:[%s8 + $0xb8] sm:$0xff]
      %v3366 = vld [vmem:[%s8 + $0xc0] sm:$0xff]
      %v3367 = vld [vmem:[%s8 + $0xc8] sm:$0xff]
      %v3368 = vld [vmem:[%s8 + $0xd0] sm:$0xff]
      %v3369 = vld [vmem:[%s8 + $0xd8] sm:$0xff]
      %v3370 = vld [vmem:[%s8 + $0xe0] sm:$0xff]
      %v3371 = vld [vmem:[%s8 + $0xe8] sm:$0xff]
      %v3372 = vld [vmem:[%s8 + $0xf0] sm:$0xff]
      %v3373 = vld [vmem:[%s8 + $0xf8] sm:$0xff]
      %v3374 = vld [vmem:[%s8 + $0x100] sm:$0xff]
      %v3375 = vld [vmem:[%s8 + $0x108] sm:$0xff]
      %v3376 = vld [vmem:[%s8 + $0x110] sm:$0xff]
      %v3377 = vld [vmem:[%s8 + $0x118] sm:$0xff]
      %v3378 = vmul.f32 %v3164, %v3342
      %v3379 = vmul.f32 %v3169, %v3343
      %v3380 = vmul.f32 %v3174, %v3344
      %v3381 = vmul.f32 %v3179, %v3345
      %v3382 = vmul.f32 %v3184, %v3346
      %v3383 = vmul.f32 %v3189, %v3347
      %v3384 = vmul.f32 %v3194, %v3348
      %v3385 = vmul.f32 %v3199, %v3349
      %v3386 = vmul.f32 %v3204, %v3350
      %v3387 = vmul.f32 %v3209, %v3351
      %v3388 = vmul.f32 %v3214, %v3352
      %v3389 = vmul.f32 %v3219, %v3353
      %v3390 = vmul.f32 %v3224, %v3354
      %v3391 = vmul.f32 %v3229, %v3355
      %v3392 = vmul.f32 %v3234, %v3356
      %v3393 = vmul.f32 %v3239, %v3357
      %v3394 = vmul.f32 %v3244, %v3358
      %v3395 = vmul.f32 %v3249, %v3359
      %v3396 = vmul.f32 %v3254, %v3360
      %v3397 = vmul.f32 %v3259, %v3361
      %v3398 = vmul.f32 %v3264, %v3362
      %v3399 = vmul.f32 %v3269, %v3363
      %v3400 = vmul.f32 %v3274, %v3364
      %v3401 = vmul.f32 %v3279, %v3365
      %v3402 = vmul.f32 %v3284, %v3366
      %v3403 = vmul.f32 %v3289, %v3367
      %v3404 = vmul.f32 %v3294, %v3368
      %v3405 = vmul.f32 %v3299, %v3369
      %v3406 = vmul.f32 %v3304, %v3370
      %v3407 = vmul.f32 %v3309, %v3371
      %v3408 = vmul.f32 %v3314, %v3372
      %v3409 = vmul.f32 %v3319, %v3373
      %v3410 = vmul.f32 %v3324, %v3374
      %v3411 = vmul.f32 %v3329, %v3375
      %v3412 = vmul.f32 %v3334, %v3376
      %v3413 = vmul.f32 %v3339, %v3377
      %v3414 = vld [vmem:[%s9] sm:$0xff]
      %v3415 = vld [vmem:[%s9 + $0x8] sm:$0xff]
      %v3416 = vld [vmem:[%s9 + $0x10] sm:$0xff]
      %v3417 = vld [vmem:[%s9 + $0x18] sm:$0xff]
      %v3418 = vld [vmem:[%s9 + $0x20] sm:$0xff]
      %v3419 = vld [vmem:[%s9 + $0x28] sm:$0xff]
      %vm3420 = vcmask 261120
      %v3422 = vsel %vm3420, %v3416, 0
      %v3425 = vsel %vm3420, %v3419, 0
      %3427 = vmatprep.subr.mxu0 0.0
      %3428 = vmatpush1.msra.mxu0 %v3378
      %3429 = vmatprep.subr.mxu0 0.0
      %3430 = vmatpush1.msra.mxu0 %v3379
      %3431 = vmatprep.subr.mxu0 0.0
      %3432 = vmatpush1.msra.mxu0 %v3380
      %3433 = vmatprep.subr.mxu0 0.0
      %3434 = vmatpush1.msra.mxu0 %v3381
      %3435 = vmatprep.subr.mxu0 0.0
      %3436 = vmatpush1.msra.mxu0 %v3382
      %3437 = vmatprep.subr.mxu0 0.0
      %3438 = vmatpush1.msra.mxu0 %v3383
      %3439 = vmatprep.subr.mxu0 0.0
      %3440 = vmatpush1.msra.mxu0 %v3384
      %3441 = vmatprep.subr.mxu0 0.0
      %3442 = vmatpush1.msra.mxu0 %v3385
      %3443 = vmatprep.subr.mxu0 0.0
      %3444 = vmatpush1.msra.mxu0 %v3386
      %3445 = vmatprep.subr.mxu0 0.0
      %3446 = vmatpush1.msra.mxu0 %v3387
      %3447 = vmatprep.subr.mxu0 0.0
      %3448 = vmatpush1.msra.mxu0 %v3388
      %3449 = vmatprep.subr.mxu0 0.0
      %3450 = vmatpush1.msra.mxu0 %v3389
      %3451 = vmatprep.subr.mxu0 0.0
      %3452 = vmatpush1.msra.mxu0 %v3390
      %3453 = vmatprep.subr.mxu0 0.0
      %3454 = vmatpush1.msra.mxu0 %v3391
      %3455 = vmatprep.subr.mxu0 0.0
      %3456 = vmatpush1.msra.mxu0 %v3392
      %3457 = vmatprep.subr.mxu0 0.0
      %3458 = vmatpush1.msra.mxu0 %v3393
      %3459 = vmatprep.subr.mxu0 0.0
      %3460 = vmatpush1.msra.mxu0 %v3394
      %3461 = vmatprep.subr.mxu0 0.0
      %3462 = vmatpush1.msra.mxu0 %v3395
      %3463 = vmatprep.subr.mxu0 0.0
      %3464 = vmatpush1.msra.mxu0 %v3396
      %3465 = vmatprep.subr.mxu0 0.0
      %3466 = vmatpush1.msra.mxu0 %v3397
      %3467 = vmatprep.subr.mxu0 0.0
      %3468 = vmatpush1.msra.mxu0 %v3398
      %3469 = vmatprep.subr.mxu0 0.0
      %3470 = vmatpush1.msra.mxu0 %v3399
      %3471 = vmatprep.subr.mxu0 0.0
      %3472 = vmatpush1.msra.mxu0 %v3400
      %3473 = vmatprep.subr.mxu0 0.0
      %3474 = vmatpush1.msra.mxu0 %v3401
      %3475 = vmatprep.subr.mxu0 0.0
      %3476 = vmatpush1.msra.mxu0 %v3402
      %3477 = vmatprep.subr.mxu0 0.0
      %3478 = vmatpush1.msra.mxu0 %v3403
      %3479 = vmatprep.subr.mxu0 0.0
      %3480 = vmatpush1.msra.mxu0 %v3404
      %3481 = vmatprep.subr.mxu0 0.0
      %3482 = vmatpush1.msra.mxu0 %v3405
      %3483 = vmatprep.subr.mxu0 0.0
      %3484 = vmatpush1.msra.mxu0 %v3406
      %3485 = vmatprep.subr.mxu0 0.0
      %3486 = vmatpush1.msra.mxu0 %v3407
      %3487 = vmatprep.subr.mxu0 0.0
      %3488 = vmatpush1.msra.mxu0 %v3408
      %3489 = vmatprep.subr.mxu0 0.0
      %3490 = vmatpush1.msra.mxu0 %v3409
      %3491 = vmatprep.mubr.f32.mxu0 %v3415
      %3492 = vmatmul.mubr.f32.gmra.mrb[0].mxu0 %v3414
      %v3493 = vpop.f32.mrb[0].mxu0
      %v3494 = vadd.f32 0.0, %v3493
      %v3495 = vpop.f32.mrb[0].mxu0
      %3496 = vmatprep.mubr.f32.mxu0 %v3418
      %3497 = vmatmul.mubr.f32.gmra.mrb[0].mxu0 %v3417
      %v3498 = vpop.f32.mrb[0].mxu0
      %v3499 = vadd.f32 0.0, %v3498
      %v3500 = vpop.f32.mrb[0].mxu0
      %3501 = vdwg.mxu0
      %3502 = vmatprep.subr.mxu0 0.0
      %3503 = vmatpush1.msra.mxu0 %v3410
      %3504 = vmatprep.subr.mxu0 0.0
      %3505 = vmatpush1.msra.mxu0 %v3411
      %3506 = vmatprep.subr.mxu0 0.0
      %3507 = vmatpush1.msra.mxu0 %v3412
      %3508 = vmatprep.subr.mxu0 0.0
      %3509 = vmatpush1.msra.mxu0 %v3413
      %3510 = vmatprep.subr.mxu0 0.0
      %3511 = vmatpush1.msra.mxu0 0.0
      %3512 = vmatprep.subr.mxu0 0.0
      %3513 = vmatpush1.msra.mxu0 0.0
      %3514 = vmatprep.subr.mxu0 0.0
      %3515 = vmatpush1.msra.mxu0 0.0
      %3516 = vmatprep.subr.mxu0 0.0
      %3517 = vmatpush1.msra.mxu0 0.0
      %3518 = vmatprep.subr.mxu0 0.0
      %3519 = vmatpush1.msra.mxu0 0.0
      %3520 = vmatprep.subr.mxu0 0.0
      %3521 = vmatpush1.msra.mxu0 0.0
      %3522 = vmatprep.subr.mxu0 0.0
      %3523 = vmatpush1.msra.mxu0 0.0
      %3524 = vmatprep.subr.mxu0 0.0
      %3525 = vmatpush1.msra.mxu0 0.0
      %3526 = vmatprep.subr.mxu0 0.0
      %3527 = vmatpush1.msra.mxu0 0.0
      %3528 = vmatprep.subr.mxu0 0.0
      %3529 = vmatpush1.msra.mxu0 0.0
      %3530 = vmatprep.subr.mxu0 0.0
      %3531 = vmatpush1.msra.mxu0 0.0
      %3532 = vmatprep.subr.mxu0 0.0
      %3533 = vmatpush1.msra.mxu0 0.0
      %3534 = vmatprep.subr.mxu0 0.0
      %3535 = vmatpush1.msra.mxu0 0.0
      %3536 = vmatprep.subr.mxu0 0.0
      %3537 = vmatpush1.msra.mxu0 0.0
      %3538 = vmatprep.subr.mxu0 0.0
      %3539 = vmatpush1.msra.mxu0 0.0
      %3540 = vmatprep.subr.mxu0 0.0
      %3541 = vmatpush1.msra.mxu0 0.0
      %3542 = vmatprep.subr.mxu0 0.0
      %3543 = vmatpush1.msra.mxu0 0.0
      %3544 = vmatprep.subr.mxu0 0.0
      %3545 = vmatpush1.msra.mxu0 0.0
      %3546 = vmatprep.subr.mxu0 0.0
      %3547 = vmatpush1.msra.mxu0 0.0
      %3548 = vmatprep.subr.mxu0 0.0
      %3549 = vmatpush1.msra.mxu0 0.0
      %3550 = vmatprep.subr.mxu0 0.0
      %3551 = vmatpush1.msra.mxu0 0.0
      %3552 = vmatprep.subr.mxu0 0.0
      %3553 = vmatpush1.msra.mxu0 0.0
      %3554 = vmatprep.subr.mxu0 0.0
      %3555 = vmatpush1.msra.mxu0 0.0
      %3556 = vmatprep.subr.mxu0 0.0
      %3557 = vmatpush1.msra.mxu0 0.0
      %3558 = vmatprep.subr.mxu0 0.0
      %3559 = vmatpush1.msra.mxu0 0.0
      %3560 = vmatprep.subr.mxu0 0.0
      %3561 = vmatpush1.msra.mxu0 0.0
      %3562 = vmatprep.subr.mxu0 0.0
      %3563 = vmatpush1.msra.mxu0 0.0
      %3564 = vmatprep.subr.mxu0 0.0
      %3565 = vmatpush1.msra.mxu0 0.0
      %3566 = vmatprep.mubr.f32.mxu0 0.0
      %3567 = vmatmul.mubr.f32.gmra.mrb[0].mxu0 %v3422
      %v3568 = vpop.f32.mrb[0].mxu0
      %v3569 = vadd.f32 %v3494, %v3568
      %v3570 = vpop.f32.mrb[0].mxu0
      %3571 = vmatprep.mubr.f32.mxu0 0.0
      %3572 = vmatmul.mubr.f32.gmra.mrb[0].mxu0 %v3425
      %v3573 = vpop.f32.mrb[0].mxu0
      %v3574 = vadd.f32 %v3499, %v3573
      %v3575 = vpop.f32.mrb[0].mxu0
      %3576 = vdwg.mxu0
      %v3577 = vld [vmem:[%s10] sm:$0xff]
      %v3578 = vld [vmem:[%s10 + $0x8] sm:$0xff]
      %v3579 = vld [vmem:[%s10 + $0x10] sm:$0xff]
      %v3580 = vld [vmem:[%s10 + $0x18] sm:$0xff]
      %v3581 = vld [vmem:[%s10 + $0x20] sm:$0xff]
      %v3582 = vld [vmem:[%s10 + $0x28] sm:$0xff]
      %v3583 = vld [vmem:[%s10 + $0x30] sm:$0xff]
      %v3584 = vld [vmem:[%s10 + $0x38] sm:$0xff]
      %v3585 = vld [vmem:[%s11] sm:$0x1]
      %v3587 = vlaneseq
      %v3588 = vshrl.u32 %v3587, 7
      %v3589 = vsub.s32 0, %v3588
      %v3590 = vrot.slane %v3585, %v3589
      %v3593 = vsel %vm1201, %v3569, 0
      %v3596 = vsel %vm1201, %v3574, 0
      %3598 = vmatprep.subr.mxu0 0.0
      %3599 = vmatpush1.msra.mxu0 %v3577
      %3600 = vmatprep.subr.mxu0 0.0
      %3601 = vmatpush1.msra.mxu0 %v3578
      %3602 = vmatprep.subr.mxu0 0.0
      %3603 = vmatpush1.msra.mxu0 %v3579
      %3604 = vmatprep.subr.mxu0 0.0
      %3605 = vmatpush1.msra.mxu0 %v3580
      %3606 = vmatprep.subr.mxu0 0.0
      %3607 = vmatpush1.msra.mxu0 %v3581
      %3608 = vmatprep.subr.mxu0 0.0
      %3609 = vmatpush1.msra.mxu0 %v3582
      %3610 = vmatprep.subr.mxu0 0.0
      %3611 = vmatpush1.msra.mxu0 %v3583
      %3612 = vmatprep.subr.mxu0 0.0
      %3613 = vmatpush1.msra.mxu0 %v3584
      %3614 = vmatprep.subr.mxu0 0.0
      %3615 = vmatpush1.msra.mxu0 0.0
      %3616 = vmatprep.subr.mxu0 0.0
      %3617 = vmatpush1.msra.mxu0 0.0
      %3618 = vmatprep.subr.mxu0 0.0
      %3619 = vmatpush1.msra.mxu0 0.0
      %3620 = vmatprep.subr.mxu0 0.0
      %3621 = vmatpush1.msra.mxu0 0.0
      %3622 = vmatprep.subr.mxu0 0.0
      %3623 = vmatpush1.msra.mxu0 0.0
      %3624 = vmatprep.subr.mxu0 0.0
      %3625 = vmatpush1.msra.mxu0 0.0
      %3626 = vmatprep.subr.mxu0 0.0
      %3627 = vmatpush1.msra.mxu0 0.0
      %3628 = vmatprep.subr.mxu0 0.0
      %3629 = vmatpush1.msra.mxu0 0.0
      %3630 = vmatprep.subr.mxu0 0.0
      %3631 = vmatpush1.msra.mxu0 0.0
      %3632 = vmatprep.subr.mxu0 0.0
      %3633 = vmatpush1.msra.mxu0 0.0
      %3634 = vmatprep.subr.mxu0 0.0
      %3635 = vmatpush1.msra.mxu0 0.0
      %3636 = vmatprep.subr.mxu0 0.0
      %3637 = vmatpush1.msra.mxu0 0.0
      %3638 = vmatprep.subr.mxu0 0.0
      %3639 = vmatpush1.msra.mxu0 0.0
      %3640 = vmatprep.subr.mxu0 0.0
      %3641 = vmatpush1.msra.mxu0 0.0
      %3642 = vmatprep.subr.mxu0 0.0
      %3643 = vmatpush1.msra.mxu0 0.0
      %3644 = vmatprep.subr.mxu0 0.0
      %3645 = vmatpush1.msra.mxu0 0.0
      %3646 = vmatprep.subr.mxu0 0.0
      %3647 = vmatpush1.msra.mxu0 0.0
      %3648 = vmatprep.subr.mxu0 0.0
      %3649 = vmatpush1.msra.mxu0 0.0
      %3650 = vmatprep.subr.mxu0 0.0
      %3651 = vmatpush1.msra.mxu0 0.0
      %3652 = vmatprep.subr.mxu0 0.0
      %3653 = vmatpush1.msra.mxu0 0.0
      %3654 = vmatprep.subr.mxu0 0.0
      %3655 = vmatpush1.msra.mxu0 0.0
      %3656 = vmatprep.subr.mxu0 0.0
      %3657 = vmatpush1.msra.mxu0 0.0
      %3658 = vmatprep.subr.mxu0 0.0
      %3659 = vmatpush1.msra.mxu0 0.0
      %3660 = vmatprep.subr.mxu0 0.0
      %3661 = vmatpush1.msra.mxu0 0.0
      %3662 = vmatprep.mubr.f32.mxu0 0.0
      %3663 = vmatmul.mubr.f32.gmra.mrb[0].mxu0 %v3593
      %v3664 = vpop.f32.mrb[0].mxu0
      %v3665 = vadd.f32 %v3590, %v3664
      %v3666 = vpop.f32.mrb[0].mxu0
      %3667 = vmatprep.mubr.f32.mxu0 0.0
      %3668 = vmatmul.mubr.f32.gmra.mrb[0].mxu0 %v3596
      %v3669 = vpop.f32.mrb[0].mxu0
      %v3670 = vadd.f32 %v3590, %v3669
      %v3671 = vpop.f32.mrb[0].mxu0
      %3672 = vdwg.mxu0
      %vm3673 = vcmask 31744
      %3674 = vst.msk [vmem:[%s415] sm:$0xff] %vm3673, %v3665
      %3675 = vst.msk [vmem:[%s415 + $0x8] sm:$0xff] %vm3673, %v3670
      %s3676 = smul.u32 2, %s23
      %p3677 = scmp.lt.s32.totalorder %s3676, 3
      %s3678 = scalar_select %p3677, %s3676, 3
      %s3679 = smul.addr %s3678, 8
      %s3680 = scalar_lea.vmem %s12, %s3679
      // Predicated region
      $region69: #{dqn_forward.1} parent=67 // pred_check
        %p3681 = pneg %p298
      $region70: #{dqn_forward.1} parent=67 // pred_check_branch
        %3683 = sbr.rel (%p3681) target = $region72
      $region71: #{dqn_forward.1} parent=67 // pred_region
        %s3684 = smul.u32 2, %s23
      $region72: #{dqn_forward.1} parent=67 // pred_fallthru
        _
    $region68: #{dqn_forward.1} parent=5 // pred_fallthru
      _
    %p3685 = scmp.le.s32.totalorder 2, %s18
    // Predicated region
    $region73: #{dqn_forward.1} parent=5 // pred_check
      %p3686 = pneg %p3685
    $region74: #{dqn_forward.1} parent=5 // pred_check_branch
      %3688 = sbr.rel (%p3686) target = $region76
    $region75: #{dqn_forward.1} parent=5 // pred_region
      %s3689 = ssub.s32 %s18, 2
      // Predicated region
      $region77: #{dqn_forward.1} parent=75 // pred_check
        %p3690 = pneg %p304
      $region78: #{dqn_forward.1} parent=75 // pred_check_branch
        %3692 = sbr.rel (%p3690) target = $region80
      $region79: #{dqn_forward.1} parent=75 // pred_region
        %s3693 = smul.u32 2, %s24
        %p3694 = scmp.lt.s32.totalorder %s3693, 3
        %s3695 = scalar_select %p3694, %s3693, 3
        %s3696 = smul.addr %s3695, 8
        %s3697 = scalar_lea.vmem %s12, %s3696
      $region80: #{dqn_forward.1} parent=75 // pred_fallthru
        _
    $region76: #{dqn_forward.1} parent=5 // pred_fallthru
      _
  $region6: #{dqn_forward.1} parent=0 // loop_footer
    %s22 = sadd.s32 1, %s18
  $region7: #{dqn_forward.1} parent=0 // loop_footer_branch
    %17 = sbr.rel target = $region3
  $region8: #{dqn_forward.1} parent=0 // loop_exit
    _

</llo_original>
